<compile_context>
chip_gen: v7x
topology: tpu7x:2x2x1
jax: 0.10.0
libtpu: 0.0.40
codegen_flags: <defaults>
</compile_context>

<pallas_src>
import jax
import jax.numpy as jnp
from jax.experimental import pallas as pl
from jax.experimental.pallas import tpu as pltpu

# ----------------------- synthetic BioBERT config ---------------------------
VOCAB = 50
MAX_POS = 16
HIDDEN = 32
NUM_HEADS = 2
HEAD_DIM = HIDDEN // NUM_HEADS
INTERMEDIATE = 64
NUM_LAYERS = 2
LN_EPS = 1e-12

B, N, L = 2, 3, 8            # batch of docs, notes per doc, tokens per note
M = B * N                    # flattened BERT instances
NUM_BLOCKS = 2               # parallel grid blocks (>= 2 so v7x megacore has work)
MB = M // NUM_BLOCKS         # instances per grid block


# ----------------------------- helpers --------------------------------------
def _layernorm(x, g, b):
    mean = jnp.mean(x, axis=-1, keepdims=True)
    var = jnp.mean((x - mean) ** 2, axis=-1, keepdims=True)
    return (x - mean) * jax.lax.rsqrt(var + LN_EPS) * g + b


def _gelu(x):
    # tanh-approximate GELU (EUP tanh path).
    # TODO(synk): HF BERT's default is the exact erf GELU; tanh approx drifts ~1e-3.
    return 0.5 * x * (1.0 + jnp.tanh(0.7978845608028654 * (x + 0.044715 * x * x * x)))


# --------------------------- fused Pallas kernel ------------------------------
def fused_bert_kernel(x_ref, bias_ref,
                      emb_g_ref, emb_b_ref,
                      wqkv_ref, bqkv_ref, wo_ref, bo_ref,
                      g1_ref, be1_ref, w1_ref, b1_ref,
                      w2_ref, b2_ref, g2_ref, be2_ref,
                      o_ref):
    # x_ref: (MB, L, H) summed embeddings; bias_ref: (MB, 1, L) additive mask bias
    x = x_ref[...].astype(jnp.float32).reshape(MB * L, HIDDEN)
    x = _layernorm(x, emb_g_ref[...], emb_b_ref[...])          # embedding LayerNorm

    # broadcast the additive mask bias ONCE (hoisted out of the layer/head loops)
    bias = jnp.broadcast_to(bias_ref[...], (MB, L, L))          # (MB, L, L)
    scale = 1.0 / (HEAD_DIM ** 0.5)

    for li in range(NUM_LAYERS):                                # unrolled; weights VMEM-resident
        # fused QKV projection over the whole (MB*L, H) token slab -> (MB*L, 3H)
        qkv = jnp.dot(x, wqkv_ref[li], preferred_element_type=jnp.float32) + bqkv_ref[li]

        attn = jnp.zeros((MB * L, HIDDEN), jnp.float32)
        for h in range(NUM_HEADS):                              # static head loop (no lane concat)
            q = qkv[:, 0 * HIDDEN + h * HEAD_DIM: 0 * HIDDEN + (h + 1) * HEAD_DIM] * scale
            k = qkv[:, 1 * HIDDEN + h * HEAD_DIM: 1 * HIDDEN + (h + 1) * HEAD_DIM]
            v = qkv[:, 2 * HIDDEN + h * HEAD_DIM: 2 * HIDDEN + (h + 1) * HEAD_DIM]
            qh = q.reshape(MB, L, HEAD_DIM)
            kh = k.reshape(MB, L, HEAD_DIM)
            vh = v.reshape(MB, L, HEAD_DIM)
            # instance-batched attention scores (MB, L, L)
            s = jnp.einsum('bqd,bkd->bqk', qh, kh,
                           preferred_element_type=jnp.float32) + bias
            s = s - jnp.max(s, axis=-1, keepdims=True)
            p = jnp.exp(s)
            p = p * pl.reciprocal(jnp.sum(p, axis=-1, keepdims=True), approx=True)
            ctx = jnp.einsum('bqk,bkd->bqd', p, vh,
                             preferred_element_type=jnp.float32)   # (MB, L, HD)
            # ctx @ Wo == sum_h ctx_h @ Wo[h]  -> accumulate per-head output projections
            attn = attn + jnp.dot(ctx.reshape(MB * L, HEAD_DIM), wo_ref[li, h],
                                  preferred_element_type=jnp.float32)
        attn = attn + bo_ref[li]
        x1 = _layernorm(x + attn, g1_ref[li], be1_ref[li])

        hmid = _gelu(jnp.dot(x1, w1_ref[li], preferred_element_type=jnp.float32) + b1_ref[li])
        ffn = jnp.dot(hmid, w2_ref[li], preferred_element_type=jnp.float32) + b2_ref[li]
        x = _layernorm(x1 + ffn, g2_ref[li], be2_ref[li])

    # CLS pooling: token 0 of every instance in this block
    cls = x.reshape(MB, L, HIDDEN)[:, 0, :]
    o_ref[0] = cls.astype(o_ref.dtype)


# ------------------------- pallas_call wrapper --------------------------------
def _const_spec(arr):
    nd = arr.ndim
    return pl.BlockSpec(arr.shape, lambda g, _nd=nd: (0,) * _nd)


def fused_bert_forward(emb, mask_bias, p):
    weight_args = (p["emb_g"], p["emb_b"],
                   p["wqkv"], p["bqkv"], p["wo"], p["bo"],
                   p["g1"], p["be1"], p["w1"], p["b1"],
                   p["w2"], p["b2"], p["g2"], p["be2"])
    out = pl.pallas_call(
        fused_bert_kernel,
        out_shape=jax.ShapeDtypeStruct((NUM_BLOCKS, MB, HIDDEN), jnp.float32),
        grid=(NUM_BLOCKS,),
        in_specs=[pl.BlockSpec((MB, L, HIDDEN), lambda g: (g, 0, 0)),
                  pl.BlockSpec((MB, 1, L), lambda g: (g, 0, 0))]
                 + [_const_spec(w) for w in weight_args],
        out_specs=pl.BlockSpec((1, MB, HIDDEN), lambda g: (g, 0, 0)),
        compiler_params=pltpu.CompilerParams(
            dimension_semantics=("parallel",)),
    )(emb, mask_bias, *weight_args)
    return out.reshape(M, HIDDEN)


# ---------------------------- parameters -------------------------------------
def init_params(key):
    def nrm(k, shape, s=0.02):
        return jax.random.normal(k, shape, jnp.float32) * s

    keys = jax.random.split(key, 4 + NUM_LAYERS)
    params = {
        "word_emb": nrm(keys[0], (VOCAB, HIDDEN)),
        "pos_emb": nrm(keys[1], (MAX_POS, HIDDEN)),
        "type_emb": nrm(keys[2], (2, HIDDEN)),
        "emb_g": jnp.ones((1, HIDDEN), jnp.float32),
        "emb_b": jnp.zeros((1, HIDDEN), jnp.float32),
        "layers": [],
    }
    for li in range(NUM_LAYERS):
        lk = jax.random.split(keys[4 + li], 6)
        params["layers"].append({
            "wq": nrm(lk[0], (HIDDEN, HIDDEN)), "bq": jnp.zeros((1, HIDDEN), jnp.float32),
            "wk": nrm(lk[1], (HIDDEN, HIDDEN)), "bk": jnp.zeros((1, HIDDEN), jnp.float32),
            "wv": nrm(lk[2], (HIDDEN, HIDDEN)), "bv": jnp.zeros((1, HIDDEN), jnp.float32),
            "wo": nrm(lk[3], (HIDDEN, HIDDEN)), "bo": jnp.zeros((1, HIDDEN), jnp.float32),
            "g1": jnp.ones((1, HIDDEN), jnp.float32), "be1": jnp.zeros((1, HIDDEN), jnp.float32),
            "w1": nrm(lk[4], (HIDDEN, INTERMEDIATE)), "b1": jnp.zeros((1, INTERMEDIATE), jnp.float32),
            "w2": nrm(lk[5], (INTERMEDIATE, HIDDEN)), "b2": jnp.zeros((1, HIDDEN), jnp.float32),
            "g2": jnp.ones((1, HIDDEN), jnp.float32), "be2": jnp.zeros((1, HIDDEN), jnp.float32),
        })
    return params


def pack_params(params):
    """Re-layout standard per-layer BERT weights for the fused kernel:
       stack a leading (NUM_LAYERS,) axis, fuse Wq|Wk|Wv into one (H, 3H) matrix,
       and split Wo by head rows into (NUM_HEADS, HEAD_DIM, H)."""
    ls = params["layers"]
    return {
        "word_emb": params["word_emb"], "pos_emb": params["pos_emb"],
        "type_emb": params["type_emb"],
        "emb_g": params["emb_g"], "emb_b": params["emb_b"],
        "wqkv": jnp.stack([jnp.concatenate([l["wq"], l["wk"], l["wv"]], axis=1) for l in ls]),
        "bqkv": jnp.stack([jnp.concatenate([l["bq"], l["bk"], l["bv"]], axis=1) for l in ls]),
        "wo": jnp.stack([l["wo"].reshape(NUM_HEADS, HEAD_DIM, HIDDEN) for l in ls]),
        "bo": jnp.stack([l["bo"] for l in ls]),
        "g1": jnp.stack([l["g1"] for l in ls]), "be1": jnp.stack([l["be1"] for l in ls]),
        "w1": jnp.stack([l["w1"] for l in ls]), "b1": jnp.stack([l["b1"] for l in ls]),
        "w2": jnp.stack([l["w2"] for l in ls]), "b2": jnp.stack([l["b2"] for l in ls]),
        "g2": jnp.stack([l["g2"] for l in ls]), "be2": jnp.stack([l["be2"] for l in ls]),
    }


# --------------------------- full forward ------------------------------------
def bert_for_representation(packed, input_ids_sequence, attention_mask_sequence):
    """input_ids_sequence / attention_mask_sequence: (B, N, L) int32.
    Returns (B, N, H) — the stacked CLS embeddings (dropout = identity / eval)."""
    ids = input_ids_sequence.reshape(M, L)
    mask = attention_mask_sequence.reshape(M, L).astype(jnp.float32)

    # embeddings (glue: table gathers in plain JAX; token_type_ids == 0)
    pos_ids = jnp.arange(L)
    emb = (packed["word_emb"][ids]                        # (M, L, H)
           + packed["pos_emb"][pos_ids][None, :, :]
           + packed["type_emb"][0][None, None, :])

    # HF-style additive attention bias: (1 - mask) * large_negative
    mask_bias = ((1.0 - mask) * -1e9).reshape(M, 1, L)

    cls = fused_bert_forward(emb, mask_bias, packed)      # single fused Pallas call
    # TODO(synk): hidden dropout is identity here (eval-mode semantics of nn.Dropout).
    return cls.reshape(B, N, HIDDEN)


# ------------------------------ main -----------------------------------------
if __name__ == "__main__":
    key = jax.random.PRNGKey(0)
    pkey, ikey = jax.random.split(key)
    packed = pack_params(init_params(pkey))

    input_ids = jax.random.randint(ikey, (B, N, L), 0, VOCAB, dtype=jnp.int32)
    # mask out the last 2 tokens of every note (padding)
    attention_mask = jnp.concatenate(
        [jnp.ones((B, N, L - 2), jnp.int32), jnp.zeros((B, N, 2), jnp.int32)], axis=-1)

    fwd = jax.jit(bert_for_representation)
    out = fwd(packed, input_ids, attention_mask)
    jax.block_until_ready(out)
    assert out.shape == (B, N, HIDDEN)
    print("KERNEL_OK")
</pallas_src>

<mosaic_0001>
module attributes {stable_mosaic.version = 11 : i64} {
  func.func @fused_bert_kernel(%arg0: i32, %arg1: memref<3x8x32xf32, #tpu.memory_space<vmem>>, %arg2: memref<3x1x8xf32, #tpu.memory_space<vmem>>, %arg3: memref<1x32xf32, #tpu.memory_space<vmem>>, %arg4: memref<1x32xf32, #tpu.memory_space<vmem>>, %arg5: memref<2x32x96xf32, #tpu.memory_space<vmem>>, %arg6: memref<2x1x96xf32, #tpu.memory_space<vmem>>, %arg7: memref<2x2x16x32xf32, #tpu.memory_space<vmem>>, %arg8: memref<2x1x32xf32, #tpu.memory_space<vmem>>, %arg9: memref<2x1x32xf32, #tpu.memory_space<vmem>>, %arg10: memref<2x1x32xf32, #tpu.memory_space<vmem>>, %arg11: memref<2x32x64xf32, #tpu.memory_space<vmem>>, %arg12: memref<2x1x64xf32, #tpu.memory_space<vmem>>, %arg13: memref<2x64x32xf32, #tpu.memory_space<vmem>>, %arg14: memref<2x1x32xf32, #tpu.memory_space<vmem>>, %arg15: memref<2x1x32xf32, #tpu.memory_space<vmem>>, %arg16: memref<2x1x32xf32, #tpu.memory_space<vmem>>, %arg17: memref<1x3x32xf32, #tpu.memory_space<vmem>>) attributes {dimension_semantics = [#tpu.dimension_semantics<parallel>], iteration_bounds = array<i64: 2>, scalar_prefetch = 0 : i64, scratch_operands = 0 : i64, tpu.core_type = #tpu.core_type<tc>, window_params = [{transform_indices = @transform_0, window_bounds = array<i64: 3, 8, 32>}, {transform_indices = @transform_1, window_bounds = array<i64: 3, 1, 8>}, {pipeline_mode = #tpu.pipeline_mode<synchronous>, transform_indices = @transform_2, window_bounds = array<i64: 1, 32>}, {pipeline_mode = #tpu.pipeline_mode<synchronous>, transform_indices = @transform_3, window_bounds = array<i64: 1, 32>}, {pipeline_mode = #tpu.pipeline_mode<synchronous>, transform_indices = @transform_4, window_bounds = array<i64: 2, 32, 96>}, {pipeline_mode = #tpu.pipeline_mode<synchronous>, transform_indices = @transform_5, window_bounds = array<i64: 2, 1, 96>}, {pipeline_mode = #tpu.pipeline_mode<synchronous>, transform_indices = @transform_6, window_bounds = array<i64: 2, 2, 16, 32>}, {pipeline_mode = #tpu.pipeline_mode<synchronous>, transform_indices = @transform_7, window_bounds = array<i64: 2, 1, 32>}, {pipeline_mode = #tpu.pipeline_mode<synchronous>, transform_indices = @transform_8, window_bounds = array<i64: 2, 1, 32>}, {pipeline_mode = #tpu.pipeline_mode<synchronous>, transform_indices = @transform_9, window_bounds = array<i64: 2, 1, 32>}, {pipeline_mode = #tpu.pipeline_mode<synchronous>, transform_indices = @transform_10, window_bounds = array<i64: 2, 32, 64>}, {pipeline_mode = #tpu.pipeline_mode<synchronous>, transform_indices = @transform_11, window_bounds = array<i64: 2, 1, 64>}, {pipeline_mode = #tpu.pipeline_mode<synchronous>, transform_indices = @transform_12, window_bounds = array<i64: 2, 64, 32>}, {pipeline_mode = #tpu.pipeline_mode<synchronous>, transform_indices = @transform_13, window_bounds = array<i64: 2, 1, 32>}, {pipeline_mode = #tpu.pipeline_mode<synchronous>, transform_indices = @transform_14, window_bounds = array<i64: 2, 1, 32>}, {pipeline_mode = #tpu.pipeline_mode<synchronous>, transform_indices = @transform_15, window_bounds = array<i64: 2, 1, 32>}, {transform_indices = @transform_16, window_bounds = array<i64: 1, 3, 32>}]} {
    %c0 = arith.constant 0 : index
    %c0_0 = arith.constant 0 : index
    %c0_1 = arith.constant 0 : index
    %0 = vector.load %arg1[%c0, %c0_0, %c0_1] : memref<3x8x32xf32, #tpu.memory_space<vmem>>, vector<3x8x32xf32>
    %1 = vector.shape_cast %0 : vector<3x8x32xf32> to vector<24x32xf32>
    %c0_2 = arith.constant 0 : index
    %c0_3 = arith.constant 0 : index
    %2 = vector.load %arg3[%c0_2, %c0_3] : memref<1x32xf32, #tpu.memory_space<vmem>>, vector<1x32xf32>
    %c0_4 = arith.constant 0 : index
    %c0_5 = arith.constant 0 : index
    %3 = vector.load %arg4[%c0_4, %c0_5] : memref<1x32xf32, #tpu.memory_space<vmem>>, vector<1x32xf32>
    %cst = arith.constant dense<0.000000e+00> : vector<24xf32>
    %4 = vector.multi_reduction <add>, %1, %cst [1] : vector<24x32xf32> to vector<24xf32>
    %5 = vector.shape_cast %4 : vector<24xf32> to vector<24x1xf32>
    %cst_6 = arith.constant 3.200000e+01 : f32
    %6 = vector.broadcast %cst_6 : f32 to vector<24x1xf32>
    %7 = arith.divf %5, %6 : vector<24x1xf32>
    %8 = vector.broadcast %7 : vector<24x1xf32> to vector<24x32xf32>
    %9 = arith.subf %1, %8 : vector<24x32xf32>
    %10 = arith.mulf %9, %9 : vector<24x32xf32>
    %cst_7 = arith.constant dense<0.000000e+00> : vector<24xf32>
    %11 = vector.multi_reduction <add>, %10, %cst_7 [1] : vector<24x32xf32> to vector<24xf32>
    %12 = vector.shape_cast %11 : vector<24xf32> to vector<24x1xf32>
    %cst_8 = arith.constant 3.200000e+01 : f32
    %13 = vector.broadcast %cst_8 : f32 to vector<24x1xf32>
    %14 = arith.divf %12, %13 : vector<24x1xf32>
    %15 = vector.broadcast %7 : vector<24x1xf32> to vector<24x32xf32>
    %16 = arith.subf %1, %15 : vector<24x32xf32>
    %cst_9 = arith.constant 9.99999996E-13 : f32
    %17 = vector.broadcast %cst_9 : f32 to vector<24x1xf32>
    %18 = arith.addf %14, %17 : vector<24x1xf32>
    %19 = math.rsqrt %18 : vector<24x1xf32>
    %20 = vector.broadcast %19 : vector<24x1xf32> to vector<24x32xf32>
    %21 = arith.mulf %16, %20 : vector<24x32xf32>
    %22 = vector.broadcast %2 : vector<1x32xf32> to vector<24x32xf32>
    %23 = arith.mulf %21, %22 : vector<24x32xf32>
    %24 = vector.broadcast %3 : vector<1x32xf32> to vector<24x32xf32>
    %25 = arith.addf %23, %24 : vector<24x32xf32>
    %c0_10 = arith.constant 0 : index
    %c0_11 = arith.constant 0 : index
    %c0_12 = arith.constant 0 : index
    %26 = vector.load %arg2[%c0_10, %c0_11, %c0_12] : memref<3x1x8xf32, #tpu.memory_space<vmem>>, vector<3x1x8xf32>
    %27 = vector.shape_cast %26 : vector<3x1x8xf32> to vector<3x1x8xf32>
    %28 = vector.broadcast %27 : vector<3x1x8xf32> to vector<3x8x8xf32>
    %c0_13 = arith.constant 0 : index
    %c0_14 = arith.constant 0 : index
    %c0_15 = arith.constant 0 : index
    %29 = vector.load %arg5[%c0_13, %c0_14, %c0_15] : memref<2x32x96xf32, #tpu.memory_space<vmem>>, vector<1x32x96xf32>
    %30 = vector.shape_cast %29 : vector<1x32x96xf32> to vector<32x96xf32>
    %cst_16 = arith.constant dense<0.000000e+00> : vector<24x96xf32>
    %31 = tpu.matmul %25, %30, %cst_16 {dimension_numbers = #tpu.dot_dimension_numbers<[1], [0], [0], [1], [0, 0, 1, 1], [], []>} : vector<24x32xf32>, vector<32x96xf32>, vector<24x96xf32> -> vector<24x96xf32>
    %c0_17 = arith.constant 0 : index
    %c0_18 = arith.constant 0 : index
    %c0_19 = arith.constant 0 : index
    %32 = vector.load %arg6[%c0_17, %c0_18, %c0_19] : memref<2x1x96xf32, #tpu.memory_space<vmem>>, vector<1x1x96xf32>
    %33 = vector.shape_cast %32 : vector<1x1x96xf32> to vector<1x96xf32>
    %34 = vector.broadcast %33 : vector<1x96xf32> to vector<24x96xf32>
    %35 = arith.addf %31, %34 : vector<24x96xf32>
    %cst_20 = arith.constant 0.000000e+00 : f32
    %36 = vector.broadcast %cst_20 : f32 to vector<24x32xf32>
    %37 = vector.extract_strided_slice %35 {offsets = [0, 0], sizes = [24, 16], strides = [1, 1]} : vector<24x96xf32> to vector<24x16xf32>
    %cst_21 = arith.constant 2.500000e-01 : f32
    %38 = vector.broadcast %cst_21 : f32 to vector<24x16xf32>
    %39 = arith.mulf %37, %38 : vector<24x16xf32>
    %40 = vector.extract_strided_slice %35 {offsets = [0, 32], sizes = [24, 16], strides = [1, 1]} : vector<24x96xf32> to vector<24x16xf32>
    %41 = vector.extract_strided_slice %35 {offsets = [0, 64], sizes = [24, 16], strides = [1, 1]} : vector<24x96xf32> to vector<24x16xf32>
    %42 = vector.shape_cast %39 : vector<24x16xf32> to vector<3x8x16xf32>
    %43 = vector.shape_cast %40 : vector<24x16xf32> to vector<3x8x16xf32>
    %44 = vector.shape_cast %41 : vector<24x16xf32> to vector<3x8x16xf32>
    "tpu.trace_start"() <{level = 10 : i32, message = "bqd,bkd->bqk"}> : () -> ()
    %cst_22 = arith.constant dense<0.000000e+00> : vector<3x8x8xf32>
    %45 = tpu.matmul %42, %43, %cst_22 {dimension_numbers = #tpu.dot_dimension_numbers<[2], [2], [1], [1], [0, 0, 0, 1, 1, 1], [0], [0]>} : vector<3x8x16xf32>, vector<3x8x16xf32>, vector<3x8x8xf32> -> vector<3x8x8xf32>
    "tpu.trace_stop"() : () -> ()
    %46 = arith.addf %45, %28 : vector<3x8x8xf32>
    %cst_23 = arith.constant dense<0xFF800000> : vector<3x8xf32>
    %47 = vector.multi_reduction <maximumf>, %46, %cst_23 [2] : vector<3x8x8xf32> to vector<3x8xf32>
    %48 = vector.shape_cast %47 : vector<3x8xf32> to vector<3x8x1xf32>
    %49 = vector.broadcast %48 : vector<3x8x1xf32> to vector<3x8x8xf32>
    %50 = arith.subf %46, %49 : vector<3x8x8xf32>
    %51 = math.exp %50 : vector<3x8x8xf32>
    %cst_24 = arith.constant dense<0.000000e+00> : vector<3x8xf32>
    %52 = vector.multi_reduction <add>, %51, %cst_24 [2] : vector<3x8x8xf32> to vector<3x8xf32>
    %53 = vector.shape_cast %52 : vector<3x8xf32> to vector<3x8x1xf32>
    %54 = tpu.reciprocal %53 {approx = true} : vector<3x8x1xf32> -> vector<3x8x1xf32>
    %55 = vector.broadcast %54 : vector<3x8x1xf32> to vector<3x8x8xf32>
    %56 = arith.mulf %51, %55 : vector<3x8x8xf32>
    "tpu.trace_start"() <{level = 10 : i32, message = "bqk,bkd->bqd"}> : () -> ()
    %cst_25 = arith.constant dense<0.000000e+00> : vector<3x8x16xf32>
    %57 = tpu.matmul %56, %44, %cst_25 {dimension_numbers = #tpu.dot_dimension_numbers<[2], [1], [1], [2], [0, 0, 0, 1, 1, 2], [0], [0]>} : vector<3x8x8xf32>, vector<3x8x16xf32>, vector<3x8x16xf32> -> vector<3x8x16xf32>
    "tpu.trace_stop"() : () -> ()
    %58 = vector.shape_cast %57 : vector<3x8x16xf32> to vector<24x16xf32>
    %c0_26 = arith.constant 0 : index
    %c0_27 = arith.constant 0 : index
    %c0_28 = arith.constant 0 : index
    %c0_29 = arith.constant 0 : index
    %59 = vector.load %arg7[%c0_26, %c0_27, %c0_28, %c0_29] : memref<2x2x16x32xf32, #tpu.memory_space<vmem>>, vector<1x1x16x32xf32>
    %60 = vector.shape_cast %59 : vector<1x1x16x32xf32> to vector<16x32xf32>
    %cst_30 = arith.constant dense<0.000000e+00> : vector<24x32xf32>
    %61 = tpu.matmul %58, %60, %cst_30 {dimension_numbers = #tpu.dot_dimension_numbers<[1], [0], [0], [1], [0, 0, 1, 1], [], []>} : vector<24x16xf32>, vector<16x32xf32>, vector<24x32xf32> -> vector<24x32xf32>
    %62 = arith.addf %36, %61 : vector<24x32xf32>
    %63 = vector.extract_strided_slice %35 {offsets = [0, 16], sizes = [24, 16], strides = [1, 1]} : vector<24x96xf32> to vector<24x16xf32>
    %cst_31 = arith.constant 2.500000e-01 : f32
    %64 = vector.broadcast %cst_31 : f32 to vector<24x16xf32>
    %65 = arith.mulf %63, %64 : vector<24x16xf32>
    %66 = vector.extract_strided_slice %35 {offsets = [0, 48], sizes = [24, 16], strides = [1, 1]} : vector<24x96xf32> to vector<24x16xf32>
    %67 = vector.extract_strided_slice %35 {offsets = [0, 80], sizes = [24, 16], strides = [1, 1]} : vector<24x96xf32> to vector<24x16xf32>
    %68 = vector.shape_cast %65 : vector<24x16xf32> to vector<3x8x16xf32>
    %69 = vector.shape_cast %66 : vector<24x16xf32> to vector<3x8x16xf32>
    %70 = vector.shape_cast %67 : vector<24x16xf32> to vector<3x8x16xf32>
    "tpu.trace_start"() <{level = 10 : i32, message = "bqd,bkd->bqk"}> : () -> ()
    %cst_32 = arith.constant dense<0.000000e+00> : vector<3x8x8xf32>
    %71 = tpu.matmul %68, %69, %cst_32 {dimension_numbers = #tpu.dot_dimension_numbers<[2], [2], [1], [1], [0, 0, 0, 1, 1, 1], [0], [0]>} : vector<3x8x16xf32>, vector<3x8x16xf32>, vector<3x8x8xf32> -> vector<3x8x8xf32>
    "tpu.trace_stop"() : () -> ()
    %72 = arith.addf %71, %28 : vector<3x8x8xf32>
    %cst_33 = arith.constant dense<0xFF800000> : vector<3x8xf32>
    %73 = vector.multi_reduction <maximumf>, %72, %cst_33 [2] : vector<3x8x8xf32> to vector<3x8xf32>
    %74 = vector.shape_cast %73 : vector<3x8xf32> to vector<3x8x1xf32>
    %75 = vector.broadcast %74 : vector<3x8x1xf32> to vector<3x8x8xf32>
    %76 = arith.subf %72, %75 : vector<3x8x8xf32>
    %77 = math.exp %76 : vector<3x8x8xf32>
    %cst_34 = arith.constant dense<0.000000e+00> : vector<3x8xf32>
    %78 = vector.multi_reduction <add>, %77, %cst_34 [2] : vector<3x8x8xf32> to vector<3x8xf32>
    %79 = vector.shape_cast %78 : vector<3x8xf32> to vector<3x8x1xf32>
    %80 = tpu.reciprocal %79 {approx = true} : vector<3x8x1xf32> -> vector<3x8x1xf32>
    %81 = vector.broadcast %80 : vector<3x8x1xf32> to vector<3x8x8xf32>
    %82 = arith.mulf %77, %81 : vector<3x8x8xf32>
    "tpu.trace_start"() <{level = 10 : i32, message = "bqk,bkd->bqd"}> : () -> ()
    %cst_35 = arith.constant dense<0.000000e+00> : vector<3x8x16xf32>
    %83 = tpu.matmul %82, %70, %cst_35 {dimension_numbers = #tpu.dot_dimension_numbers<[2], [1], [1], [2], [0, 0, 0, 1, 1, 2], [0], [0]>} : vector<3x8x8xf32>, vector<3x8x16xf32>, vector<3x8x16xf32> -> vector<3x8x16xf32>
    "tpu.trace_stop"() : () -> ()
    %84 = vector.shape_cast %83 : vector<3x8x16xf32> to vector<24x16xf32>
    %c0_36 = arith.constant 0 : index
    %c1 = arith.constant 1 : index
    %c0_37 = arith.constant 0 : index
    %c0_38 = arith.constant 0 : index
    %85 = vector.load %arg7[%c0_36, %c1, %c0_37, %c0_38] : memref<2x2x16x32xf32, #tpu.memory_space<vmem>>, vector<1x1x16x32xf32>
    %86 = vector.shape_cast %85 : vector<1x1x16x32xf32> to vector<16x32xf32>
    %cst_39 = arith.constant dense<0.000000e+00> : vector<24x32xf32>
    %87 = tpu.matmul %84, %86, %cst_39 {dimension_numbers = #tpu.dot_dimension_numbers<[1], [0], [0], [1], [0, 0, 1, 1], [], []>} : vector<24x16xf32>, vector<16x32xf32>, vector<24x32xf32> -> vector<24x32xf32>
    %88 = arith.addf %62, %87 : vector<24x32xf32>
    %c0_40 = arith.constant 0 : index
    %c0_41 = arith.constant 0 : index
    %c0_42 = arith.constant 0 : index
    %89 = vector.load %arg8[%c0_40, %c0_41, %c0_42] : memref<2x1x32xf32, #tpu.memory_space<vmem>>, vector<1x1x32xf32>
    %90 = vector.shape_cast %89 : vector<1x1x32xf32> to vector<1x32xf32>
    %91 = vector.broadcast %90 : vector<1x32xf32> to vector<24x32xf32>
    %92 = arith.addf %88, %91 : vector<24x32xf32>
    %93 = arith.addf %25, %92 : vector<24x32xf32>
    %c0_43 = arith.constant 0 : index
    %c0_44 = arith.constant 0 : index
    %c0_45 = arith.constant 0 : index
    %94 = vector.load %arg9[%c0_43, %c0_44, %c0_45] : memref<2x1x32xf32, #tpu.memory_space<vmem>>, vector<1x1x32xf32>
    %95 = vector.shape_cast %94 : vector<1x1x32xf32> to vector<1x32xf32>
    %c0_46 = arith.constant 0 : index
    %c0_47 = arith.constant 0 : index
    %c0_48 = arith.constant 0 : index
    %96 = vector.load %arg10[%c0_46, %c0_47, %c0_48] : memref<2x1x32xf32, #tpu.memory_space<vmem>>, vector<1x1x32xf32>
    %97 = vector.shape_cast %96 : vector<1x1x32xf32> to vector<1x32xf32>
    %cst_49 = arith.constant dense<0.000000e+00> : vector<24xf32>
    %98 = vector.multi_reduction <add>, %93, %cst_49 [1] : vector<24x32xf32> to vector<24xf32>
    %99 = vector.shape_cast %98 : vector<24xf32> to vector<24x1xf32>
    %cst_50 = arith.constant 3.200000e+01 : f32
    %100 = vector.broadcast %cst_50 : f32 to vector<24x1xf32>
    %101 = arith.divf %99, %100 : vector<24x1xf32>
    %102 = vector.broadcast %101 : vector<24x1xf32> to vector<24x32xf32>
    %103 = arith.subf %93, %102 : vector<24x32xf32>
    %104 = arith.mulf %103, %103 : vector<24x32xf32>
    %cst_51 = arith.constant dense<0.000000e+00> : vector<24xf32>
    %105 = vector.multi_reduction <add>, %104, %cst_51 [1] : vector<24x32xf32> to vector<24xf32>
    %106 = vector.shape_cast %105 : vector<24xf32> to vector<24x1xf32>
    %cst_52 = arith.constant 3.200000e+01 : f32
    %107 = vector.broadcast %cst_52 : f32 to vector<24x1xf32>
    %108 = arith.divf %106, %107 : vector<24x1xf32>
    %109 = vector.broadcast %101 : vector<24x1xf32> to vector<24x32xf32>
    %110 = arith.subf %93, %109 : vector<24x32xf32>
    %cst_53 = arith.constant 9.99999996E-13 : f32
    %111 = vector.broadcast %cst_53 : f32 to vector<24x1xf32>
    %112 = arith.addf %108, %111 : vector<24x1xf32>
    %113 = math.rsqrt %112 : vector<24x1xf32>
    %114 = vector.broadcast %113 : vector<24x1xf32> to vector<24x32xf32>
    %115 = arith.mulf %110, %114 : vector<24x32xf32>
    %116 = vector.broadcast %95 : vector<1x32xf32> to vector<24x32xf32>
    %117 = arith.mulf %115, %116 : vector<24x32xf32>
    %118 = vector.broadcast %97 : vector<1x32xf32> to vector<24x32xf32>
    %119 = arith.addf %117, %118 : vector<24x32xf32>
    %c0_54 = arith.constant 0 : index
    %c0_55 = arith.constant 0 : index
    %c0_56 = arith.constant 0 : index
    %120 = vector.load %arg11[%c0_54, %c0_55, %c0_56] : memref<2x32x64xf32, #tpu.memory_space<vmem>>, vector<1x32x64xf32>
    %121 = vector.shape_cast %120 : vector<1x32x64xf32> to vector<32x64xf32>
    %cst_57 = arith.constant dense<0.000000e+00> : vector<24x64xf32>
    %122 = tpu.matmul %119, %121, %cst_57 {dimension_numbers = #tpu.dot_dimension_numbers<[1], [0], [0], [1], [0, 0, 1, 1], [], []>} : vector<24x32xf32>, vector<32x64xf32>, vector<24x64xf32> -> vector<24x64xf32>
    %c0_58 = arith.constant 0 : index
    %c0_59 = arith.constant 0 : index
    %c0_60 = arith.constant 0 : index
    %123 = vector.load %arg12[%c0_58, %c0_59, %c0_60] : memref<2x1x64xf32, #tpu.memory_space<vmem>>, vector<1x1x64xf32>
    %124 = vector.shape_cast %123 : vector<1x1x64xf32> to vector<1x64xf32>
    %125 = vector.broadcast %124 : vector<1x64xf32> to vector<24x64xf32>
    %126 = arith.addf %122, %125 : vector<24x64xf32>
    %cst_61 = arith.constant 5.000000e-01 : f32
    %127 = vector.broadcast %cst_61 : f32 to vector<24x64xf32>
    %128 = arith.mulf %127, %126 : vector<24x64xf32>
    %cst_62 = arith.constant 4.471500e-02 : f32
    %129 = vector.broadcast %cst_62 : f32 to vector<24x64xf32>
    %130 = arith.mulf %129, %126 : vector<24x64xf32>
    %131 = arith.mulf %130, %126 : vector<24x64xf32>
    %132 = arith.mulf %131, %126 : vector<24x64xf32>
    %133 = arith.addf %126, %132 : vector<24x64xf32>
    %cst_63 = arith.constant 0.797884583 : f32
    %134 = vector.broadcast %cst_63 : f32 to vector<24x64xf32>
    %135 = arith.mulf %134, %133 : vector<24x64xf32>
    %136 = math.tanh %135 : vector<24x64xf32>
    %cst_64 = arith.constant 1.000000e+00 : f32
    %137 = vector.broadcast %cst_64 : f32 to vector<24x64xf32>
    %138 = arith.addf %137, %136 : vector<24x64xf32>
    %139 = arith.mulf %128, %138 : vector<24x64xf32>
    %c0_65 = arith.constant 0 : index
    %c0_66 = arith.constant 0 : index
    %c0_67 = arith.constant 0 : index
    %140 = vector.load %arg13[%c0_65, %c0_66, %c0_67] : memref<2x64x32xf32, #tpu.memory_space<vmem>>, vector<1x64x32xf32>
    %141 = vector.shape_cast %140 : vector<1x64x32xf32> to vector<64x32xf32>
    %cst_68 = arith.constant dense<0.000000e+00> : vector<24x32xf32>
    %142 = tpu.matmul %139, %141, %cst_68 {dimension_numbers = #tpu.dot_dimension_numbers<[1], [0], [0], [1], [0, 0, 1, 1], [], []>} : vector<24x64xf32>, vector<64x32xf32>, vector<24x32xf32> -> vector<24x32xf32>
    %c0_69 = arith.constant 0 : index
    %c0_70 = arith.constant 0 : index
    %c0_71 = arith.constant 0 : index
    %143 = vector.load %arg14[%c0_69, %c0_70, %c0_71] : memref<2x1x32xf32, #tpu.memory_space<vmem>>, vector<1x1x32xf32>
    %144 = vector.shape_cast %143 : vector<1x1x32xf32> to vector<1x32xf32>
    %145 = vector.broadcast %144 : vector<1x32xf32> to vector<24x32xf32>
    %146 = arith.addf %142, %145 : vector<24x32xf32>
    %147 = arith.addf %119, %146 : vector<24x32xf32>
    %c0_72 = arith.constant 0 : index
    %c0_73 = arith.constant 0 : index
    %c0_74 = arith.constant 0 : index
    %148 = vector.load %arg15[%c0_72, %c0_73, %c0_74] : memref<2x1x32xf32, #tpu.memory_space<vmem>>, vector<1x1x32xf32>
    %149 = vector.shape_cast %148 : vector<1x1x32xf32> to vector<1x32xf32>
    %c0_75 = arith.constant 0 : index
    %c0_76 = arith.constant 0 : index
    %c0_77 = arith.constant 0 : index
    %150 = vector.load %arg16[%c0_75, %c0_76, %c0_77] : memref<2x1x32xf32, #tpu.memory_space<vmem>>, vector<1x1x32xf32>
    %151 = vector.shape_cast %150 : vector<1x1x32xf32> to vector<1x32xf32>
    %cst_78 = arith.constant dense<0.000000e+00> : vector<24xf32>
    %152 = vector.multi_reduction <add>, %147, %cst_78 [1] : vector<24x32xf32> to vector<24xf32>
    %153 = vector.shape_cast %152 : vector<24xf32> to vector<24x1xf32>
    %cst_79 = arith.constant 3.200000e+01 : f32
    %154 = vector.broadcast %cst_79 : f32 to vector<24x1xf32>
    %155 = arith.divf %153, %154 : vector<24x1xf32>
    %156 = vector.broadcast %155 : vector<24x1xf32> to vector<24x32xf32>
    %157 = arith.subf %147, %156 : vector<24x32xf32>
    %158 = arith.mulf %157, %157 : vector<24x32xf32>
    %cst_80 = arith.constant dense<0.000000e+00> : vector<24xf32>
    %159 = vector.multi_reduction <add>, %158, %cst_80 [1] : vector<24x32xf32> to vector<24xf32>
    %160 = vector.shape_cast %159 : vector<24xf32> to vector<24x1xf32>
    %cst_81 = arith.constant 3.200000e+01 : f32
    %161 = vector.broadcast %cst_81 : f32 to vector<24x1xf32>
    %162 = arith.divf %160, %161 : vector<24x1xf32>
    %163 = vector.broadcast %155 : vector<24x1xf32> to vector<24x32xf32>
    %164 = arith.subf %147, %163 : vector<24x32xf32>
    %cst_82 = arith.constant 9.99999996E-13 : f32
    %165 = vector.broadcast %cst_82 : f32 to vector<24x1xf32>
    %166 = arith.addf %162, %165 : vector<24x1xf32>
    %167 = math.rsqrt %166 : vector<24x1xf32>
    %168 = vector.broadcast %167 : vector<24x1xf32> to vector<24x32xf32>
    %169 = arith.mulf %164, %168 : vector<24x32xf32>
    %170 = vector.broadcast %149 : vector<1x32xf32> to vector<24x32xf32>
    %171 = arith.mulf %169, %170 : vector<24x32xf32>
    %172 = vector.broadcast %151 : vector<1x32xf32> to vector<24x32xf32>
    %173 = arith.addf %171, %172 : vector<24x32xf32>
    %c1_83 = arith.constant 1 : index
    %c0_84 = arith.constant 0 : index
    %c0_85 = arith.constant 0 : index
    %174 = vector.load %arg5[%c1_83, %c0_84, %c0_85] : memref<2x32x96xf32, #tpu.memory_space<vmem>>, vector<1x32x96xf32>
    %175 = vector.shape_cast %174 : vector<1x32x96xf32> to vector<32x96xf32>
    %cst_86 = arith.constant dense<0.000000e+00> : vector<24x96xf32>
    %176 = tpu.matmul %173, %175, %cst_86 {dimension_numbers = #tpu.dot_dimension_numbers<[1], [0], [0], [1], [0, 0, 1, 1], [], []>} : vector<24x32xf32>, vector<32x96xf32>, vector<24x96xf32> -> vector<24x96xf32>
    %c1_87 = arith.constant 1 : index
    %c0_88 = arith.constant 0 : index
    %c0_89 = arith.constant 0 : index
    %177 = vector.load %arg6[%c1_87, %c0_88, %c0_89] : memref<2x1x96xf32, #tpu.memory_space<vmem>>, vector<1x1x96xf32>
    %178 = vector.shape_cast %177 : vector<1x1x96xf32> to vector<1x96xf32>
    %179 = vector.broadcast %178 : vector<1x96xf32> to vector<24x96xf32>
    %180 = arith.addf %176, %179 : vector<24x96xf32>
    %cst_90 = arith.constant 0.000000e+00 : f32
    %181 = vector.broadcast %cst_90 : f32 to vector<24x32xf32>
    %182 = vector.extract_strided_slice %180 {offsets = [0, 0], sizes = [24, 16], strides = [1, 1]} : vector<24x96xf32> to vector<24x16xf32>
    %cst_91 = arith.constant 2.500000e-01 : f32
    %183 = vector.broadcast %cst_91 : f32 to vector<24x16xf32>
    %184 = arith.mulf %182, %183 : vector<24x16xf32>
    %185 = vector.extract_strided_slice %180 {offsets = [0, 32], sizes = [24, 16], strides = [1, 1]} : vector<24x96xf32> to vector<24x16xf32>
    %186 = vector.extract_strided_slice %180 {offsets = [0, 64], sizes = [24, 16], strides = [1, 1]} : vector<24x96xf32> to vector<24x16xf32>
    %187 = vector.shape_cast %184 : vector<24x16xf32> to vector<3x8x16xf32>
    %188 = vector.shape_cast %185 : vector<24x16xf32> to vector<3x8x16xf32>
    %189 = vector.shape_cast %186 : vector<24x16xf32> to vector<3x8x16xf32>
    "tpu.trace_start"() <{level = 10 : i32, message = "bqd,bkd->bqk"}> : () -> ()
    %cst_92 = arith.constant dense<0.000000e+00> : vector<3x8x8xf32>
    %190 = tpu.matmul %187, %188, %cst_92 {dimension_numbers = #tpu.dot_dimension_numbers<[2], [2], [1], [1], [0, 0, 0, 1, 1, 1], [0], [0]>} : vector<3x8x16xf32>, vector<3x8x16xf32>, vector<3x8x8xf32> -> vector<3x8x8xf32>
    "tpu.trace_stop"() : () -> ()
    %191 = arith.addf %190, %28 : vector<3x8x8xf32>
    %cst_93 = arith.constant dense<0xFF800000> : vector<3x8xf32>
    %192 = vector.multi_reduction <maximumf>, %191, %cst_93 [2] : vector<3x8x8xf32> to vector<3x8xf32>
    %193 = vector.shape_cast %192 : vector<3x8xf32> to vector<3x8x1xf32>
    %194 = vector.broadcast %193 : vector<3x8x1xf32> to vector<3x8x8xf32>
    %195 = arith.subf %191, %194 : vector<3x8x8xf32>
    %196 = math.exp %195 : vector<3x8x8xf32>
    %cst_94 = arith.constant dense<0.000000e+00> : vector<3x8xf32>
    %197 = vector.multi_reduction <add>, %196, %cst_94 [2] : vector<3x8x8xf32> to vector<3x8xf32>
    %198 = vector.shape_cast %197 : vector<3x8xf32> to vector<3x8x1xf32>
    %199 = tpu.reciprocal %198 {approx = true} : vector<3x8x1xf32> -> vector<3x8x1xf32>
    %200 = vector.broadcast %199 : vector<3x8x1xf32> to vector<3x8x8xf32>
    %201 = arith.mulf %196, %200 : vector<3x8x8xf32>
    "tpu.trace_start"() <{level = 10 : i32, message = "bqk,bkd->bqd"}> : () -> ()
    %cst_95 = arith.constant dense<0.000000e+00> : vector<3x8x16xf32>
    %202 = tpu.matmul %201, %189, %cst_95 {dimension_numbers = #tpu.dot_dimension_numbers<[2], [1], [1], [2], [0, 0, 0, 1, 1, 2], [0], [0]>} : vector<3x8x8xf32>, vector<3x8x16xf32>, vector<3x8x16xf32> -> vector<3x8x16xf32>
    "tpu.trace_stop"() : () -> ()
    %203 = vector.shape_cast %202 : vector<3x8x16xf32> to vector<24x16xf32>
    %c1_96 = arith.constant 1 : index
    %c0_97 = arith.constant 0 : index
    %c0_98 = arith.constant 0 : index
    %c0_99 = arith.constant 0 : index
    %204 = vector.load %arg7[%c1_96, %c0_97, %c0_98, %c0_99] : memref<2x2x16x32xf32, #tpu.memory_space<vmem>>, vector<1x1x16x32xf32>
    %205 = vector.shape_cast %204 : vector<1x1x16x32xf32> to vector<16x32xf32>
    %cst_100 = arith.constant dense<0.000000e+00> : vector<24x32xf32>
    %206 = tpu.matmul %203, %205, %cst_100 {dimension_numbers = #tpu.dot_dimension_numbers<[1], [0], [0], [1], [0, 0, 1, 1], [], []>} : vector<24x16xf32>, vector<16x32xf32>, vector<24x32xf32> -> vector<24x32xf32>
    %207 = arith.addf %181, %206 : vector<24x32xf32>
    %208 = vector.extract_strided_slice %180 {offsets = [0, 16], sizes = [24, 16], strides = [1, 1]} : vector<24x96xf32> to vector<24x16xf32>
    %cst_101 = arith.constant 2.500000e-01 : f32
    %209 = vector.broadcast %cst_101 : f32 to vector<24x16xf32>
    %210 = arith.mulf %208, %209 : vector<24x16xf32>
    %211 = vector.extract_strided_slice %180 {offsets = [0, 48], sizes = [24, 16], strides = [1, 1]} : vector<24x96xf32> to vector<24x16xf32>
    %212 = vector.extract_strided_slice %180 {offsets = [0, 80], sizes = [24, 16], strides = [1, 1]} : vector<24x96xf32> to vector<24x16xf32>
    %213 = vector.shape_cast %210 : vector<24x16xf32> to vector<3x8x16xf32>
    %214 = vector.shape_cast %211 : vector<24x16xf32> to vector<3x8x16xf32>
    %215 = vector.shape_cast %212 : vector<24x16xf32> to vector<3x8x16xf32>
    "tpu.trace_start"() <{level = 10 : i32, message = "bqd,bkd->bqk"}> : () -> ()
    %cst_102 = arith.constant dense<0.000000e+00> : vector<3x8x8xf32>
    %216 = tpu.matmul %213, %214, %cst_102 {dimension_numbers = #tpu.dot_dimension_numbers<[2], [2], [1], [1], [0, 0, 0, 1, 1, 1], [0], [0]>} : vector<3x8x16xf32>, vector<3x8x16xf32>, vector<3x8x8xf32> -> vector<3x8x8xf32>
    "tpu.trace_stop"() : () -> ()
    %217 = arith.addf %216, %28 : vector<3x8x8xf32>
    %cst_103 = arith.constant dense<0xFF800000> : vector<3x8xf32>
    %218 = vector.multi_reduction <maximumf>, %217, %cst_103 [2] : vector<3x8x8xf32> to vector<3x8xf32>
    %219 = vector.shape_cast %218 : vector<3x8xf32> to vector<3x8x1xf32>
    %220 = vector.broadcast %219 : vector<3x8x1xf32> to vector<3x8x8xf32>
    %221 = arith.subf %217, %220 : vector<3x8x8xf32>
    %222 = math.exp %221 : vector<3x8x8xf32>
    %cst_104 = arith.constant dense<0.000000e+00> : vector<3x8xf32>
    %223 = vector.multi_reduction <add>, %222, %cst_104 [2] : vector<3x8x8xf32> to vector<3x8xf32>
    %224 = vector.shape_cast %223 : vector<3x8xf32> to vector<3x8x1xf32>
    %225 = tpu.reciprocal %224 {approx = true} : vector<3x8x1xf32> -> vector<3x8x1xf32>
    %226 = vector.broadcast %225 : vector<3x8x1xf32> to vector<3x8x8xf32>
    %227 = arith.mulf %222, %226 : vector<3x8x8xf32>
    "tpu.trace_start"() <{level = 10 : i32, message = "bqk,bkd->bqd"}> : () -> ()
    %cst_105 = arith.constant dense<0.000000e+00> : vector<3x8x16xf32>
    %228 = tpu.matmul %227, %215, %cst_105 {dimension_numbers = #tpu.dot_dimension_numbers<[2], [1], [1], [2], [0, 0, 0, 1, 1, 2], [0], [0]>} : vector<3x8x8xf32>, vector<3x8x16xf32>, vector<3x8x16xf32> -> vector<3x8x16xf32>
    "tpu.trace_stop"() : () -> ()
    %229 = vector.shape_cast %228 : vector<3x8x16xf32> to vector<24x16xf32>
    %c1_106 = arith.constant 1 : index
    %c1_107 = arith.constant 1 : index
    %c0_108 = arith.constant 0 : index
    %c0_109 = arith.constant 0 : index
    %230 = vector.load %arg7[%c1_106, %c1_107, %c0_108, %c0_109] : memref<2x2x16x32xf32, #tpu.memory_space<vmem>>, vector<1x1x16x32xf32>
    %231 = vector.shape_cast %230 : vector<1x1x16x32xf32> to vector<16x32xf32>
    %cst_110 = arith.constant dense<0.000000e+00> : vector<24x32xf32>
    %232 = tpu.matmul %229, %231, %cst_110 {dimension_numbers = #tpu.dot_dimension_numbers<[1], [0], [0], [1], [0, 0, 1, 1], [], []>} : vector<24x16xf32>, vector<16x32xf32>, vector<24x32xf32> -> vector<24x32xf32>
    %233 = arith.addf %207, %232 : vector<24x32xf32>
    %c1_111 = arith.constant 1 : index
    %c0_112 = arith.constant 0 : index
    %c0_113 = arith.constant 0 : index
    %234 = vector.load %arg8[%c1_111, %c0_112, %c0_113] : memref<2x1x32xf32, #tpu.memory_space<vmem>>, vector<1x1x32xf32>
    %235 = vector.shape_cast %234 : vector<1x1x32xf32> to vector<1x32xf32>
    %236 = vector.broadcast %235 : vector<1x32xf32> to vector<24x32xf32>
    %237 = arith.addf %233, %236 : vector<24x32xf32>
    %238 = arith.addf %173, %237 : vector<24x32xf32>
    %c1_114 = arith.constant 1 : index
    %c0_115 = arith.constant 0 : index
    %c0_116 = arith.constant 0 : index
    %239 = vector.load %arg9[%c1_114, %c0_115, %c0_116] : memref<2x1x32xf32, #tpu.memory_space<vmem>>, vector<1x1x32xf32>
    %240 = vector.shape_cast %239 : vector<1x1x32xf32> to vector<1x32xf32>
    %c1_117 = arith.constant 1 : index
    %c0_118 = arith.constant 0 : index
    %c0_119 = arith.constant 0 : index
    %241 = vector.load %arg10[%c1_117, %c0_118, %c0_119] : memref<2x1x32xf32, #tpu.memory_space<vmem>>, vector<1x1x32xf32>
    %242 = vector.shape_cast %241 : vector<1x1x32xf32> to vector<1x32xf32>
    %cst_120 = arith.constant dense<0.000000e+00> : vector<24xf32>
    %243 = vector.multi_reduction <add>, %238, %cst_120 [1] : vector<24x32xf32> to vector<24xf32>
    %244 = vector.shape_cast %243 : vector<24xf32> to vector<24x1xf32>
    %cst_121 = arith.constant 3.200000e+01 : f32
    %245 = vector.broadcast %cst_121 : f32 to vector<24x1xf32>
    %246 = arith.divf %244, %245 : vector<24x1xf32>
    %247 = vector.broadcast %246 : vector<24x1xf32> to vector<24x32xf32>
    %248 = arith.subf %238, %247 : vector<24x32xf32>
    %249 = arith.mulf %248, %248 : vector<24x32xf32>
    %cst_122 = arith.constant dense<0.000000e+00> : vector<24xf32>
    %250 = vector.multi_reduction <add>, %249, %cst_122 [1] : vector<24x32xf32> to vector<24xf32>
    %251 = vector.shape_cast %250 : vector<24xf32> to vector<24x1xf32>
    %cst_123 = arith.constant 3.200000e+01 : f32
    %252 = vector.broadcast %cst_123 : f32 to vector<24x1xf32>
    %253 = arith.divf %251, %252 : vector<24x1xf32>
    %254 = vector.broadcast %246 : vector<24x1xf32> to vector<24x32xf32>
    %255 = arith.subf %238, %254 : vector<24x32xf32>
    %cst_124 = arith.constant 9.99999996E-13 : f32
    %256 = vector.broadcast %cst_124 : f32 to vector<24x1xf32>
    %257 = arith.addf %253, %256 : vector<24x1xf32>
    %258 = math.rsqrt %257 : vector<24x1xf32>
    %259 = vector.broadcast %258 : vector<24x1xf32> to vector<24x32xf32>
    %260 = arith.mulf %255, %259 : vector<24x32xf32>
    %261 = vector.broadcast %240 : vector<1x32xf32> to vector<24x32xf32>
    %262 = arith.mulf %260, %261 : vector<24x32xf32>
    %263 = vector.broadcast %242 : vector<1x32xf32> to vector<24x32xf32>
    %264 = arith.addf %262, %263 : vector<24x32xf32>
    %c1_125 = arith.constant 1 : index
    %c0_126 = arith.constant 0 : index
    %c0_127 = arith.constant 0 : index
    %265 = vector.load %arg11[%c1_125, %c0_126, %c0_127] : memref<2x32x64xf32, #tpu.memory_space<vmem>>, vector<1x32x64xf32>
    %266 = vector.shape_cast %265 : vector<1x32x64xf32> to vector<32x64xf32>
    %cst_128 = arith.constant dense<0.000000e+00> : vector<24x64xf32>
    %267 = tpu.matmul %264, %266, %cst_128 {dimension_numbers = #tpu.dot_dimension_numbers<[1], [0], [0], [1], [0, 0, 1, 1], [], []>} : vector<24x32xf32>, vector<32x64xf32>, vector<24x64xf32> -> vector<24x64xf32>
    %c1_129 = arith.constant 1 : index
    %c0_130 = arith.constant 0 : index
    %c0_131 = arith.constant 0 : index
    %268 = vector.load %arg12[%c1_129, %c0_130, %c0_131] : memref<2x1x64xf32, #tpu.memory_space<vmem>>, vector<1x1x64xf32>
    %269 = vector.shape_cast %268 : vector<1x1x64xf32> to vector<1x64xf32>
    %270 = vector.broadcast %269 : vector<1x64xf32> to vector<24x64xf32>
    %271 = arith.addf %267, %270 : vector<24x64xf32>
    %cst_132 = arith.constant 5.000000e-01 : f32
    %272 = vector.broadcast %cst_132 : f32 to vector<24x64xf32>
    %273 = arith.mulf %272, %271 : vector<24x64xf32>
    %cst_133 = arith.constant 4.471500e-02 : f32
    %274 = vector.broadcast %cst_133 : f32 to vector<24x64xf32>
    %275 = arith.mulf %274, %271 : vector<24x64xf32>
    %276 = arith.mulf %275, %271 : vector<24x64xf32>
    %277 = arith.mulf %276, %271 : vector<24x64xf32>
    %278 = arith.addf %271, %277 : vector<24x64xf32>
    %cst_134 = arith.constant 0.797884583 : f32
    %279 = vector.broadcast %cst_134 : f32 to vector<24x64xf32>
    %280 = arith.mulf %279, %278 : vector<24x64xf32>
    %281 = math.tanh %280 : vector<24x64xf32>
    %cst_135 = arith.constant 1.000000e+00 : f32
    %282 = vector.broadcast %cst_135 : f32 to vector<24x64xf32>
    %283 = arith.addf %282, %281 : vector<24x64xf32>
    %284 = arith.mulf %273, %283 : vector<24x64xf32>
    %c1_136 = arith.constant 1 : index
    %c0_137 = arith.constant 0 : index
    %c0_138 = arith.constant 0 : index
    %285 = vector.load %arg13[%c1_136, %c0_137, %c0_138] : memref<2x64x32xf32, #tpu.memory_space<vmem>>, vector<1x64x32xf32>
    %286 = vector.shape_cast %285 : vector<1x64x32xf32> to vector<64x32xf32>
    %cst_139 = arith.constant dense<0.000000e+00> : vector<24x32xf32>
    %287 = tpu.matmul %284, %286, %cst_139 {dimension_numbers = #tpu.dot_dimension_numbers<[1], [0], [0], [1], [0, 0, 1, 1], [], []>} : vector<24x64xf32>, vector<64x32xf32>, vector<24x32xf32> -> vector<24x32xf32>
    %c1_140 = arith.constant 1 : index
    %c0_141 = arith.constant 0 : index
    %c0_142 = arith.constant 0 : index
    %288 = vector.load %arg14[%c1_140, %c0_141, %c0_142] : memref<2x1x32xf32, #tpu.memory_space<vmem>>, vector<1x1x32xf32>
    %289 = vector.shape_cast %288 : vector<1x1x32xf32> to vector<1x32xf32>
    %290 = vector.broadcast %289 : vector<1x32xf32> to vector<24x32xf32>
    %291 = arith.addf %287, %290 : vector<24x32xf32>
    %292 = arith.addf %264, %291 : vector<24x32xf32>
    %c1_143 = arith.constant 1 : index
    %c0_144 = arith.constant 0 : index
    %c0_145 = arith.constant 0 : index
    %293 = vector.load %arg15[%c1_143, %c0_144, %c0_145] : memref<2x1x32xf32, #tpu.memory_space<vmem>>, vector<1x1x32xf32>
    %294 = vector.shape_cast %293 : vector<1x1x32xf32> to vector<1x32xf32>
    %c1_146 = arith.constant 1 : index
    %c0_147 = arith.constant 0 : index
    %c0_148 = arith.constant 0 : index
    %295 = vector.load %arg16[%c1_146, %c0_147, %c0_148] : memref<2x1x32xf32, #tpu.memory_space<vmem>>, vector<1x1x32xf32>
    %296 = vector.shape_cast %295 : vector<1x1x32xf32> to vector<1x32xf32>
    %cst_149 = arith.constant dense<0.000000e+00> : vector<24xf32>
    %297 = vector.multi_reduction <add>, %292, %cst_149 [1] : vector<24x32xf32> to vector<24xf32>
    %298 = vector.shape_cast %297 : vector<24xf32> to vector<24x1xf32>
    %cst_150 = arith.constant 3.200000e+01 : f32
    %299 = vector.broadcast %cst_150 : f32 to vector<24x1xf32>
    %300 = arith.divf %298, %299 : vector<24x1xf32>
    %301 = vector.broadcast %300 : vector<24x1xf32> to vector<24x32xf32>
    %302 = arith.subf %292, %301 : vector<24x32xf32>
    %303 = arith.mulf %302, %302 : vector<24x32xf32>
    %cst_151 = arith.constant dense<0.000000e+00> : vector<24xf32>
    %304 = vector.multi_reduction <add>, %303, %cst_151 [1] : vector<24x32xf32> to vector<24xf32>
    %305 = vector.shape_cast %304 : vector<24xf32> to vector<24x1xf32>
    %cst_152 = arith.constant 3.200000e+01 : f32
    %306 = vector.broadcast %cst_152 : f32 to vector<24x1xf32>
    %307 = arith.divf %305, %306 : vector<24x1xf32>
    %308 = vector.broadcast %300 : vector<24x1xf32> to vector<24x32xf32>
    %309 = arith.subf %292, %308 : vector<24x32xf32>
    %cst_153 = arith.constant 9.99999996E-13 : f32
    %310 = vector.broadcast %cst_153 : f32 to vector<24x1xf32>
    %311 = arith.addf %307, %310 : vector<24x1xf32>
    %312 = math.rsqrt %311 : vector<24x1xf32>
    %313 = vector.broadcast %312 : vector<24x1xf32> to vector<24x32xf32>
    %314 = arith.mulf %309, %313 : vector<24x32xf32>
    %315 = vector.broadcast %294 : vector<1x32xf32> to vector<24x32xf32>
    %316 = arith.mulf %314, %315 : vector<24x32xf32>
    %317 = vector.broadcast %296 : vector<1x32xf32> to vector<24x32xf32>
    %318 = arith.addf %316, %317 : vector<24x32xf32>
    %319 = vector.shape_cast %318 : vector<24x32xf32> to vector<3x8x32xf32>
    %320 = vector.extract_strided_slice %319 {offsets = [0, 0, 0], sizes = [3, 1, 32], strides = [1, 1, 1]} : vector<3x8x32xf32> to vector<3x1x32xf32>
    %321 = vector.shape_cast %320 : vector<3x1x32xf32> to vector<3x32xf32>
    %c0_154 = arith.constant 0 : index
    %c0_155 = arith.constant 0 : index
    %c0_156 = arith.constant 0 : index
    %322 = vector.load %arg17[%c0_154, %c0_155, %c0_156] : memref<1x3x32xf32, #tpu.memory_space<vmem>>, vector<1x3x32xf32>
    %323 = vector.shape_cast %322 : vector<1x3x32xf32> to vector<3x32xf32>
    %324 = vector.shape_cast %321 : vector<3x32xf32> to vector<1x3x32xf32>
    tpu.vector_store %arg17[%c0_154, %c0_155, %c0_156], %324 {strides = array<i32>} : memref<1x3x32xf32, #tpu.memory_space<vmem>>, vector<1x3x32xf32>,
    return
  }
  func.func @transform_0(%arg0: i32) -> (i32, i32, i32) {
    %c0_i32 = arith.constant 0 : i32
    %c0_i32_0 = arith.constant 0 : i32
    %c0_i32_1 = arith.constant 0 : i32
    return %arg0, %c0_i32, %c0_i32_0 : i32, i32, i32
  }
  func.func @transform_1(%arg0: i32) -> (i32, i32, i32) {
    %c0_i32 = arith.constant 0 : i32
    %c0_i32_0 = arith.constant 0 : i32
    %c0_i32_1 = arith.constant 0 : i32
    return %arg0, %c0_i32, %c0_i32_0 : i32, i32, i32
  }
  func.func @transform_2(%arg0: i32) -> (i32, i32) {
    %c0_i32 = arith.constant 0 : i32
    %c0_i32_0 = arith.constant 0 : i32
    %c0_i32_1 = arith.constant 0 : i32
    return %c0_i32, %c0_i32_0 : i32, i32
  }
  func.func @transform_3(%arg0: i32) -> (i32, i32) {
    %c0_i32 = arith.constant 0 : i32
    %c0_i32_0 = arith.constant 0 : i32
    %c0_i32_1 = arith.constant 0 : i32
    return %c0_i32, %c0_i32_0 : i32, i32
  }
  func.func @transform_4(%arg0: i32) -> (i32, i32, i32) {
    %c0_i32 = arith.constant 0 : i32
    %c0_i32_0 = arith.constant 0 : i32
    %c0_i32_1 = arith.constant 0 : i32
    %c0_i32_2 = arith.constant 0 : i32
    return %c0_i32, %c0_i32_0, %c0_i32_1 : i32, i32, i32
  }
  func.func @transform_5(%arg0: i32) -> (i32, i32, i32) {
    %c0_i32 = arith.constant 0 : i32
    %c0_i32_0 = arith.constant 0 : i32
    %c0_i32_1 = arith.constant 0 : i32
    %c0_i32_2 = arith.constant 0 : i32
    return %c0_i32, %c0_i32_0, %c0_i32_1 : i32, i32, i32
  }
  func.func @transform_6(%arg0: i32) -> (i32, i32, i32, i32) {
    %c0_i32 = arith.constant 0 : i32
    %c0_i32_0 = arith.constant 0 : i32
    %c0_i32_1 = arith.constant 0 : i32
    %c0_i32_2 = arith.constant 0 : i32
    %c0_i32_3 = arith.constant 0 : i32
    return %c0_i32, %c0_i32_0, %c0_i32_1, %c0_i32_2 : i32, i32, i32, i32
  }
  func.func @transform_7(%arg0: i32) -> (i32, i32, i32) {
    %c0_i32 = arith.constant 0 : i32
    %c0_i32_0 = arith.constant 0 : i32
    %c0_i32_1 = arith.constant 0 : i32
    %c0_i32_2 = arith.constant 0 : i32
    return %c0_i32, %c0_i32_0, %c0_i32_1 : i32, i32, i32
  }
  func.func @transform_8(%arg0: i32) -> (i32, i32, i32) {
    %c0_i32 = arith.constant 0 : i32
    %c0_i32_0 = arith.constant 0 : i32
    %c0_i32_1 = arith.constant 0 : i32
    %c0_i32_2 = arith.constant 0 : i32
    return %c0_i32, %c0_i32_0, %c0_i32_1 : i32, i32, i32
  }
  func.func @transform_9(%arg0: i32) -> (i32, i32, i32) {
    %c0_i32 = arith.constant 0 : i32
    %c0_i32_0 = arith.constant 0 : i32
    %c0_i32_1 = arith.constant 0 : i32
    %c0_i32_2 = arith.constant 0 : i32
    return %c0_i32, %c0_i32_0, %c0_i32_1 : i32, i32, i32
  }
  func.func @transform_10(%arg0: i32) -> (i32, i32, i32) {
    %c0_i32 = arith.constant 0 : i32
    %c0_i32_0 = arith.constant 0 : i32
    %c0_i32_1 = arith.constant 0 : i32
    %c0_i32_2 = arith.constant 0 : i32
    return %c0_i32, %c0_i32_0, %c0_i32_1 : i32, i32, i32
  }
  func.func @transform_11(%arg0: i32) -> (i32, i32, i32) {
    %c0_i32 = arith.constant 0 : i32
    %c0_i32_0 = arith.constant 0 : i32
    %c0_i32_1 = arith.constant 0 : i32
    %c0_i32_2 = arith.constant 0 : i32
    return %c0_i32, %c0_i32_0, %c0_i32_1 : i32, i32, i32
  }
  func.func @transform_12(%arg0: i32) -> (i32, i32, i32) {
    %c0_i32 = arith.constant 0 : i32
    %c0_i32_0 = arith.constant 0 : i32
    %c0_i32_1 = arith.constant 0 : i32
    %c0_i32_2 = arith.constant 0 : i32
    return %c0_i32, %c0_i32_0, %c0_i32_1 : i32, i32, i32
  }
  func.func @transform_13(%arg0: i32) -> (i32, i32, i32) {
    %c0_i32 = arith.constant 0 : i32
    %c0_i32_0 = arith.constant 0 : i32
    %c0_i32_1 = arith.constant 0 : i32
    %c0_i32_2 = arith.constant 0 : i32
    return %c0_i32, %c0_i32_0, %c0_i32_1 : i32, i32, i32
  }
  func.func @transform_14(%arg0: i32) -> (i32, i32, i32) {
    %c0_i32 = arith.constant 0 : i32
    %c0_i32_0 = arith.constant 0 : i32
    %c0_i32_1 = arith.constant 0 : i32
    %c0_i32_2 = arith.constant 0 : i32
    return %c0_i32, %c0_i32_0, %c0_i32_1 : i32, i32, i32
  }
  func.func @transform_15(%arg0: i32) -> (i32, i32, i32) {
    %c0_i32 = arith.constant 0 : i32
    %c0_i32_0 = arith.constant 0 : i32
    %c0_i32_1 = arith.constant 0 : i32
    %c0_i32_2 = arith.constant 0 : i32
    return %c0_i32, %c0_i32_0, %c0_i32_1 : i32, i32, i32
  }
  func.func @transform_16(%arg0: i32) -> (i32, i32, i32) {
    %c0_i32 = arith.constant 0 : i32
    %c0_i32_0 = arith.constant 0 : i32
    %c0_i32_1 = arith.constant 0 : i32
    return %arg0, %c0_i32, %c0_i32_0 : i32, i32, i32
  }
}

</mosaic_0001>

<llo_original>
// kernel: bert_for_representation.1
$region0: #{bert_for_representation.1}
  #allocation0 [shape = 'u32[]', space=smem, size = 0x4, offset = 0x4, fixed_abs, tag = 'smem constant byte address 0x4 - core index']
  #allocation1 [shape = 'u32[144,128]{1,0:T(1,128)}', space=vmem, size = 0x12000, scoped, tag = 'internal scratch']
  %s0 = inlined_call_operand.vmem [shape: f32[6,8,32], index: 0, kind: input, shape index: {}]
  %s1 = inlined_call_operand.vmem [shape: f32[6,1,8], index: 1, kind: input, shape index: {}]
  %s2 = inlined_call_operand.vmem [shape: f32[1,32], index: 2, kind: input, shape index: {}]
  %s3 = inlined_call_operand.vmem [shape: f32[1,32], index: 3, kind: input, shape index: {}]
  %s4 = inlined_call_operand.vmem [shape: f32[2,32,96], index: 4, kind: input, shape index: {}]
  %s5 = inlined_call_operand.vmem [shape: f32[2,1,96], index: 5, kind: input, shape index: {}]
  %s6 = inlined_call_operand.vmem [shape: f32[2,2,16,32], index: 6, kind: input, shape index: {}]
  %s7 = inlined_call_operand.vmem [shape: f32[2,1,32], index: 7, kind: input, shape index: {}]
  %s8 = inlined_call_operand.vmem [shape: f32[2,1,32], index: 8, kind: input, shape index: {}]
  %s9 = inlined_call_operand.vmem [shape: f32[2,1,32], index: 9, kind: input, shape index: {}]
  %s10 = inlined_call_operand.vmem [shape: f32[2,32,64], index: 10, kind: input, shape index: {}]
  %s11 = inlined_call_operand.vmem [shape: f32[2,1,64], index: 11, kind: input, shape index: {}]
  %s12 = inlined_call_operand.vmem [shape: f32[2,64,32], index: 12, kind: input, shape index: {}]
  %s13 = inlined_call_operand.vmem [shape: f32[2,1,32], index: 13, kind: input, shape index: {}]
  %s14 = inlined_call_operand.vmem [shape: f32[2,1,32], index: 14, kind: input, shape index: {}]
  %s15 = inlined_call_operand.vmem [shape: f32[2,1,32], index: 15, kind: input, shape index: {}]
  %s16 = inlined_call_operand.vmem [shape: f32[2,3,32], index: 16, kind: output, shape index: {}]
  %s17 = sld [smem:[#allocation0]]
  $region97: #{bert_for_representation.1} parent=0
    _
  %s19 = ssub.s32 1, %s17
  %s20 = scalar_select 0, %s19, %s17
  loop: start=0, step=1, limit=4
  $region2: #{bert_for_representation.1} parent=0 // loop_pre_header
    _
  $region3: #{bert_for_representation.1} parent=0 // loop_header
    %s22 = sphi 0, %s26
    %p23 = scmp.ge.s32.totalorder %s22, 4
    %s32 = sphi 0, %s34
    %s35 = sphi 0, %s32
    %s36 = sphi 0, %s35
    %s52 = sphi 0, %s36
    %s58 = sphi 0, %s60
    %s61 = sphi 0, %s58
    %s62 = sphi 0, %s61
    %s78 = sphi 0, %s62
    %s82 = sphi 0, %s82
    %s84 = sphi 0, %s82
    %s85 = sphi 0, %s84
    %s99 = sphi 0, %s85
    %s103 = sphi 0, %s103
    %s105 = sphi 0, %s103
    %s106 = sphi 0, %s105
    %s120 = sphi 0, %s106
    %s124 = sphi 0, %s124
    %s126 = sphi 0, %s124
    %s127 = sphi 0, %s126
    %s141 = sphi 0, %s127
    %s145 = sphi 0, %s145
    %s147 = sphi 0, %s145
    %s148 = sphi 0, %s147
    %s162 = sphi 0, %s148
    %s166 = sphi 0, %s166
    %s168 = sphi 0, %s166
    %s169 = sphi 0, %s168
    %s183 = sphi 0, %s169
    %s187 = sphi 0, %s187
    %s189 = sphi 0, %s187
    %s190 = sphi 0, %s189
    %s204 = sphi 0, %s190
    %s208 = sphi 0, %s208
    %s210 = sphi 0, %s208
    %s211 = sphi 0, %s210
    %s225 = sphi 0, %s211
    %s229 = sphi 0, %s229
    %s231 = sphi 0, %s229
    %s232 = sphi 0, %s231
    %s246 = sphi 0, %s232
    %s250 = sphi 0, %s250
    %s252 = sphi 0, %s250
    %s253 = sphi 0, %s252
    %s267 = sphi 0, %s253
    %s271 = sphi 0, %s271
    %s273 = sphi 0, %s271
    %s274 = sphi 0, %s273
    %s288 = sphi 0, %s274
    %s292 = sphi 0, %s292
    %s294 = sphi 0, %s292
    %s295 = sphi 0, %s294
    %s309 = sphi 0, %s295
    %s313 = sphi 0, %s313
    %s315 = sphi 0, %s313
    %s316 = sphi 0, %s315
    %s330 = sphi 0, %s316
    %s334 = sphi 0, %s334
    %s336 = sphi 0, %s334
    %s337 = sphi 0, %s336
    %s351 = sphi 0, %s337
    %s355 = sphi 0, %s355
    %s357 = sphi 0, %s355
    %s358 = sphi 0, %s357
    %s372 = sphi 0, %s358
    %s378 = sphi 0, %s380
    %s381 = sphi 0, %s378
    %s382 = sphi 0, %s381
    %s398 = sphi 0, %s382
  $region4: #{bert_for_representation.1} parent=0 // loop_header_branch
    %25 = sbr.rel (%p23) target = $region8
  $region5: #{bert_for_representation.1} parent=0 // loop_body
    %s27 = ssub.s32 %s22, 1
    %s28 = ssub.s32 %s22, 2
    %s29 = sadd.s32 %s22, 1
    %s30 = ssub.s32 %s22, %s29
    %p31 = scmp.eq.s32.totalorder %s30, 0
    %s33 = sadd.s32 %s32, 1
    %s34 = scalar_select %p31, %s32, %s33
    %p37 = pneg %p31
    %p38 = scmp.eq.s32.totalorder %s22, 1
    %p39 = por %p37, %p38
    %p40 = scmp.ne.s32.totalorder %s32, %s35
    %p41 = scmp.eq.s32.totalorder %s22, 0
    %p42 = por %p40, %p41
    %p43 = scmp.ne.s32.totalorder %s32, %s35
    %p44 = scmp.eq.s32.totalorder %s27, 1
    %p45 = por %p43, %p44
    %p46 = scmp.ne.s32.totalorder %s35, %s36
    %p47 = scmp.eq.s32.totalorder %s27, 0
    %p48 = por %p46, %p47
    %p49 = scmp.ne.s32.totalorder %s35, %s36
    %p50 = scmp.eq.s32.totalorder %s28, 1
    %p51 = por %p49, %p50
    %p53 = scmp.ne.s32.totalorder %s36, %s52
    %p54 = scmp.eq.s32.totalorder %s28, 0
    %p55 = por %p53, %p54
    %s56 = ssub.s32 %s22, %s29
    %p57 = scmp.eq.s32.totalorder %s56, 0
    %s59 = sadd.s32 %s58, 1
    %s60 = scalar_select %p57, %s58, %s59
    %p63 = pneg %p57
    %p64 = scmp.eq.s32.totalorder %s22, 1
    %p65 = por %p63, %p64
    %p66 = scmp.ne.s32.totalorder %s58, %s61
    %p67 = scmp.eq.s32.totalorder %s22, 0
    %p68 = por %p66, %p67
    %p69 = scmp.ne.s32.totalorder %s58, %s61
    %p70 = scmp.eq.s32.totalorder %s27, 1
    %p71 = por %p69, %p70
    %p72 = scmp.ne.s32.totalorder %s61, %s62
    %p73 = scmp.eq.s32.totalorder %s27, 0
    %p74 = por %p72, %p73
    %p75 = scmp.ne.s32.totalorder %s61, %s62
    %p76 = scmp.eq.s32.totalorder %s28, 1
    %p77 = por %p75, %p76
    %p79 = scmp.ne.s32.totalorder %s62, %s78
    %p80 = scmp.eq.s32.totalorder %s28, 0
    %p81 = por %p79, %p80
    %s83 = sadd.s32 %s82, 1
    %p86 = scmp.eq.s32.totalorder %s22, 1
    %p87 = scmp.ne.s32.totalorder %s82, %s84
    %p88 = scmp.eq.s32.totalorder %s22, 0
    %p89 = por %p87, %p88
    %p90 = scmp.ne.s32.totalorder %s82, %s84
    %p91 = scmp.eq.s32.totalorder %s27, 1
    %p92 = por %p90, %p91
    %p93 = scmp.ne.s32.totalorder %s84, %s85
    %p94 = scmp.eq.s32.totalorder %s27, 0
    %p95 = por %p93, %p94
    %p96 = scmp.ne.s32.totalorder %s84, %s85
    %p97 = scmp.eq.s32.totalorder %s28, 1
    %p98 = por %p96, %p97
    %p100 = scmp.ne.s32.totalorder %s85, %s99
    %p101 = scmp.eq.s32.totalorder %s28, 0
    %p102 = por %p100, %p101
    %s104 = sadd.s32 %s103, 1
    %p107 = scmp.eq.s32.totalorder %s22, 1
    %p108 = scmp.ne.s32.totalorder %s103, %s105
    %p109 = scmp.eq.s32.totalorder %s22, 0
    %p110 = por %p108, %p109
    %p111 = scmp.ne.s32.totalorder %s103, %s105
    %p112 = scmp.eq.s32.totalorder %s27, 1
    %p113 = por %p111, %p112
    %p114 = scmp.ne.s32.totalorder %s105, %s106
    %p115 = scmp.eq.s32.totalorder %s27, 0
    %p116 = por %p114, %p115
    %p117 = scmp.ne.s32.totalorder %s105, %s106
    %p118 = scmp.eq.s32.totalorder %s28, 1
    %p119 = por %p117, %p118
    %p121 = scmp.ne.s32.totalorder %s106, %s120
    %p122 = scmp.eq.s32.totalorder %s28, 0
    %p123 = por %p121, %p122
    %s125 = sadd.s32 %s124, 1
    %p128 = scmp.eq.s32.totalorder %s22, 1
    %p129 = scmp.ne.s32.totalorder %s124, %s126
    %p130 = scmp.eq.s32.totalorder %s22, 0
    %p131 = por %p129, %p130
    %p132 = scmp.ne.s32.totalorder %s124, %s126
    %p133 = scmp.eq.s32.totalorder %s27, 1
    %p134 = por %p132, %p133
    %p135 = scmp.ne.s32.totalorder %s126, %s127
    %p136 = scmp.eq.s32.totalorder %s27, 0
    %p137 = por %p135, %p136
    %p138 = scmp.ne.s32.totalorder %s126, %s127
    %p139 = scmp.eq.s32.totalorder %s28, 1
    %p140 = por %p138, %p139
    %p142 = scmp.ne.s32.totalorder %s127, %s141
    %p143 = scmp.eq.s32.totalorder %s28, 0
    %p144 = por %p142, %p143
    %s146 = sadd.s32 %s145, 1
    %p149 = scmp.eq.s32.totalorder %s22, 1
    %p150 = scmp.ne.s32.totalorder %s145, %s147
    %p151 = scmp.eq.s32.totalorder %s22, 0
    %p152 = por %p150, %p151
    %p153 = scmp.ne.s32.totalorder %s145, %s147
    %p154 = scmp.eq.s32.totalorder %s27, 1
    %p155 = por %p153, %p154
    %p156 = scmp.ne.s32.totalorder %s147, %s148
    %p157 = scmp.eq.s32.totalorder %s27, 0
    %p158 = por %p156, %p157
    %p159 = scmp.ne.s32.totalorder %s147, %s148
    %p160 = scmp.eq.s32.totalorder %s28, 1
    %p161 = por %p159, %p160
    %p163 = scmp.ne.s32.totalorder %s148, %s162
    %p164 = scmp.eq.s32.totalorder %s28, 0
    %p165 = por %p163, %p164
    %s167 = sadd.s32 %s166, 1
    %p170 = scmp.eq.s32.totalorder %s22, 1
    %p171 = scmp.ne.s32.totalorder %s166, %s168
    %p172 = scmp.eq.s32.totalorder %s22, 0
    %p173 = por %p171, %p172
    %p174 = scmp.ne.s32.totalorder %s166, %s168
    %p175 = scmp.eq.s32.totalorder %s27, 1
    %p176 = por %p174, %p175
    %p177 = scmp.ne.s32.totalorder %s168, %s169
    %p178 = scmp.eq.s32.totalorder %s27, 0
    %p179 = por %p177, %p178
    %p180 = scmp.ne.s32.totalorder %s168, %s169
    %p181 = scmp.eq.s32.totalorder %s28, 1
    %p182 = por %p180, %p181
    %p184 = scmp.ne.s32.totalorder %s169, %s183
    %p185 = scmp.eq.s32.totalorder %s28, 0
    %p186 = por %p184, %p185
    %s188 = sadd.s32 %s187, 1
    %p191 = scmp.eq.s32.totalorder %s22, 1
    %p192 = scmp.ne.s32.totalorder %s187, %s189
    %p193 = scmp.eq.s32.totalorder %s22, 0
    %p194 = por %p192, %p193
    %p195 = scmp.ne.s32.totalorder %s187, %s189
    %p196 = scmp.eq.s32.totalorder %s27, 1
    %p197 = por %p195, %p196
    %p198 = scmp.ne.s32.totalorder %s189, %s190
    %p199 = scmp.eq.s32.totalorder %s27, 0
    %p200 = por %p198, %p199
    %p201 = scmp.ne.s32.totalorder %s189, %s190
    %p202 = scmp.eq.s32.totalorder %s28, 1
    %p203 = por %p201, %p202
    %p205 = scmp.ne.s32.totalorder %s190, %s204
    %p206 = scmp.eq.s32.totalorder %s28, 0
    %p207 = por %p205, %p206
    %s209 = sadd.s32 %s208, 1
    %p212 = scmp.eq.s32.totalorder %s22, 1
    %p213 = scmp.ne.s32.totalorder %s208, %s210
    %p214 = scmp.eq.s32.totalorder %s22, 0
    %p215 = por %p213, %p214
    %p216 = scmp.ne.s32.totalorder %s208, %s210
    %p217 = scmp.eq.s32.totalorder %s27, 1
    %p218 = por %p216, %p217
    %p219 = scmp.ne.s32.totalorder %s210, %s211
    %p220 = scmp.eq.s32.totalorder %s27, 0
    %p221 = por %p219, %p220
    %p222 = scmp.ne.s32.totalorder %s210, %s211
    %p223 = scmp.eq.s32.totalorder %s28, 1
    %p224 = por %p222, %p223
    %p226 = scmp.ne.s32.totalorder %s211, %s225
    %p227 = scmp.eq.s32.totalorder %s28, 0
    %p228 = por %p226, %p227
    %s230 = sadd.s32 %s229, 1
    %p233 = scmp.eq.s32.totalorder %s22, 1
    %p234 = scmp.ne.s32.totalorder %s229, %s231
    %p235 = scmp.eq.s32.totalorder %s22, 0
    %p236 = por %p234, %p235
    %p237 = scmp.ne.s32.totalorder %s229, %s231
    %p238 = scmp.eq.s32.totalorder %s27, 1
    %p239 = por %p237, %p238
    %p240 = scmp.ne.s32.totalorder %s231, %s232
    %p241 = scmp.eq.s32.totalorder %s27, 0
    %p242 = por %p240, %p241
    %p243 = scmp.ne.s32.totalorder %s231, %s232
    %p244 = scmp.eq.s32.totalorder %s28, 1
    %p245 = por %p243, %p244
    %p247 = scmp.ne.s32.totalorder %s232, %s246
    %p248 = scmp.eq.s32.totalorder %s28, 0
    %p249 = por %p247, %p248
    %s251 = sadd.s32 %s250, 1
    %p254 = scmp.eq.s32.totalorder %s22, 1
    %p255 = scmp.ne.s32.totalorder %s250, %s252
    %p256 = scmp.eq.s32.totalorder %s22, 0
    %p257 = por %p255, %p256
    %p258 = scmp.ne.s32.totalorder %s250, %s252
    %p259 = scmp.eq.s32.totalorder %s27, 1
    %p260 = por %p258, %p259
    %p261 = scmp.ne.s32.totalorder %s252, %s253
    %p262 = scmp.eq.s32.totalorder %s27, 0
    %p263 = por %p261, %p262
    %p264 = scmp.ne.s32.totalorder %s252, %s253
    %p265 = scmp.eq.s32.totalorder %s28, 1
    %p266 = por %p264, %p265
    %p268 = scmp.ne.s32.totalorder %s253, %s267
    %p269 = scmp.eq.s32.totalorder %s28, 0
    %p270 = por %p268, %p269
    %s272 = sadd.s32 %s271, 1
    %p275 = scmp.eq.s32.totalorder %s22, 1
    %p276 = scmp.ne.s32.totalorder %s271, %s273
    %p277 = scmp.eq.s32.totalorder %s22, 0
    %p278 = por %p276, %p277
    %p279 = scmp.ne.s32.totalorder %s271, %s273
    %p280 = scmp.eq.s32.totalorder %s27, 1
    %p281 = por %p279, %p280
    %p282 = scmp.ne.s32.totalorder %s273, %s274
    %p283 = scmp.eq.s32.totalorder %s27, 0
    %p284 = por %p282, %p283
    %p285 = scmp.ne.s32.totalorder %s273, %s274
    %p286 = scmp.eq.s32.totalorder %s28, 1
    %p287 = por %p285, %p286
    %p289 = scmp.ne.s32.totalorder %s274, %s288
    %p290 = scmp.eq.s32.totalorder %s28, 0
    %p291 = por %p289, %p290
    %s293 = sadd.s32 %s292, 1
    %p296 = scmp.eq.s32.totalorder %s22, 1
    %p297 = scmp.ne.s32.totalorder %s292, %s294
    %p298 = scmp.eq.s32.totalorder %s22, 0
    %p299 = por %p297, %p298
    %p300 = scmp.ne.s32.totalorder %s292, %s294
    %p301 = scmp.eq.s32.totalorder %s27, 1
    %p302 = por %p300, %p301
    %p303 = scmp.ne.s32.totalorder %s294, %s295
    %p304 = scmp.eq.s32.totalorder %s27, 0
    %p305 = por %p303, %p304
    %p306 = scmp.ne.s32.totalorder %s294, %s295
    %p307 = scmp.eq.s32.totalorder %s28, 1
    %p308 = por %p306, %p307
    %p310 = scmp.ne.s32.totalorder %s295, %s309
    %p311 = scmp.eq.s32.totalorder %s28, 0
    %p312 = por %p310, %p311
    %s314 = sadd.s32 %s313, 1
    %p317 = scmp.eq.s32.totalorder %s22, 1
    %p318 = scmp.ne.s32.totalorder %s313, %s315
    %p319 = scmp.eq.s32.totalorder %s22, 0
    %p320 = por %p318, %p319
    %p321 = scmp.ne.s32.totalorder %s313, %s315
    %p322 = scmp.eq.s32.totalorder %s27, 1
    %p323 = por %p321, %p322
    %p324 = scmp.ne.s32.totalorder %s315, %s316
    %p325 = scmp.eq.s32.totalorder %s27, 0
    %p326 = por %p324, %p325
    %p327 = scmp.ne.s32.totalorder %s315, %s316
    %p328 = scmp.eq.s32.totalorder %s28, 1
    %p329 = por %p327, %p328
    %p331 = scmp.ne.s32.totalorder %s316, %s330
    %p332 = scmp.eq.s32.totalorder %s28, 0
    %p333 = por %p331, %p332
    %s335 = sadd.s32 %s334, 1
    %p338 = scmp.eq.s32.totalorder %s22, 1
    %p339 = scmp.ne.s32.totalorder %s334, %s336
    %p340 = scmp.eq.s32.totalorder %s22, 0
    %p341 = por %p339, %p340
    %p342 = scmp.ne.s32.totalorder %s334, %s336
    %p343 = scmp.eq.s32.totalorder %s27, 1
    %p344 = por %p342, %p343
    %p345 = scmp.ne.s32.totalorder %s336, %s337
    %p346 = scmp.eq.s32.totalorder %s27, 0
    %p347 = por %p345, %p346
    %p348 = scmp.ne.s32.totalorder %s336, %s337
    %p349 = scmp.eq.s32.totalorder %s28, 1
    %p350 = por %p348, %p349
    %p352 = scmp.ne.s32.totalorder %s337, %s351
    %p353 = scmp.eq.s32.totalorder %s28, 0
    %p354 = por %p352, %p353
    %s356 = sadd.s32 %s355, 1
    %p359 = scmp.eq.s32.totalorder %s22, 1
    %p360 = scmp.ne.s32.totalorder %s355, %s357
    %p361 = scmp.eq.s32.totalorder %s22, 0
    %p362 = por %p360, %p361
    %p363 = scmp.ne.s32.totalorder %s355, %s357
    %p364 = scmp.eq.s32.totalorder %s27, 1
    %p365 = por %p363, %p364
    %p366 = scmp.ne.s32.totalorder %s357, %s358
    %p367 = scmp.eq.s32.totalorder %s27, 0
    %p368 = por %p366, %p367
    %p369 = scmp.ne.s32.totalorder %s357, %s358
    %p370 = scmp.eq.s32.totalorder %s28, 1
    %p371 = por %p369, %p370
    %p373 = scmp.ne.s32.totalorder %s358, %s372
    %p374 = scmp.eq.s32.totalorder %s28, 0
    %p375 = por %p373, %p374
    %s376 = ssub.s32 %s22, %s29
    %p377 = scmp.eq.s32.totalorder %s376, 0
    %s379 = sadd.s32 %s378, 1
    %s380 = scalar_select %p377, %s378, %s379
    %p383 = pneg %p377
    %p384 = scmp.eq.s32.totalorder %s22, 1
    %p385 = por %p383, %p384
    %p386 = scmp.ne.s32.totalorder %s378, %s381
    %p387 = scmp.eq.s32.totalorder %s22, 0
    %p388 = por %p386, %p387
    %p389 = scmp.ne.s32.totalorder %s378, %s381
    %p390 = scmp.eq.s32.totalorder %s27, 1
    %p391 = por %p389, %p390
    %p392 = scmp.ne.s32.totalorder %s381, %s382
    %p393 = scmp.eq.s32.totalorder %s27, 0
    %p394 = por %p392, %p393
    %p395 = scmp.ne.s32.totalorder %s381, %s382
    %p396 = scmp.eq.s32.totalorder %s28, 1
    %p397 = por %p395, %p396
    %p399 = scmp.ne.s32.totalorder %s382, %s398
    %p400 = scmp.eq.s32.totalorder %s28, 0
    %p401 = por %p399, %p400
    %p402 = scmp.le.s32.totalorder 1, %s22
    %p403 = scmp.lt.s32.totalorder %s22, 3
    %p404 = pnand %p402, %p403
    %p405 = pneg %p404
    // Predicated region
    $region9: #{bert_for_representation.1} parent=5 // pred_check
      _
    $region10: #{bert_for_representation.1} parent=5 // pred_check_branch
      %407 = sbr.rel (%p404) target = $region12
    $region11: #{bert_for_representation.1} parent=5 // pred_region
      %s408 = ssub.s32 %s22, 1
      // Predicated region
      $region13: #{bert_for_representation.1} parent=11 // pred_check
        %p409 = pneg %p95
      $region14: #{bert_for_representation.1} parent=11 // pred_check_branch
        %411 = sbr.rel (%p409) target = $region16
      $region15: #{bert_for_representation.1} parent=11 // pred_region
        _
      $region16: #{bert_for_representation.1} parent=11 // pred_fallthru
        _
      // Predicated region
      $region17: #{bert_for_representation.1} parent=11 // pred_check
        %p412 = pneg %p116
      $region18: #{bert_for_representation.1} parent=11 // pred_check_branch
        %414 = sbr.rel (%p412) target = $region20
      $region19: #{bert_for_representation.1} parent=11 // pred_region
        _
      $region20: #{bert_for_representation.1} parent=11 // pred_fallthru
        _
      // Predicated region
      $region21: #{bert_for_representation.1} parent=11 // pred_check
        %p415 = pneg %p137
      $region22: #{bert_for_representation.1} parent=11 // pred_check_branch
        %417 = sbr.rel (%p415) target = $region24
      $region23: #{bert_for_representation.1} parent=11 // pred_region
        _
      $region24: #{bert_for_representation.1} parent=11 // pred_fallthru
        _
      // Predicated region
      $region25: #{bert_for_representation.1} parent=11 // pred_check
        %p418 = pneg %p158
      $region26: #{bert_for_representation.1} parent=11 // pred_check_branch
        %420 = sbr.rel (%p418) target = $region28
      $region27: #{bert_for_representation.1} parent=11 // pred_region
        _
      $region28: #{bert_for_representation.1} parent=11 // pred_fallthru
        _
      // Predicated region
      $region29: #{bert_for_representation.1} parent=11 // pred_check
        %p421 = pneg %p179
      $region30: #{bert_for_representation.1} parent=11 // pred_check_branch
        %423 = sbr.rel (%p421) target = $region32
      $region31: #{bert_for_representation.1} parent=11 // pred_region
        _
      $region32: #{bert_for_representation.1} parent=11 // pred_fallthru
        _
      // Predicated region
      $region33: #{bert_for_representation.1} parent=11 // pred_check
        %p424 = pneg %p200
      $region34: #{bert_for_representation.1} parent=11 // pred_check_branch
        %426 = sbr.rel (%p424) target = $region36
      $region35: #{bert_for_representation.1} parent=11 // pred_region
        _
      $region36: #{bert_for_representation.1} parent=11 // pred_fallthru
        _
      // Predicated region
      $region37: #{bert_for_representation.1} parent=11 // pred_check
        %p427 = pneg %p221
      $region38: #{bert_for_representation.1} parent=11 // pred_check_branch
        %429 = sbr.rel (%p427) target = $region40
      $region39: #{bert_for_representation.1} parent=11 // pred_region
        _
      $region40: #{bert_for_representation.1} parent=11 // pred_fallthru
        _
      // Predicated region
      $region41: #{bert_for_representation.1} parent=11 // pred_check
        %p430 = pneg %p242
      $region42: #{bert_for_representation.1} parent=11 // pred_check_branch
        %432 = sbr.rel (%p430) target = $region44
      $region43: #{bert_for_representation.1} parent=11 // pred_region
        _
      $region44: #{bert_for_representation.1} parent=11 // pred_fallthru
        _
      // Predicated region
      $region45: #{bert_for_representation.1} parent=11 // pred_check
        %p433 = pneg %p263
      $region46: #{bert_for_representation.1} parent=11 // pred_check_branch
        %435 = sbr.rel (%p433) target = $region48
      $region47: #{bert_for_representation.1} parent=11 // pred_region
        _
      $region48: #{bert_for_representation.1} parent=11 // pred_fallthru
        _
      // Predicated region
      $region49: #{bert_for_representation.1} parent=11 // pred_check
        %p436 = pneg %p284
      $region50: #{bert_for_representation.1} parent=11 // pred_check_branch
        %438 = sbr.rel (%p436) target = $region52
      $region51: #{bert_for_representation.1} parent=11 // pred_region
        _
      $region52: #{bert_for_representation.1} parent=11 // pred_fallthru
        _
      // Predicated region
      $region53: #{bert_for_representation.1} parent=11 // pred_check
        %p439 = pneg %p305
      $region54: #{bert_for_representation.1} parent=11 // pred_check_branch
        %441 = sbr.rel (%p439) target = $region56
      $region55: #{bert_for_representation.1} parent=11 // pred_region
        _
      $region56: #{bert_for_representation.1} parent=11 // pred_fallthru
        _
      // Predicated region
      $region57: #{bert_for_representation.1} parent=11 // pred_check
        %p442 = pneg %p326
      $region58: #{bert_for_representation.1} parent=11 // pred_check_branch
        %444 = sbr.rel (%p442) target = $region60
      $region59: #{bert_for_representation.1} parent=11 // pred_region
        _
      $region60: #{bert_for_representation.1} parent=11 // pred_fallthru
        _
      // Predicated region
      $region61: #{bert_for_representation.1} parent=11 // pred_check
        %p445 = pneg %p347
      $region62: #{bert_for_representation.1} parent=11 // pred_check_branch
        %447 = sbr.rel (%p445) target = $region64
      $region63: #{bert_for_representation.1} parent=11 // pred_region
        _
      $region64: #{bert_for_representation.1} parent=11 // pred_fallthru
        _
      // Predicated region
      $region65: #{bert_for_representation.1} parent=11 // pred_check
        %p448 = pneg %p368
      $region66: #{bert_for_representation.1} parent=11 // pred_check_branch
        %450 = sbr.rel (%p448) target = $region68
      $region67: #{bert_for_representation.1} parent=11 // pred_region
        _
      $region68: #{bert_for_representation.1} parent=11 // pred_fallthru
        _
    $region12: #{bert_for_representation.1} parent=5 // pred_fallthru
      _
    %p451 = scmp.lt.s32.totalorder %s22, 2
    // Predicated region
    $region69: #{bert_for_representation.1} parent=5 // pred_check
      %p452 = pneg %p451
    $region70: #{bert_for_representation.1} parent=5 // pred_check_branch
      %454 = sbr.rel (%p452) target = $region72
    $region71: #{bert_for_representation.1} parent=5 // pred_region
      // Predicated region
      $region73: #{bert_for_representation.1} parent=71 // pred_check
        %p455 = pneg %p42
      $region74: #{bert_for_representation.1} parent=71 // pred_check_branch
        %457 = sbr.rel (%p455) target = $region76
      $region75: #{bert_for_representation.1} parent=71 // pred_region
        %s458 = smul.u32 3, %s22
        %p459 = scmp.lt.s32.totalorder %s458, 5
        %s460 = scalar_select %p459, %s458, 5
        %s461 = smul.addr %s460, 8
        %s462 = scalar_lea.vmem %s0, %s461
        %s463 = smul.u32 3, %s22
      $region76: #{bert_for_representation.1} parent=71 // pred_fallthru
        _
      // Predicated region
      $region77: #{bert_for_representation.1} parent=71 // pred_check
        %p464 = pneg %p68
      $region78: #{bert_for_representation.1} parent=71 // pred_check_branch
        %466 = sbr.rel (%p464) target = $region80
      $region79: #{bert_for_representation.1} parent=71 // pred_region
        %s467 = smul.u32 3, %s22
        %p468 = scmp.lt.s32.totalorder %s467, 5
        %s469 = scalar_select %p468, %s467, 5
        %s470 = scalar_lea.vmem %s1, %s469
        %s471 = smul.u32 3, %s22
      $region80: #{bert_for_representation.1} parent=71 // pred_fallthru
        _
    $region72: #{bert_for_representation.1} parent=5 // pred_fallthru
      _
    %p472 = scmp.le.s32.totalorder 1, %s22
    %p473 = scmp.lt.s32.totalorder %s22, 3
    %p474 = pnand %p472, %p473
    %p475 = pneg %p474
    // Predicated region
    $region81: #{bert_for_representation.1} parent=5 // pred_check
      _
    $region82: #{bert_for_representation.1} parent=5 // pred_check_branch
      %477 = sbr.rel (%p474) target = $region84
    $region83: #{bert_for_representation.1} parent=5 // pred_region
      %s478 = ssub.s32 %s22, 1
      %s479 = smul.u32 3, %s27
      %p480 = scmp.lt.s32.totalorder %s479, 5
      %s481 = scalar_select %p480, %s479, 5
      %s482 = smul.addr %s481, 8
      %s483 = scalar_lea.vmem %s0, %s482
      %p484 = pneg %p48
      %p485 = pneg %p45
      %s486 = smul.u32 3, %s27
      %p487 = scmp.lt.s32.totalorder %s486, 5
      %s488 = scalar_select %p487, %s486, 5
      %s489 = scalar_lea.vmem %s1, %s488
      %p490 = pneg %p74
      %p491 = pneg %p71
      %p492 = pneg %p95
      %p493 = pneg %p92
      %p494 = pneg %p116
      %p495 = pneg %p113
      %p496 = pneg %p137
      %p497 = pneg %p134
      %p498 = pneg %p158
      %p499 = pneg %p155
      %p500 = pneg %p179
      %p501 = pneg %p176
      %p502 = pneg %p200
      %p503 = pneg %p197
      %p504 = pneg %p221
      %p505 = pneg %p218
      %p506 = pneg %p242
      %p507 = pneg %p239
      %p508 = pneg %p263
      %p509 = pneg %p260
      %p510 = pneg %p284
      %p511 = pneg %p281
      %p512 = pneg %p305
      %p513 = pneg %p302
      %p514 = pneg %p326
      %p515 = pneg %p323
      %p516 = pneg %p347
      %p517 = pneg %p344
      %p518 = pneg %p368
      %p519 = pneg %p365
      %p520 = pneg %p394
      %p521 = pneg %p391
      %p522 = scmp.lt.s32.totalorder %s27, 1
      %s523 = scalar_select %p522, %s27, 1
      %s524 = smul.addr %s523, 4
      %s525 = scalar_lea.vmem %s16, %s524
      %s526 = smul.u32 3, %s27
      %p527 = scmp.lt.s32.totalorder %s526, 5
      %s528 = scalar_select %p527, %s526, 5
      %s529 = smul.addr %s528, 8
      %s530 = scalar_lea.vmem %s0, %s529
      %s531 = smul.u32 3, %s27
      %s532 = smul.u32 3, %s27
      %p533 = scmp.lt.s32.totalorder %s532, 5
      %s534 = scalar_select %p533, %s532, 5
      %s535 = scalar_lea.vmem %s1, %s534
      %s536 = smul.u32 3, %s27
      %p537 = scmp.lt.s32.totalorder %s27, 1
      %s538 = scalar_select %p537, %s27, 1
      %s539 = smul.addr %s538, 4
      %s540 = scalar_lea.vmem %s16, %s539
      %v541 = vld [vmem:[%s530] sm:$0xff]
      %v542 = vld [vmem:[%s530 + $0x8] sm:$0xff]
      %v543 = vld [vmem:[%s530 + $0x10] sm:$0xff]
      %v544 = vld [vmem:[%s2] sm:$0x1]
      %v545 = vld [vmem:[%s3] sm:$0x1]
      %vm546 = vcmask 261120
      %v547 = vsel %vm546, %v541, 0.0
      %548 = vadd.xlane.f32.xlu0 %v547
      %v549 = vpop.xlane.xlu0 %548
      %v550 = vsel %vm546, %v542, 0.0
      %551 = vadd.xlane.f32.xlu0 %v550
      %v552 = vpop.xlane.xlu0 %551
      %v553 = vsel %vm546, %v543, 0.0
      %554 = vadd.xlane.f32.xlu0 %v553
      %v555 = vpop.xlane.xlu0 %554
      %v556 = vrcp.pop 32.0
      %v557 = vmul.f32 %v549, %v556
      %v558 = vmul.f32 %v552, %v556
      %v559 = vmul.f32 %v555, %v556
      %v560 = vsub.f32 %v541, %v557
      %v561 = vsub.f32 %v542, %v558
      %v562 = vsub.f32 %v543, %v559
      %v563 = vmul.f32 %v560, %v560
      %v564 = vmul.f32 %v561, %v561
      %v565 = vmul.f32 %v562, %v562
      %v566 = vsel %vm546, %v563, 0.0
      %567 = vadd.xlane.f32.xlu0 %v566
      %v568 = vpop.xlane.xlu0 %567
      %v569 = vsel %vm546, %v564, 0.0
      %570 = vadd.xlane.f32.xlu0 %v569
      %v571 = vpop.xlane.xlu0 %570
      %v572 = vsel %vm546, %v565, 0.0
      %573 = vadd.xlane.f32.xlu0 %v572
      %v574 = vpop.xlane.xlu0 %573
      %v575 = vmul.f32 %v568, %v556
      %v576 = vmul.f32 %v571, %v556
      %v577 = vmul.f32 %v574, %v556
      %v578 = vadd.f32 %v575, 1e-12
      %v579 = vadd.f32 %v576, 1e-12
      %v580 = vadd.f32 %v577, 1e-12
      %v581 = vrsqrt.pop %v578
      %v582 = vrsqrt.pop %v579
      %v583 = vrsqrt.pop %v580
      %v584 = vmul.f32 %v560, %v581
      %v585 = vmul.f32 %v561, %v582
      %v586 = vmul.f32 %v562, %v583
      %v588 = vlaneseq
      %v589 = vshrl.u32 %v588, 7
      %v590 = vsub.s32 0, %v589
      %v591 = vrot.slane %v544, %v590
      %v593 = vmul.f32 %v584, %v591
      %v594 = vmul.f32 %v585, %v591
      %v595 = vmul.f32 %v586, %v591
      %v597 = vlaneseq
      %v598 = vshrl.u32 %v597, 7
      %v599 = vsub.s32 0, %v598
      %v600 = vrot.slane %v545, %v599
      %v602 = vadd.f32 %v593, %v600
      %v603 = vadd.f32 %v594, %v600
      %v604 = vadd.f32 %v595, %v600
      %v605 = vld [vmem:[%s535] sm:$0x1]
      %v606 = vld [vmem:[%s535 + $0x1] sm:$0x1]
      %v607 = vld [vmem:[%s535 + $0x2] sm:$0x1]
      %v611 = vlaneseq
      %v612 = vshrl.u32 %v611, 7
      %v613 = vsub.s32 0, %v612
      %v614 = vrot.slane %v605, %v613
      %v615 = vlaneseq
      %v616 = vshrl.u32 %v615, 7
      %v617 = vsub.s32 0, %v616
      %v618 = vrot.slane %v606, %v617
      %v619 = vlaneseq
      %v620 = vshrl.u32 %v619, 7
      %v621 = vsub.s32 0, %v620
      %v622 = vrot.slane %v607, %v621
      %v626 = vld [vmem:[%s4] sm:$0xff]
      %v627 = vld [vmem:[%s4 + $0x8] sm:$0xff]
      %v628 = vld [vmem:[%s4 + $0x10] sm:$0xff]
      %v629 = vld [vmem:[%s4 + $0x18] sm:$0xff]
      %v630 = vld [vmem:[%s5] sm:$0x1]
      %v632 = vlaneseq
      %v633 = vshrl.u32 %v632, 7
      %v634 = vsub.s32 0, %v633
      %v635 = vrot.slane %v630, %v634
      %v638 = vsel %vm546, %v602, 0
      %v641 = vsel %vm546, %v603, 0
      %v644 = vsel %vm546, %v604, 0
      %646 = vmatprep.subr.mxu0 0.0
      %647 = vmatpush1.msra.mxu0 %v626
      %648 = vmatprep.subr.mxu0 0.0
      %649 = vmatpush1.msra.mxu0 %v627
      %650 = vmatprep.subr.mxu0 0.0
      %651 = vmatpush1.msra.mxu0 %v628
      %652 = vmatprep.subr.mxu0 0.0
      %653 = vmatpush1.msra.mxu0 %v629
      %654 = vmatprep.subr.mxu0 0.0
      %655 = vmatpush1.msra.mxu0 0.0
      %656 = vmatprep.subr.mxu0 0.0
      %657 = vmatpush1.msra.mxu0 0.0
      %658 = vmatprep.subr.mxu0 0.0
      %659 = vmatpush1.msra.mxu0 0.0
      %660 = vmatprep.subr.mxu0 0.0
      %661 = vmatpush1.msra.mxu0 0.0
      %662 = vmatprep.subr.mxu0 0.0
      %663 = vmatpush1.msra.mxu0 0.0
      %664 = vmatprep.subr.mxu0 0.0
      %665 = vmatpush1.msra.mxu0 0.0
      %666 = vmatprep.subr.mxu0 0.0
      %667 = vmatpush1.msra.mxu0 0.0
      %668 = vmatprep.subr.mxu0 0.0
      %669 = vmatpush1.msra.mxu0 0.0
      %670 = vmatprep.subr.mxu0 0.0
      %671 = vmatpush1.msra.mxu0 0.0
      %672 = vmatprep.subr.mxu0 0.0
      %673 = vmatpush1.msra.mxu0 0.0
      %674 = vmatprep.subr.mxu0 0.0
      %675 = vmatpush1.msra.mxu0 0.0
      %676 = vmatprep.subr.mxu0 0.0
      %677 = vmatpush1.msra.mxu0 0.0
      %678 = vmatprep.subr.mxu0 0.0
      %679 = vmatpush1.msra.mxu0 0.0
      %680 = vmatprep.subr.mxu0 0.0
      %681 = vmatpush1.msra.mxu0 0.0
      %682 = vmatprep.subr.mxu0 0.0
      %683 = vmatpush1.msra.mxu0 0.0
      %684 = vmatprep.subr.mxu0 0.0
      %685 = vmatpush1.msra.mxu0 0.0
      %686 = vmatprep.subr.mxu0 0.0
      %687 = vmatpush1.msra.mxu0 0.0
      %688 = vmatprep.subr.mxu0 0.0
      %689 = vmatpush1.msra.mxu0 0.0
      %690 = vmatprep.subr.mxu0 0.0
      %691 = vmatpush1.msra.mxu0 0.0
      %692 = vmatprep.subr.mxu0 0.0
      %693 = vmatpush1.msra.mxu0 0.0
      %694 = vmatprep.subr.mxu0 0.0
      %695 = vmatpush1.msra.mxu0 0.0
      %696 = vmatprep.subr.mxu0 0.0
      %697 = vmatpush1.msra.mxu0 0.0
      %698 = vmatprep.subr.mxu0 0.0
      %699 = vmatpush1.msra.mxu0 0.0
      %700 = vmatprep.subr.mxu0 0.0
      %701 = vmatpush1.msra.mxu0 0.0
      %702 = vmatprep.subr.mxu0 0.0
      %703 = vmatpush1.msra.mxu0 0.0
      %704 = vmatprep.subr.mxu0 0.0
      %705 = vmatpush1.msra.mxu0 0.0
      %706 = vmatprep.subr.mxu0 0.0
      %707 = vmatpush1.msra.mxu0 0.0
      %708 = vmatprep.subr.mxu0 0.0
      %709 = vmatpush1.msra.mxu0 0.0
      %710 = vmatprep.mubr.f32.mxu0 0.0
      %711 = vmatmul.mubr.f32.gmra.mrb[0].mxu0 %v638
      %v712 = vpop.f32.mrb[0].mxu0
      %v713 = vadd.f32 %v635, %v712
      %v714 = vpop.f32.mrb[0].mxu0
      %715 = vmatprep.mubr.f32.mxu0 0.0
      %716 = vmatmul.mubr.f32.gmra.mrb[0].mxu0 %v641
      %v717 = vpop.f32.mrb[0].mxu0
      %v718 = vadd.f32 %v635, %v717
      %v719 = vpop.f32.mrb[0].mxu0
      %720 = vmatprep.mubr.f32.mxu0 0.0
      %721 = vmatmul.mubr.f32.gmra.mrb[0].mxu0 %v644
      %v722 = vpop.f32.mrb[0].mxu0
      %v723 = vadd.f32 %v635, %v722
      %v724 = vpop.f32.mrb[0].mxu0
      %725 = vdwg.mxu0
      %v726 = vmul.f32 %v713, 0.25
      %v727 = vmul.f32 %v718, 0.25
      %v728 = vmul.f32 %v723, 0.25
      %730 = vrot.lane.b32.xlu0 %v713, 96
      %v731 = vpop.permute.xlu0 %730
      %vm732 = vcmask 130048
      %v734 = vsel %vm732, %v726, 0
      %v736 = vsel %vm732, %v731, 0
      %738 = vmatprep.subr.mxu0 0.0
      %739 = vmatpush1.xpose.msra.mxu0 %v736
      %740 = vmatprep.subr.mxu0 0.0
      %741 = vmatpush1.xpose.msra.mxu0 0.0
      %742 = vmatprep.subr.mxu0 0.0
      %743 = vmatpush1.xpose.msra.mxu0 0.0
      %744 = vmatprep.subr.mxu0 0.0
      %745 = vmatpush1.xpose.msra.mxu0 0.0
      %746 = vmatprep.subr.mxu0 0.0
      %747 = vmatpush1.xpose.msra.mxu0 0.0
      %748 = vmatprep.subr.mxu0 0.0
      %749 = vmatpush1.xpose.msra.mxu0 0.0
      %750 = vmatprep.subr.mxu0 0.0
      %751 = vmatpush1.xpose.msra.mxu0 0.0
      %752 = vmatprep.subr.mxu0 0.0
      %753 = vmatpush1.xpose.msra.mxu0 0.0
      %754 = vmatprep.subr.mxu0 0.0
      %755 = vmatpush1.xpose.msra.mxu0 0.0
      %756 = vmatprep.subr.mxu0 0.0
      %757 = vmatpush1.xpose.msra.mxu0 0.0
      %758 = vmatprep.subr.mxu0 0.0
      %759 = vmatpush1.xpose.msra.mxu0 0.0
      %760 = vmatprep.subr.mxu0 0.0
      %761 = vmatpush1.xpose.msra.mxu0 0.0
      %762 = vmatprep.subr.mxu0 0.0
      %763 = vmatpush1.xpose.msra.mxu0 0.0
      %764 = vmatprep.subr.mxu0 0.0
      %765 = vmatpush1.xpose.msra.mxu0 0.0
      %766 = vmatprep.subr.mxu0 0.0
      %767 = vmatpush1.xpose.msra.mxu0 0.0
      %768 = vmatprep.subr.mxu0 0.0
      %769 = vmatpush1.xpose.msra.mxu0 0.0
      %770 = vmatprep.subr.mxu0 0.0
      %771 = vmatpush1.xpose.msra.mxu0 0.0
      %772 = vmatprep.subr.mxu0 0.0
      %773 = vmatpush1.xpose.msra.mxu0 0.0
      %774 = vmatprep.subr.mxu0 0.0
      %775 = vmatpush1.xpose.msra.mxu0 0.0
      %776 = vmatprep.subr.mxu0 0.0
      %777 = vmatpush1.xpose.msra.mxu0 0.0
      %778 = vmatprep.subr.mxu0 0.0
      %779 = vmatpush1.xpose.msra.mxu0 0.0
      %780 = vmatprep.subr.mxu0 0.0
      %781 = vmatpush1.xpose.msra.mxu0 0.0
      %782 = vmatprep.subr.mxu0 0.0
      %783 = vmatpush1.xpose.msra.mxu0 0.0
      %784 = vmatprep.subr.mxu0 0.0
      %785 = vmatpush1.xpose.msra.mxu0 0.0
      %786 = vmatprep.subr.mxu0 0.0
      %787 = vmatpush1.xpose.msra.mxu0 0.0
      %788 = vmatprep.subr.mxu0 0.0
      %789 = vmatpush1.xpose.msra.mxu0 0.0
      %790 = vmatprep.subr.mxu0 0.0
      %791 = vmatpush1.xpose.msra.mxu0 0.0
      %792 = vmatprep.subr.mxu0 0.0
      %793 = vmatpush1.xpose.msra.mxu0 0.0
      %794 = vmatprep.subr.mxu0 0.0
      %795 = vmatpush1.xpose.msra.mxu0 0.0
      %796 = vmatprep.subr.mxu0 0.0
      %797 = vmatpush1.xpose.msra.mxu0 0.0
      %798 = vmatprep.subr.mxu0 0.0
      %799 = vmatpush1.xpose.msra.mxu0 0.0
      %800 = vmatprep.subr.mxu0 0.0
      %801 = vmatpush1.xpose.msra.mxu0 0.0
      %802 = vmatprep.mubr.f32.mxu0 0.0
      %803 = vmatmul.mubr.f32.gmra.mrb[0].mxu0 %v734
      %v804 = vpop.f32.mrb[0].mxu0
      %v805 = vadd.f32 %v614, %v804
      %v806 = vpop.f32.mrb[0].mxu0
      %807 = vdwg.mxu0
      %809 = vrot.lane.b32.xlu0 %v718, 96
      %v810 = vpop.permute.xlu0 %809
      %v812 = vsel %vm732, %v727, 0
      %v814 = vsel %vm732, %v810, 0
      %816 = vmatprep.subr.mxu0 0.0
      %817 = vmatpush1.xpose.msra.mxu0 %v814
      %818 = vmatprep.subr.mxu0 0.0
      %819 = vmatpush1.xpose.msra.mxu0 0.0
      %820 = vmatprep.subr.mxu0 0.0
      %821 = vmatpush1.xpose.msra.mxu0 0.0
      %822 = vmatprep.subr.mxu0 0.0
      %823 = vmatpush1.xpose.msra.mxu0 0.0
      %824 = vmatprep.subr.mxu0 0.0
      %825 = vmatpush1.xpose.msra.mxu0 0.0
      %826 = vmatprep.subr.mxu0 0.0
      %827 = vmatpush1.xpose.msra.mxu0 0.0
      %828 = vmatprep.subr.mxu0 0.0
      %829 = vmatpush1.xpose.msra.mxu0 0.0
      %830 = vmatprep.subr.mxu0 0.0
      %831 = vmatpush1.xpose.msra.mxu0 0.0
      %832 = vmatprep.subr.mxu0 0.0
      %833 = vmatpush1.xpose.msra.mxu0 0.0
      %834 = vmatprep.subr.mxu0 0.0
      %835 = vmatpush1.xpose.msra.mxu0 0.0
      %836 = vmatprep.subr.mxu0 0.0
      %837 = vmatpush1.xpose.msra.mxu0 0.0
      %838 = vmatprep.subr.mxu0 0.0
      %839 = vmatpush1.xpose.msra.mxu0 0.0
      %840 = vmatprep.subr.mxu0 0.0
      %841 = vmatpush1.xpose.msra.mxu0 0.0
      %842 = vmatprep.subr.mxu0 0.0
      %843 = vmatpush1.xpose.msra.mxu0 0.0
      %844 = vmatprep.subr.mxu0 0.0
      %845 = vmatpush1.xpose.msra.mxu0 0.0
      %846 = vmatprep.subr.mxu0 0.0
      %847 = vmatpush1.xpose.msra.mxu0 0.0
      %848 = vmatprep.subr.mxu0 0.0
      %849 = vmatpush1.xpose.msra.mxu0 0.0
      %850 = vmatprep.subr.mxu0 0.0
      %851 = vmatpush1.xpose.msra.mxu0 0.0
      %852 = vmatprep.subr.mxu0 0.0
      %853 = vmatpush1.xpose.msra.mxu0 0.0
      %854 = vmatprep.subr.mxu0 0.0
      %855 = vmatpush1.xpose.msra.mxu0 0.0
      %856 = vmatprep.subr.mxu0 0.0
      %857 = vmatpush1.xpose.msra.mxu0 0.0
      %858 = vmatprep.subr.mxu0 0.0
      %859 = vmatpush1.xpose.msra.mxu0 0.0
      %860 = vmatprep.subr.mxu0 0.0
      %861 = vmatpush1.xpose.msra.mxu0 0.0
      %862 = vmatprep.subr.mxu0 0.0
      %863 = vmatpush1.xpose.msra.mxu0 0.0
      %864 = vmatprep.subr.mxu0 0.0
      %865 = vmatpush1.xpose.msra.mxu0 0.0
      %866 = vmatprep.subr.mxu0 0.0
      %867 = vmatpush1.xpose.msra.mxu0 0.0
      %868 = vmatprep.subr.mxu0 0.0
      %869 = vmatpush1.xpose.msra.mxu0 0.0
      %870 = vmatprep.subr.mxu0 0.0
      %871 = vmatpush1.xpose.msra.mxu0 0.0
      %872 = vmatprep.subr.mxu0 0.0
      %873 = vmatpush1.xpose.msra.mxu0 0.0
      %874 = vmatprep.subr.mxu0 0.0
      %875 = vmatpush1.xpose.msra.mxu0 0.0
      %876 = vmatprep.subr.mxu0 0.0
      %877 = vmatpush1.xpose.msra.mxu0 0.0
      %878 = vmatprep.subr.mxu0 0.0
      %879 = vmatpush1.xpose.msra.mxu0 0.0
      %880 = vmatprep.mubr.f32.mxu0 0.0
      %881 = vmatmul.mubr.f32.gmra.mrb[0].mxu0 %v812
      %v882 = vpop.f32.mrb[0].mxu0
      %v883 = vadd.f32 %v618, %v882
      %v884 = vpop.f32.mrb[0].mxu0
      %885 = vdwg.mxu0
      %887 = vrot.lane.b32.xlu0 %v723, 96
      %v888 = vpop.permute.xlu0 %887
      %v890 = vsel %vm732, %v728, 0
      %v892 = vsel %vm732, %v888, 0
      %894 = vmatprep.subr.mxu0 0.0
      %895 = vmatpush1.xpose.msra.mxu0 %v892
      %896 = vmatprep.subr.mxu0 0.0
      %897 = vmatpush1.xpose.msra.mxu0 0.0
      %898 = vmatprep.subr.mxu0 0.0
      %899 = vmatpush1.xpose.msra.mxu0 0.0
      %900 = vmatprep.subr.mxu0 0.0
      %901 = vmatpush1.xpose.msra.mxu0 0.0
      %902 = vmatprep.subr.mxu0 0.0
      %903 = vmatpush1.xpose.msra.mxu0 0.0
      %904 = vmatprep.subr.mxu0 0.0
      %905 = vmatpush1.xpose.msra.mxu0 0.0
      %906 = vmatprep.subr.mxu0 0.0
      %907 = vmatpush1.xpose.msra.mxu0 0.0
      %908 = vmatprep.subr.mxu0 0.0
      %909 = vmatpush1.xpose.msra.mxu0 0.0
      %910 = vmatprep.subr.mxu0 0.0
      %911 = vmatpush1.xpose.msra.mxu0 0.0
      %912 = vmatprep.subr.mxu0 0.0
      %913 = vmatpush1.xpose.msra.mxu0 0.0
      %914 = vmatprep.subr.mxu0 0.0
      %915 = vmatpush1.xpose.msra.mxu0 0.0
      %916 = vmatprep.subr.mxu0 0.0
      %917 = vmatpush1.xpose.msra.mxu0 0.0
      %918 = vmatprep.subr.mxu0 0.0
      %919 = vmatpush1.xpose.msra.mxu0 0.0
      %920 = vmatprep.subr.mxu0 0.0
      %921 = vmatpush1.xpose.msra.mxu0 0.0
      %922 = vmatprep.subr.mxu0 0.0
      %923 = vmatpush1.xpose.msra.mxu0 0.0
      %924 = vmatprep.subr.mxu0 0.0
      %925 = vmatpush1.xpose.msra.mxu0 0.0
      %926 = vmatprep.subr.mxu0 0.0
      %927 = vmatpush1.xpose.msra.mxu0 0.0
      %928 = vmatprep.subr.mxu0 0.0
      %929 = vmatpush1.xpose.msra.mxu0 0.0
      %930 = vmatprep.subr.mxu0 0.0
      %931 = vmatpush1.xpose.msra.mxu0 0.0
      %932 = vmatprep.subr.mxu0 0.0
      %933 = vmatpush1.xpose.msra.mxu0 0.0
      %934 = vmatprep.subr.mxu0 0.0
      %935 = vmatpush1.xpose.msra.mxu0 0.0
      %936 = vmatprep.subr.mxu0 0.0
      %937 = vmatpush1.xpose.msra.mxu0 0.0
      %938 = vmatprep.subr.mxu0 0.0
      %939 = vmatpush1.xpose.msra.mxu0 0.0
      %940 = vmatprep.subr.mxu0 0.0
      %941 = vmatpush1.xpose.msra.mxu0 0.0
      %942 = vmatprep.subr.mxu0 0.0
      %943 = vmatpush1.xpose.msra.mxu0 0.0
      %944 = vmatprep.subr.mxu0 0.0
      %945 = vmatpush1.xpose.msra.mxu0 0.0
      %946 = vmatprep.subr.mxu0 0.0
      %947 = vmatpush1.xpose.msra.mxu0 0.0
      %948 = vmatprep.subr.mxu0 0.0
      %949 = vmatpush1.xpose.msra.mxu0 0.0
      %950 = vmatprep.subr.mxu0 0.0
      %951 = vmatpush1.xpose.msra.mxu0 0.0
      %952 = vmatprep.subr.mxu0 0.0
      %953 = vmatpush1.xpose.msra.mxu0 0.0
      %954 = vmatprep.subr.mxu0 0.0
      %955 = vmatpush1.xpose.msra.mxu0 0.0
      %956 = vmatprep.subr.mxu0 0.0
      %957 = vmatpush1.xpose.msra.mxu0 0.0
      %958 = vmatprep.mubr.f32.mxu0 0.0
      %959 = vmatmul.mubr.f32.gmra.mrb[0].mxu0 %v890
      %v960 = vpop.f32.mrb[0].mxu0
      %v961 = vadd.f32 %v622, %v960
      %v962 = vpop.f32.mrb[0].mxu0
      %963 = vdwg.mxu0
      %vm964 = vcmask 64512
      %v965 = vsel %vm964, %v805, -inf
      %966 = vmax.xlane.f32.xlu0 %v965
      %v967 = vpop.xlane.xlu0 %966
      %v968 = vsel %vm964, %v883, -inf
      %969 = vmax.xlane.f32.xlu0 %v968
      %v970 = vpop.xlane.xlu0 %969
      %v971 = vsel %vm964, %v961, -inf
      %972 = vmax.xlane.f32.xlu0 %v971
      %v973 = vpop.xlane.xlu0 %972
      %v974 = vsub.f32 %v805, %v967
      %v975 = vsub.f32 %v883, %v970
      %v976 = vsub.f32 %v961, %v973
      %v977 = vmul.f32 %v974, 1.442695
      %v978 = vpow.pop %v977
      %v979 = vmul.f32 %v975, 1.442695
      %v980 = vpow.pop %v979
      %v981 = vmul.f32 %v976, 1.442695
      %v982 = vpow.pop %v981
      %v983 = vsel %vm964, %v978, 0.0
      %984 = vadd.xlane.f32.xlu0 %v983
      %v985 = vpop.xlane.xlu0 %984
      %v986 = vsel %vm964, %v980, 0.0
      %987 = vadd.xlane.f32.xlu0 %v986
      %v988 = vpop.xlane.xlu0 %987
      %v989 = vsel %vm964, %v982, 0.0
      %990 = vadd.xlane.f32.xlu0 %v989
      %v991 = vpop.xlane.xlu0 %990
      %v992 = vrcp.pop %v985
      %v993 = vrcp.pop %v988
      %v994 = vrcp.pop %v991
      %v995 = vmul.f32 %v978, %v992
      %v996 = vmul.f32 %v980, %v993
      %v997 = vmul.f32 %v982, %v994
      %998 = vrot.lane.b32.xlu0 %v713, 64
      %v999 = vpop.permute.xlu0 %998
      %v1002 = vsel %vm964, %v995, 0
      %1004 = vmatprep.subr.mxu0 0.0
      %1005 = vmatpush1.msra.mxu0 %v999
      %1006 = vmatprep.subr.mxu0 0.0
      %1007 = vmatpush1.msra.mxu0 0.0
      %1008 = vmatprep.subr.mxu0 0.0
      %1009 = vmatpush1.msra.mxu0 0.0
      %1010 = vmatprep.subr.mxu0 0.0
      %1011 = vmatpush1.msra.mxu0 0.0
      %1012 = vmatprep.subr.mxu0 0.0
      %1013 = vmatpush1.msra.mxu0 0.0
      %1014 = vmatprep.subr.mxu0 0.0
      %1015 = vmatpush1.msra.mxu0 0.0
      %1016 = vmatprep.subr.mxu0 0.0
      %1017 = vmatpush1.msra.mxu0 0.0
      %1018 = vmatprep.subr.mxu0 0.0
      %1019 = vmatpush1.msra.mxu0 0.0
      %1020 = vmatprep.subr.mxu0 0.0
      %1021 = vmatpush1.msra.mxu0 0.0
      %1022 = vmatprep.subr.mxu0 0.0
      %1023 = vmatpush1.msra.mxu0 0.0
      %1024 = vmatprep.subr.mxu0 0.0
      %1025 = vmatpush1.msra.mxu0 0.0
      %1026 = vmatprep.subr.mxu0 0.0
      %1027 = vmatpush1.msra.mxu0 0.0
      %1028 = vmatprep.subr.mxu0 0.0
      %1029 = vmatpush1.msra.mxu0 0.0
      %1030 = vmatprep.subr.mxu0 0.0
      %1031 = vmatpush1.msra.mxu0 0.0
      %1032 = vmatprep.subr.mxu0 0.0
      %1033 = vmatpush1.msra.mxu0 0.0
      %1034 = vmatprep.subr.mxu0 0.0
      %1035 = vmatpush1.msra.mxu0 0.0
      %1036 = vmatprep.subr.mxu0 0.0
      %1037 = vmatpush1.msra.mxu0 0.0
      %1038 = vmatprep.subr.mxu0 0.0
      %1039 = vmatpush1.msra.mxu0 0.0
      %1040 = vmatprep.subr.mxu0 0.0
      %1041 = vmatpush1.msra.mxu0 0.0
      %1042 = vmatprep.subr.mxu0 0.0
      %1043 = vmatpush1.msra.mxu0 0.0
      %1044 = vmatprep.subr.mxu0 0.0
      %1045 = vmatpush1.msra.mxu0 0.0
      %1046 = vmatprep.subr.mxu0 0.0
      %1047 = vmatpush1.msra.mxu0 0.0
      %1048 = vmatprep.subr.mxu0 0.0
      %1049 = vmatpush1.msra.mxu0 0.0
      %1050 = vmatprep.subr.mxu0 0.0
      %1051 = vmatpush1.msra.mxu0 0.0
      %1052 = vmatprep.subr.mxu0 0.0
      %1053 = vmatpush1.msra.mxu0 0.0
      %1054 = vmatprep.subr.mxu0 0.0
      %1055 = vmatpush1.msra.mxu0 0.0
      %1056 = vmatprep.subr.mxu0 0.0
      %1057 = vmatpush1.msra.mxu0 0.0
      %1058 = vmatprep.subr.mxu0 0.0
      %1059 = vmatpush1.msra.mxu0 0.0
      %1060 = vmatprep.subr.mxu0 0.0
      %1061 = vmatpush1.msra.mxu0 0.0
      %1062 = vmatprep.subr.mxu0 0.0
      %1063 = vmatpush1.msra.mxu0 0.0
      %1064 = vmatprep.subr.mxu0 0.0
      %1065 = vmatpush1.msra.mxu0 0.0
      %1066 = vmatprep.subr.mxu0 0.0
      %1067 = vmatpush1.msra.mxu0 0.0
      %1068 = vmatprep.mubr.f32.mxu0 0.0
      %1069 = vmatmul.mubr.f32.gmra.mrb[0].mxu0 %v1002
      %v1070 = vpop.f32.mrb[0].mxu0
      %v1071 = vadd.f32 0.0, %v1070
      %v1072 = vpop.f32.mrb[0].mxu0
      %1073 = vdwg.mxu0
      %1074 = vrot.lane.b32.xlu0 %v718, 64
      %v1075 = vpop.permute.xlu0 %1074
      %v1078 = vsel %vm964, %v996, 0
      %1080 = vmatprep.subr.mxu0 0.0
      %1081 = vmatpush1.msra.mxu0 %v1075
      %1082 = vmatprep.subr.mxu0 0.0
      %1083 = vmatpush1.msra.mxu0 0.0
      %1084 = vmatprep.subr.mxu0 0.0
      %1085 = vmatpush1.msra.mxu0 0.0
      %1086 = vmatprep.subr.mxu0 0.0
      %1087 = vmatpush1.msra.mxu0 0.0
      %1088 = vmatprep.subr.mxu0 0.0
      %1089 = vmatpush1.msra.mxu0 0.0
      %1090 = vmatprep.subr.mxu0 0.0
      %1091 = vmatpush1.msra.mxu0 0.0
      %1092 = vmatprep.subr.mxu0 0.0
      %1093 = vmatpush1.msra.mxu0 0.0
      %1094 = vmatprep.subr.mxu0 0.0
      %1095 = vmatpush1.msra.mxu0 0.0
      %1096 = vmatprep.subr.mxu0 0.0
      %1097 = vmatpush1.msra.mxu0 0.0
      %1098 = vmatprep.subr.mxu0 0.0
      %1099 = vmatpush1.msra.mxu0 0.0
      %1100 = vmatprep.subr.mxu0 0.0
      %1101 = vmatpush1.msra.mxu0 0.0
      %1102 = vmatprep.subr.mxu0 0.0
      %1103 = vmatpush1.msra.mxu0 0.0
      %1104 = vmatprep.subr.mxu0 0.0
      %1105 = vmatpush1.msra.mxu0 0.0
      %1106 = vmatprep.subr.mxu0 0.0
      %1107 = vmatpush1.msra.mxu0 0.0
      %1108 = vmatprep.subr.mxu0 0.0
      %1109 = vmatpush1.msra.mxu0 0.0
      %1110 = vmatprep.subr.mxu0 0.0
      %1111 = vmatpush1.msra.mxu0 0.0
      %1112 = vmatprep.subr.mxu0 0.0
      %1113 = vmatpush1.msra.mxu0 0.0
      %1114 = vmatprep.subr.mxu0 0.0
      %1115 = vmatpush1.msra.mxu0 0.0
      %1116 = vmatprep.subr.mxu0 0.0
      %1117 = vmatpush1.msra.mxu0 0.0
      %1118 = vmatprep.subr.mxu0 0.0
      %1119 = vmatpush1.msra.mxu0 0.0
      %1120 = vmatprep.subr.mxu0 0.0
      %1121 = vmatpush1.msra.mxu0 0.0
      %1122 = vmatprep.subr.mxu0 0.0
      %1123 = vmatpush1.msra.mxu0 0.0
      %1124 = vmatprep.subr.mxu0 0.0
      %1125 = vmatpush1.msra.mxu0 0.0
      %1126 = vmatprep.subr.mxu0 0.0
      %1127 = vmatpush1.msra.mxu0 0.0
      %1128 = vmatprep.subr.mxu0 0.0
      %1129 = vmatpush1.msra.mxu0 0.0
      %1130 = vmatprep.subr.mxu0 0.0
      %1131 = vmatpush1.msra.mxu0 0.0
      %1132 = vmatprep.subr.mxu0 0.0
      %1133 = vmatpush1.msra.mxu0 0.0
      %1134 = vmatprep.subr.mxu0 0.0
      %1135 = vmatpush1.msra.mxu0 0.0
      %1136 = vmatprep.subr.mxu0 0.0
      %1137 = vmatpush1.msra.mxu0 0.0
      %1138 = vmatprep.subr.mxu0 0.0
      %1139 = vmatpush1.msra.mxu0 0.0
      %1140 = vmatprep.subr.mxu0 0.0
      %1141 = vmatpush1.msra.mxu0 0.0
      %1142 = vmatprep.subr.mxu0 0.0
      %1143 = vmatpush1.msra.mxu0 0.0
      %1144 = vmatprep.mubr.f32.mxu0 0.0
      %1145 = vmatmul.mubr.f32.gmra.mrb[0].mxu0 %v1078
      %v1146 = vpop.f32.mrb[0].mxu0
      %v1147 = vadd.f32 0.0, %v1146
      %v1148 = vpop.f32.mrb[0].mxu0
      %1149 = vdwg.mxu0
      %1150 = vrot.lane.b32.xlu0 %v723, 64
      %v1151 = vpop.permute.xlu0 %1150
      %v1154 = vsel %vm964, %v997, 0
      %1156 = vmatprep.subr.mxu0 0.0
      %1157 = vmatpush1.msra.mxu0 %v1151
      %1158 = vmatprep.subr.mxu0 0.0
      %1159 = vmatpush1.msra.mxu0 0.0
      %1160 = vmatprep.subr.mxu0 0.0
      %1161 = vmatpush1.msra.mxu0 0.0
      %1162 = vmatprep.subr.mxu0 0.0
      %1163 = vmatpush1.msra.mxu0 0.0
      %1164 = vmatprep.subr.mxu0 0.0
      %1165 = vmatpush1.msra.mxu0 0.0
      %1166 = vmatprep.subr.mxu0 0.0
      %1167 = vmatpush1.msra.mxu0 0.0
      %1168 = vmatprep.subr.mxu0 0.0
      %1169 = vmatpush1.msra.mxu0 0.0
      %1170 = vmatprep.subr.mxu0 0.0
      %1171 = vmatpush1.msra.mxu0 0.0
      %1172 = vmatprep.subr.mxu0 0.0
      %1173 = vmatpush1.msra.mxu0 0.0
      %1174 = vmatprep.subr.mxu0 0.0
      %1175 = vmatpush1.msra.mxu0 0.0
      %1176 = vmatprep.subr.mxu0 0.0
      %1177 = vmatpush1.msra.mxu0 0.0
      %1178 = vmatprep.subr.mxu0 0.0
      %1179 = vmatpush1.msra.mxu0 0.0
      %1180 = vmatprep.subr.mxu0 0.0
      %1181 = vmatpush1.msra.mxu0 0.0
      %1182 = vmatprep.subr.mxu0 0.0
      %1183 = vmatpush1.msra.mxu0 0.0
      %1184 = vmatprep.subr.mxu0 0.0
      %1185 = vmatpush1.msra.mxu0 0.0
      %1186 = vmatprep.subr.mxu0 0.0
      %1187 = vmatpush1.msra.mxu0 0.0
      %1188 = vmatprep.subr.mxu0 0.0
      %1189 = vmatpush1.msra.mxu0 0.0
      %1190 = vmatprep.subr.mxu0 0.0
      %1191 = vmatpush1.msra.mxu0 0.0
      %1192 = vmatprep.subr.mxu0 0.0
      %1193 = vmatpush1.msra.mxu0 0.0
      %1194 = vmatprep.subr.mxu0 0.0
      %1195 = vmatpush1.msra.mxu0 0.0
      %1196 = vmatprep.subr.mxu0 0.0
      %1197 = vmatpush1.msra.mxu0 0.0
      %1198 = vmatprep.subr.mxu0 0.0
      %1199 = vmatpush1.msra.mxu0 0.0
      %1200 = vmatprep.subr.mxu0 0.0
      %1201 = vmatpush1.msra.mxu0 0.0
      %1202 = vmatprep.subr.mxu0 0.0
      %1203 = vmatpush1.msra.mxu0 0.0
      %1204 = vmatprep.subr.mxu0 0.0
      %1205 = vmatpush1.msra.mxu0 0.0
      %1206 = vmatprep.subr.mxu0 0.0
      %1207 = vmatpush1.msra.mxu0 0.0
      %1208 = vmatprep.subr.mxu0 0.0
      %1209 = vmatpush1.msra.mxu0 0.0
      %1210 = vmatprep.subr.mxu0 0.0
      %1211 = vmatpush1.msra.mxu0 0.0
      %1212 = vmatprep.subr.mxu0 0.0
      %1213 = vmatpush1.msra.mxu0 0.0
      %1214 = vmatprep.subr.mxu0 0.0
      %1215 = vmatpush1.msra.mxu0 0.0
      %1216 = vmatprep.subr.mxu0 0.0
      %1217 = vmatpush1.msra.mxu0 0.0
      %1218 = vmatprep.subr.mxu0 0.0
      %1219 = vmatpush1.msra.mxu0 0.0
      %1220 = vmatprep.mubr.f32.mxu0 0.0
      %1221 = vmatmul.mubr.f32.gmra.mrb[0].mxu0 %v1154
      %v1222 = vpop.f32.mrb[0].mxu0
      %v1223 = vadd.f32 0.0, %v1222
      %v1224 = vpop.f32.mrb[0].mxu0
      %1225 = vdwg.mxu0
      %v1226 = vld [vmem:[%s6] sm:$0xff]
      %v1227 = vld [vmem:[%s6 + $0x8] sm:$0xff]
      %1228 = vrot.lane.b32.xlu0 %v726, 112
      %v1229 = vpop.permute.xlu0 %1228
      %1230 = vrot.lane.b32.xlu0 %v713, 80
      %v1231 = vpop.permute.xlu0 %1230
      %v1232 = vsel %vm732, %v1229, 0
      %v1234 = vsel %vm732, %v1231, 0
      %1236 = vmatprep.subr.mxu0 0.0
      %1237 = vmatpush1.xpose.msra.mxu0 %v1234
      %1238 = vmatprep.subr.mxu0 0.0
      %1239 = vmatpush1.xpose.msra.mxu0 0.0
      %1240 = vmatprep.subr.mxu0 0.0
      %1241 = vmatpush1.xpose.msra.mxu0 0.0
      %1242 = vmatprep.subr.mxu0 0.0
      %1243 = vmatpush1.xpose.msra.mxu0 0.0
      %1244 = vmatprep.subr.mxu0 0.0
      %1245 = vmatpush1.xpose.msra.mxu0 0.0
      %1246 = vmatprep.subr.mxu0 0.0
      %1247 = vmatpush1.xpose.msra.mxu0 0.0
      %1248 = vmatprep.subr.mxu0 0.0
      %1249 = vmatpush1.xpose.msra.mxu0 0.0
      %1250 = vmatprep.subr.mxu0 0.0
      %1251 = vmatpush1.xpose.msra.mxu0 0.0
      %1252 = vmatprep.subr.mxu0 0.0
      %1253 = vmatpush1.xpose.msra.mxu0 0.0
      %1254 = vmatprep.subr.mxu0 0.0
      %1255 = vmatpush1.xpose.msra.mxu0 0.0
      %1256 = vmatprep.subr.mxu0 0.0
      %1257 = vmatpush1.xpose.msra.mxu0 0.0
      %1258 = vmatprep.subr.mxu0 0.0
      %1259 = vmatpush1.xpose.msra.mxu0 0.0
      %1260 = vmatprep.subr.mxu0 0.0
      %1261 = vmatpush1.xpose.msra.mxu0 0.0
      %1262 = vmatprep.subr.mxu0 0.0
      %1263 = vmatpush1.xpose.msra.mxu0 0.0
      %1264 = vmatprep.subr.mxu0 0.0
      %1265 = vmatpush1.xpose.msra.mxu0 0.0
      %1266 = vmatprep.subr.mxu0 0.0
      %1267 = vmatpush1.xpose.msra.mxu0 0.0
      %1268 = vmatprep.subr.mxu0 0.0
      %1269 = vmatpush1.xpose.msra.mxu0 0.0
      %1270 = vmatprep.subr.mxu0 0.0
      %1271 = vmatpush1.xpose.msra.mxu0 0.0
      %1272 = vmatprep.subr.mxu0 0.0
      %1273 = vmatpush1.xpose.msra.mxu0 0.0
      %1274 = vmatprep.subr.mxu0 0.0
      %1275 = vmatpush1.xpose.msra.mxu0 0.0
      %1276 = vmatprep.subr.mxu0 0.0
      %1277 = vmatpush1.xpose.msra.mxu0 0.0
      %1278 = vmatprep.subr.mxu0 0.0
      %1279 = vmatpush1.xpose.msra.mxu0 0.0
      %1280 = vmatprep.subr.mxu0 0.0
      %1281 = vmatpush1.xpose.msra.mxu0 0.0
      %1282 = vmatprep.subr.mxu0 0.0
      %1283 = vmatpush1.xpose.msra.mxu0 0.0
      %1284 = vmatprep.subr.mxu0 0.0
      %1285 = vmatpush1.xpose.msra.mxu0 0.0
      %1286 = vmatprep.subr.mxu0 0.0
      %1287 = vmatpush1.xpose.msra.mxu0 0.0
      %1288 = vmatprep.subr.mxu0 0.0
      %1289 = vmatpush1.xpose.msra.mxu0 0.0
      %1290 = vmatprep.subr.mxu0 0.0
      %1291 = vmatpush1.xpose.msra.mxu0 0.0
      %1292 = vmatprep.subr.mxu0 0.0
      %1293 = vmatpush1.xpose.msra.mxu0 0.0
      %1294 = vmatprep.subr.mxu0 0.0
      %1295 = vmatpush1.xpose.msra.mxu0 0.0
      %1296 = vmatprep.subr.mxu0 0.0
      %1297 = vmatpush1.xpose.msra.mxu0 0.0
      %1298 = vmatprep.subr.mxu0 0.0
      %1299 = vmatpush1.xpose.msra.mxu0 0.0
      %1300 = vmatprep.mubr.f32.mxu0 0.0
      %1301 = vmatmul.mubr.f32.gmra.mrb[0].mxu0 %v1232
      %v1302 = vpop.f32.mrb[0].mxu0
      %v1303 = vadd.f32 %v614, %v1302
      %v1304 = vpop.f32.mrb[0].mxu0
      %1305 = vdwg.mxu0
      %1306 = vrot.lane.b32.xlu0 %v727, 112
      %v1307 = vpop.permute.xlu0 %1306
      %1308 = vrot.lane.b32.xlu0 %v718, 80
      %v1309 = vpop.permute.xlu0 %1308
      %v1310 = vsel %vm732, %v1307, 0
      %v1312 = vsel %vm732, %v1309, 0
      %1314 = vmatprep.subr.mxu0 0.0
      %1315 = vmatpush1.xpose.msra.mxu0 %v1312
      %1316 = vmatprep.subr.mxu0 0.0
      %1317 = vmatpush1.xpose.msra.mxu0 0.0
      %1318 = vmatprep.subr.mxu0 0.0
      %1319 = vmatpush1.xpose.msra.mxu0 0.0
      %1320 = vmatprep.subr.mxu0 0.0
      %1321 = vmatpush1.xpose.msra.mxu0 0.0
      %1322 = vmatprep.subr.mxu0 0.0
      %1323 = vmatpush1.xpose.msra.mxu0 0.0
      %1324 = vmatprep.subr.mxu0 0.0
      %1325 = vmatpush1.xpose.msra.mxu0 0.0
      %1326 = vmatprep.subr.mxu0 0.0
      %1327 = vmatpush1.xpose.msra.mxu0 0.0
      %1328 = vmatprep.subr.mxu0 0.0
      %1329 = vmatpush1.xpose.msra.mxu0 0.0
      %1330 = vmatprep.subr.mxu0 0.0
      %1331 = vmatpush1.xpose.msra.mxu0 0.0
      %1332 = vmatprep.subr.mxu0 0.0
      %1333 = vmatpush1.xpose.msra.mxu0 0.0
      %1334 = vmatprep.subr.mxu0 0.0
      %1335 = vmatpush1.xpose.msra.mxu0 0.0
      %1336 = vmatprep.subr.mxu0 0.0
      %1337 = vmatpush1.xpose.msra.mxu0 0.0
      %1338 = vmatprep.subr.mxu0 0.0
      %1339 = vmatpush1.xpose.msra.mxu0 0.0
      %1340 = vmatprep.subr.mxu0 0.0
      %1341 = vmatpush1.xpose.msra.mxu0 0.0
      %1342 = vmatprep.subr.mxu0 0.0
      %1343 = vmatpush1.xpose.msra.mxu0 0.0
      %1344 = vmatprep.subr.mxu0 0.0
      %1345 = vmatpush1.xpose.msra.mxu0 0.0
      %1346 = vmatprep.subr.mxu0 0.0
      %1347 = vmatpush1.xpose.msra.mxu0 0.0
      %1348 = vmatprep.subr.mxu0 0.0
      %1349 = vmatpush1.xpose.msra.mxu0 0.0
      %1350 = vmatprep.subr.mxu0 0.0
      %1351 = vmatpush1.xpose.msra.mxu0 0.0
      %1352 = vmatprep.subr.mxu0 0.0
      %1353 = vmatpush1.xpose.msra.mxu0 0.0
      %1354 = vmatprep.subr.mxu0 0.0
      %1355 = vmatpush1.xpose.msra.mxu0 0.0
      %1356 = vmatprep.subr.mxu0 0.0
      %1357 = vmatpush1.xpose.msra.mxu0 0.0
      %1358 = vmatprep.subr.mxu0 0.0
      %1359 = vmatpush1.xpose.msra.mxu0 0.0
      %1360 = vmatprep.subr.mxu0 0.0
      %1361 = vmatpush1.xpose.msra.mxu0 0.0
      %1362 = vmatprep.subr.mxu0 0.0
      %1363 = vmatpush1.xpose.msra.mxu0 0.0
      %1364 = vmatprep.subr.mxu0 0.0
      %1365 = vmatpush1.xpose.msra.mxu0 0.0
      %1366 = vmatprep.subr.mxu0 0.0
      %1367 = vmatpush1.xpose.msra.mxu0 0.0
      %1368 = vmatprep.subr.mxu0 0.0
      %1369 = vmatpush1.xpose.msra.mxu0 0.0
      %1370 = vmatprep.subr.mxu0 0.0
      %1371 = vmatpush1.xpose.msra.mxu0 0.0
      %1372 = vmatprep.subr.mxu0 0.0
      %1373 = vmatpush1.xpose.msra.mxu0 0.0
      %1374 = vmatprep.subr.mxu0 0.0
      %1375 = vmatpush1.xpose.msra.mxu0 0.0
      %1376 = vmatprep.subr.mxu0 0.0
      %1377 = vmatpush1.xpose.msra.mxu0 0.0
      %1378 = vmatprep.mubr.f32.mxu0 0.0
      %1379 = vmatmul.mubr.f32.gmra.mrb[0].mxu0 %v1310
      %v1380 = vpop.f32.mrb[0].mxu0
      %v1381 = vadd.f32 %v618, %v1380
      %v1382 = vpop.f32.mrb[0].mxu0
      %1383 = vdwg.mxu0
      %1384 = vrot.lane.b32.xlu0 %v728, 112
      %v1385 = vpop.permute.xlu0 %1384
      %1386 = vrot.lane.b32.xlu0 %v723, 80
      %v1387 = vpop.permute.xlu0 %1386
      %v1388 = vsel %vm732, %v1385, 0
      %v1390 = vsel %vm732, %v1387, 0
      %1392 = vmatprep.subr.mxu0 0.0
      %1393 = vmatpush1.xpose.msra.mxu0 %v1390
      %1394 = vmatprep.subr.mxu0 0.0
      %1395 = vmatpush1.xpose.msra.mxu0 0.0
      %1396 = vmatprep.subr.mxu0 0.0
      %1397 = vmatpush1.xpose.msra.mxu0 0.0
      %1398 = vmatprep.subr.mxu0 0.0
      %1399 = vmatpush1.xpose.msra.mxu0 0.0
      %1400 = vmatprep.subr.mxu0 0.0
      %1401 = vmatpush1.xpose.msra.mxu0 0.0
      %1402 = vmatprep.subr.mxu0 0.0
      %1403 = vmatpush1.xpose.msra.mxu0 0.0
      %1404 = vmatprep.subr.mxu0 0.0
      %1405 = vmatpush1.xpose.msra.mxu0 0.0
      %1406 = vmatprep.subr.mxu0 0.0
      %1407 = vmatpush1.xpose.msra.mxu0 0.0
      %1408 = vmatprep.subr.mxu0 0.0
      %1409 = vmatpush1.xpose.msra.mxu0 0.0
      %1410 = vmatprep.subr.mxu0 0.0
      %1411 = vmatpush1.xpose.msra.mxu0 0.0
      %1412 = vmatprep.subr.mxu0 0.0
      %1413 = vmatpush1.xpose.msra.mxu0 0.0
      %1414 = vmatprep.subr.mxu0 0.0
      %1415 = vmatpush1.xpose.msra.mxu0 0.0
      %1416 = vmatprep.subr.mxu0 0.0
      %1417 = vmatpush1.xpose.msra.mxu0 0.0
      %1418 = vmatprep.subr.mxu0 0.0
      %1419 = vmatpush1.xpose.msra.mxu0 0.0
      %1420 = vmatprep.subr.mxu0 0.0
      %1421 = vmatpush1.xpose.msra.mxu0 0.0
      %1422 = vmatprep.subr.mxu0 0.0
      %1423 = vmatpush1.xpose.msra.mxu0 0.0
      %1424 = vmatprep.subr.mxu0 0.0
      %1425 = vmatpush1.xpose.msra.mxu0 0.0
      %1426 = vmatprep.subr.mxu0 0.0
      %1427 = vmatpush1.xpose.msra.mxu0 0.0
      %1428 = vmatprep.subr.mxu0 0.0
      %1429 = vmatpush1.xpose.msra.mxu0 0.0
      %1430 = vmatprep.subr.mxu0 0.0
      %1431 = vmatpush1.xpose.msra.mxu0 0.0
      %1432 = vmatprep.subr.mxu0 0.0
      %1433 = vmatpush1.xpose.msra.mxu0 0.0
      %1434 = vmatprep.subr.mxu0 0.0
      %1435 = vmatpush1.xpose.msra.mxu0 0.0
      %1436 = vmatprep.subr.mxu0 0.0
      %1437 = vmatpush1.xpose.msra.mxu0 0.0
      %1438 = vmatprep.subr.mxu0 0.0
      %1439 = vmatpush1.xpose.msra.mxu0 0.0
      %1440 = vmatprep.subr.mxu0 0.0
      %1441 = vmatpush1.xpose.msra.mxu0 0.0
      %1442 = vmatprep.subr.mxu0 0.0
      %1443 = vmatpush1.xpose.msra.mxu0 0.0
      %1444 = vmatprep.subr.mxu0 0.0
      %1445 = vmatpush1.xpose.msra.mxu0 0.0
      %1446 = vmatprep.subr.mxu0 0.0
      %1447 = vmatpush1.xpose.msra.mxu0 0.0
      %1448 = vmatprep.subr.mxu0 0.0
      %1449 = vmatpush1.xpose.msra.mxu0 0.0
      %1450 = vmatprep.subr.mxu0 0.0
      %1451 = vmatpush1.xpose.msra.mxu0 0.0
      %1452 = vmatprep.subr.mxu0 0.0
      %1453 = vmatpush1.xpose.msra.mxu0 0.0
      %1454 = vmatprep.subr.mxu0 0.0
      %1455 = vmatpush1.xpose.msra.mxu0 0.0
      %1456 = vmatprep.mubr.f32.mxu0 0.0
      %1457 = vmatmul.mubr.f32.gmra.mrb[0].mxu0 %v1388
      %v1458 = vpop.f32.mrb[0].mxu0
      %v1459 = vadd.f32 %v622, %v1458
      %v1460 = vpop.f32.mrb[0].mxu0
      %1461 = vdwg.mxu0
      %v1462 = vsel %vm964, %v1303, -inf
      %1463 = vmax.xlane.f32.xlu0 %v1462
      %v1464 = vpop.xlane.xlu0 %1463
      %v1465 = vsel %vm964, %v1381, -inf
      %1466 = vmax.xlane.f32.xlu0 %v1465
      %v1467 = vpop.xlane.xlu0 %1466
      %v1468 = vsel %vm964, %v1459, -inf
      %1469 = vmax.xlane.f32.xlu0 %v1468
      %v1470 = vpop.xlane.xlu0 %1469
      %v1471 = vsub.f32 %v1303, %v1464
      %v1472 = vsub.f32 %v1381, %v1467
      %v1473 = vsub.f32 %v1459, %v1470
      %v1474 = vmul.f32 %v1471, 1.442695
      %v1475 = vpow.pop %v1474
      %v1476 = vmul.f32 %v1472, 1.442695
      %v1477 = vpow.pop %v1476
      %v1478 = vmul.f32 %v1473, 1.442695
      %v1479 = vpow.pop %v1478
      %v1480 = vsel %vm964, %v1475, 0.0
      %1481 = vadd.xlane.f32.xlu0 %v1480
      %v1482 = vpop.xlane.xlu0 %1481
      %v1483 = vsel %vm964, %v1477, 0.0
      %1484 = vadd.xlane.f32.xlu0 %v1483
      %v1485 = vpop.xlane.xlu0 %1484
      %v1486 = vsel %vm964, %v1479, 0.0
      %1487 = vadd.xlane.f32.xlu0 %v1486
      %v1488 = vpop.xlane.xlu0 %1487
      %v1489 = vrcp.pop %v1482
      %v1490 = vrcp.pop %v1485
      %v1491 = vrcp.pop %v1488
      %v1492 = vmul.f32 %v1475, %v1489
      %v1493 = vmul.f32 %v1477, %v1490
      %v1494 = vmul.f32 %v1479, %v1491
      %1495 = vrot.lane.b32.xlu0 %v713, 48
      %v1496 = vpop.permute.xlu0 %1495
      %v1499 = vsel %vm964, %v1492, 0
      %1501 = vmatprep.subr.mxu0 0.0
      %1502 = vmatpush1.msra.mxu0 %v1496
      %1503 = vmatprep.subr.mxu0 0.0
      %1504 = vmatpush1.msra.mxu0 0.0
      %1505 = vmatprep.subr.mxu0 0.0
      %1506 = vmatpush1.msra.mxu0 0.0
      %1507 = vmatprep.subr.mxu0 0.0
      %1508 = vmatpush1.msra.mxu0 0.0
      %1509 = vmatprep.subr.mxu0 0.0
      %1510 = vmatpush1.msra.mxu0 0.0
      %1511 = vmatprep.subr.mxu0 0.0
      %1512 = vmatpush1.msra.mxu0 0.0
      %1513 = vmatprep.subr.mxu0 0.0
      %1514 = vmatpush1.msra.mxu0 0.0
      %1515 = vmatprep.subr.mxu0 0.0
      %1516 = vmatpush1.msra.mxu0 0.0
      %1517 = vmatprep.subr.mxu0 0.0
      %1518 = vmatpush1.msra.mxu0 0.0
      %1519 = vmatprep.subr.mxu0 0.0
      %1520 = vmatpush1.msra.mxu0 0.0
      %1521 = vmatprep.subr.mxu0 0.0
      %1522 = vmatpush1.msra.mxu0 0.0
      %1523 = vmatprep.subr.mxu0 0.0
      %1524 = vmatpush1.msra.mxu0 0.0
      %1525 = vmatprep.subr.mxu0 0.0
      %1526 = vmatpush1.msra.mxu0 0.0
      %1527 = vmatprep.subr.mxu0 0.0
      %1528 = vmatpush1.msra.mxu0 0.0
      %1529 = vmatprep.subr.mxu0 0.0
      %1530 = vmatpush1.msra.mxu0 0.0
      %1531 = vmatprep.subr.mxu0 0.0
      %1532 = vmatpush1.msra.mxu0 0.0
      %1533 = vmatprep.subr.mxu0 0.0
      %1534 = vmatpush1.msra.mxu0 0.0
      %1535 = vmatprep.subr.mxu0 0.0
      %1536 = vmatpush1.msra.mxu0 0.0
      %1537 = vmatprep.subr.mxu0 0.0
      %1538 = vmatpush1.msra.mxu0 0.0
      %1539 = vmatprep.subr.mxu0 0.0
      %1540 = vmatpush1.msra.mxu0 0.0
      %1541 = vmatprep.subr.mxu0 0.0
      %1542 = vmatpush1.msra.mxu0 0.0
      %1543 = vmatprep.subr.mxu0 0.0
      %1544 = vmatpush1.msra.mxu0 0.0
      %1545 = vmatprep.subr.mxu0 0.0
      %1546 = vmatpush1.msra.mxu0 0.0
      %1547 = vmatprep.subr.mxu0 0.0
      %1548 = vmatpush1.msra.mxu0 0.0
      %1549 = vmatprep.subr.mxu0 0.0
      %1550 = vmatpush1.msra.mxu0 0.0
      %1551 = vmatprep.subr.mxu0 0.0
      %1552 = vmatpush1.msra.mxu0 0.0
      %1553 = vmatprep.subr.mxu0 0.0
      %1554 = vmatpush1.msra.mxu0 0.0
      %1555 = vmatprep.subr.mxu0 0.0
      %1556 = vmatpush1.msra.mxu0 0.0
      %1557 = vmatprep.subr.mxu0 0.0
      %1558 = vmatpush1.msra.mxu0 0.0
      %1559 = vmatprep.subr.mxu0 0.0
      %1560 = vmatpush1.msra.mxu0 0.0
      %1561 = vmatprep.subr.mxu0 0.0
      %1562 = vmatpush1.msra.mxu0 0.0
      %1563 = vmatprep.subr.mxu0 0.0
      %1564 = vmatpush1.msra.mxu0 0.0
      %1565 = vmatprep.mubr.f32.mxu0 0.0
      %1566 = vmatmul.mubr.f32.gmra.mrb[0].mxu0 %v1499
      %v1567 = vpop.f32.mrb[0].mxu0
      %v1568 = vadd.f32 0.0, %v1567
      %v1569 = vpop.f32.mrb[0].mxu0
      %1570 = vdwg.mxu0
      %1571 = vrot.lane.b32.xlu0 %v718, 48
      %v1572 = vpop.permute.xlu0 %1571
      %v1575 = vsel %vm964, %v1493, 0
      %1577 = vmatprep.subr.mxu0 0.0
      %1578 = vmatpush1.msra.mxu0 %v1572
      %1579 = vmatprep.subr.mxu0 0.0
      %1580 = vmatpush1.msra.mxu0 0.0
      %1581 = vmatprep.subr.mxu0 0.0
      %1582 = vmatpush1.msra.mxu0 0.0
      %1583 = vmatprep.subr.mxu0 0.0
      %1584 = vmatpush1.msra.mxu0 0.0
      %1585 = vmatprep.subr.mxu0 0.0
      %1586 = vmatpush1.msra.mxu0 0.0
      %1587 = vmatprep.subr.mxu0 0.0
      %1588 = vmatpush1.msra.mxu0 0.0
      %1589 = vmatprep.subr.mxu0 0.0
      %1590 = vmatpush1.msra.mxu0 0.0
      %1591 = vmatprep.subr.mxu0 0.0
      %1592 = vmatpush1.msra.mxu0 0.0
      %1593 = vmatprep.subr.mxu0 0.0
      %1594 = vmatpush1.msra.mxu0 0.0
      %1595 = vmatprep.subr.mxu0 0.0
      %1596 = vmatpush1.msra.mxu0 0.0
      %1597 = vmatprep.subr.mxu0 0.0
      %1598 = vmatpush1.msra.mxu0 0.0
      %1599 = vmatprep.subr.mxu0 0.0
      %1600 = vmatpush1.msra.mxu0 0.0
      %1601 = vmatprep.subr.mxu0 0.0
      %1602 = vmatpush1.msra.mxu0 0.0
      %1603 = vmatprep.subr.mxu0 0.0
      %1604 = vmatpush1.msra.mxu0 0.0
      %1605 = vmatprep.subr.mxu0 0.0
      %1606 = vmatpush1.msra.mxu0 0.0
      %1607 = vmatprep.subr.mxu0 0.0
      %1608 = vmatpush1.msra.mxu0 0.0
      %1609 = vmatprep.subr.mxu0 0.0
      %1610 = vmatpush1.msra.mxu0 0.0
      %1611 = vmatprep.subr.mxu0 0.0
      %1612 = vmatpush1.msra.mxu0 0.0
      %1613 = vmatprep.subr.mxu0 0.0
      %1614 = vmatpush1.msra.mxu0 0.0
      %1615 = vmatprep.subr.mxu0 0.0
      %1616 = vmatpush1.msra.mxu0 0.0
      %1617 = vmatprep.subr.mxu0 0.0
      %1618 = vmatpush1.msra.mxu0 0.0
      %1619 = vmatprep.subr.mxu0 0.0
      %1620 = vmatpush1.msra.mxu0 0.0
      %1621 = vmatprep.subr.mxu0 0.0
      %1622 = vmatpush1.msra.mxu0 0.0
      %1623 = vmatprep.subr.mxu0 0.0
      %1624 = vmatpush1.msra.mxu0 0.0
      %1625 = vmatprep.subr.mxu0 0.0
      %1626 = vmatpush1.msra.mxu0 0.0
      %1627 = vmatprep.subr.mxu0 0.0
      %1628 = vmatpush1.msra.mxu0 0.0
      %1629 = vmatprep.subr.mxu0 0.0
      %1630 = vmatpush1.msra.mxu0 0.0
      %1631 = vmatprep.subr.mxu0 0.0
      %1632 = vmatpush1.msra.mxu0 0.0
      %1633 = vmatprep.subr.mxu0 0.0
      %1634 = vmatpush1.msra.mxu0 0.0
      %1635 = vmatprep.subr.mxu0 0.0
      %1636 = vmatpush1.msra.mxu0 0.0
      %1637 = vmatprep.subr.mxu0 0.0
      %1638 = vmatpush1.msra.mxu0 0.0
      %1639 = vmatprep.subr.mxu0 0.0
      %1640 = vmatpush1.msra.mxu0 0.0
      %1641 = vmatprep.mubr.f32.mxu0 0.0
      %1642 = vmatmul.mubr.f32.gmra.mrb[0].mxu0 %v1575
      %v1643 = vpop.f32.mrb[0].mxu0
      %v1644 = vadd.f32 0.0, %v1643
      %v1645 = vpop.f32.mrb[0].mxu0
      %1646 = vdwg.mxu0
      %1647 = vrot.lane.b32.xlu0 %v723, 48
      %v1648 = vpop.permute.xlu0 %1647
      %v1651 = vsel %vm964, %v1494, 0
      %1653 = vmatprep.subr.mxu0 0.0
      %1654 = vmatpush1.msra.mxu0 %v1648
      %1655 = vmatprep.subr.mxu0 0.0
      %1656 = vmatpush1.msra.mxu0 0.0
      %1657 = vmatprep.subr.mxu0 0.0
      %1658 = vmatpush1.msra.mxu0 0.0
      %1659 = vmatprep.subr.mxu0 0.0
      %1660 = vmatpush1.msra.mxu0 0.0
      %1661 = vmatprep.subr.mxu0 0.0
      %1662 = vmatpush1.msra.mxu0 0.0
      %1663 = vmatprep.subr.mxu0 0.0
      %1664 = vmatpush1.msra.mxu0 0.0
      %1665 = vmatprep.subr.mxu0 0.0
      %1666 = vmatpush1.msra.mxu0 0.0
      %1667 = vmatprep.subr.mxu0 0.0
      %1668 = vmatpush1.msra.mxu0 0.0
      %1669 = vmatprep.subr.mxu0 0.0
      %1670 = vmatpush1.msra.mxu0 0.0
      %1671 = vmatprep.subr.mxu0 0.0
      %1672 = vmatpush1.msra.mxu0 0.0
      %1673 = vmatprep.subr.mxu0 0.0
      %1674 = vmatpush1.msra.mxu0 0.0
      %1675 = vmatprep.subr.mxu0 0.0
      %1676 = vmatpush1.msra.mxu0 0.0
      %1677 = vmatprep.subr.mxu0 0.0
      %1678 = vmatpush1.msra.mxu0 0.0
      %1679 = vmatprep.subr.mxu0 0.0
      %1680 = vmatpush1.msra.mxu0 0.0
      %1681 = vmatprep.subr.mxu0 0.0
      %1682 = vmatpush1.msra.mxu0 0.0
      %1683 = vmatprep.subr.mxu0 0.0
      %1684 = vmatpush1.msra.mxu0 0.0
      %1685 = vmatprep.subr.mxu0 0.0
      %1686 = vmatpush1.msra.mxu0 0.0
      %1687 = vmatprep.subr.mxu0 0.0
      %1688 = vmatpush1.msra.mxu0 0.0
      %1689 = vmatprep.subr.mxu0 0.0
      %1690 = vmatpush1.msra.mxu0 0.0
      %1691 = vmatprep.subr.mxu0 0.0
      %1692 = vmatpush1.msra.mxu0 0.0
      %1693 = vmatprep.subr.mxu0 0.0
      %1694 = vmatpush1.msra.mxu0 0.0
      %1695 = vmatprep.subr.mxu0 0.0
      %1696 = vmatpush1.msra.mxu0 0.0
      %1697 = vmatprep.subr.mxu0 0.0
      %1698 = vmatpush1.msra.mxu0 0.0
      %1699 = vmatprep.subr.mxu0 0.0
      %1700 = vmatpush1.msra.mxu0 0.0
      %1701 = vmatprep.subr.mxu0 0.0
      %1702 = vmatpush1.msra.mxu0 0.0
      %1703 = vmatprep.subr.mxu0 0.0
      %1704 = vmatpush1.msra.mxu0 0.0
      %1705 = vmatprep.subr.mxu0 0.0
      %1706 = vmatpush1.msra.mxu0 0.0
      %1707 = vmatprep.subr.mxu0 0.0
      %1708 = vmatpush1.msra.mxu0 0.0
      %1709 = vmatprep.subr.mxu0 0.0
      %1710 = vmatpush1.msra.mxu0 0.0
      %1711 = vmatprep.subr.mxu0 0.0
      %1712 = vmatpush1.msra.mxu0 0.0
      %1713 = vmatprep.subr.mxu0 0.0
      %1714 = vmatpush1.msra.mxu0 0.0
      %1715 = vmatprep.subr.mxu0 0.0
      %1716 = vmatpush1.msra.mxu0 0.0
      %1717 = vmatprep.mubr.f32.mxu0 0.0
      %1718 = vmatmul.mubr.f32.gmra.mrb[0].mxu0 %v1651
      %v1719 = vpop.f32.mrb[0].mxu0
      %v1720 = vadd.f32 0.0, %v1719
      %v1721 = vpop.f32.mrb[0].mxu0
      %1722 = vdwg.mxu0
      %s1723 = scalar_lea.vmem %s6, 16
      %v1724 = vld [vmem:[%s1723] sm:$0xff]
      %v1725 = vld [vmem:[%s1723 + $0x8] sm:$0xff]
      %v1727 = vsel %vm732, %v1568, 0
      %v1730 = vsel %vm732, %v1644, 0
      %v1733 = vsel %vm732, %v1720, 0
      %1735 = vmatprep.subr.mxu0 0.0
      %1736 = vmatpush1.msra.mxu0 %v1724
      %1737 = vmatprep.subr.mxu0 0.0
      %1738 = vmatpush1.msra.mxu0 %v1725
      %1739 = vmatprep.subr.mxu0 0.0
      %1740 = vmatpush1.msra.mxu0 0.0
      %1741 = vmatprep.subr.mxu0 0.0
      %1742 = vmatpush1.msra.mxu0 0.0
      %1743 = vmatprep.subr.mxu0 0.0
      %1744 = vmatpush1.msra.mxu0 0.0
      %1745 = vmatprep.subr.mxu0 0.0
      %1746 = vmatpush1.msra.mxu0 0.0
      %1747 = vmatprep.subr.mxu0 0.0
      %1748 = vmatpush1.msra.mxu0 0.0
      %1749 = vmatprep.subr.mxu0 0.0
      %1750 = vmatpush1.msra.mxu0 0.0
      %1751 = vmatprep.subr.mxu0 0.0
      %1752 = vmatpush1.msra.mxu0 0.0
      %1753 = vmatprep.subr.mxu0 0.0
      %1754 = vmatpush1.msra.mxu0 0.0
      %1755 = vmatprep.subr.mxu0 0.0
      %1756 = vmatpush1.msra.mxu0 0.0
      %1757 = vmatprep.subr.mxu0 0.0
      %1758 = vmatpush1.msra.mxu0 0.0
      %1759 = vmatprep.subr.mxu0 0.0
      %1760 = vmatpush1.msra.mxu0 0.0
      %1761 = vmatprep.subr.mxu0 0.0
      %1762 = vmatpush1.msra.mxu0 0.0
      %1763 = vmatprep.subr.mxu0 0.0
      %1764 = vmatpush1.msra.mxu0 0.0
      %1765 = vmatprep.subr.mxu0 0.0
      %1766 = vmatpush1.msra.mxu0 0.0
      %1767 = vmatprep.subr.mxu0 0.0
      %1768 = vmatpush1.msra.mxu0 0.0
      %1769 = vmatprep.subr.mxu0 0.0
      %1770 = vmatpush1.msra.mxu0 0.0
      %1771 = vmatprep.subr.mxu0 0.0
      %1772 = vmatpush1.msra.mxu0 0.0
      %1773 = vmatprep.subr.mxu0 0.0
      %1774 = vmatpush1.msra.mxu0 0.0
      %1775 = vmatprep.subr.mxu0 0.0
      %1776 = vmatpush1.msra.mxu0 0.0
      %1777 = vmatprep.subr.mxu0 0.0
      %1778 = vmatpush1.msra.mxu0 0.0
      %1779 = vmatprep.subr.mxu0 0.0
      %1780 = vmatpush1.msra.mxu0 0.0
      %1781 = vmatprep.subr.mxu0 0.0
      %1782 = vmatpush1.msra.mxu0 0.0
      %1783 = vmatprep.subr.mxu0 0.0
      %1784 = vmatpush1.msra.mxu0 0.0
      %1785 = vmatprep.subr.mxu0 0.0
      %1786 = vmatpush1.msra.mxu0 0.0
      %1787 = vmatprep.subr.mxu0 0.0
      %1788 = vmatpush1.msra.mxu0 0.0
      %1789 = vmatprep.subr.mxu0 0.0
      %1790 = vmatpush1.msra.mxu0 0.0
      %1791 = vmatprep.subr.mxu0 0.0
      %1792 = vmatpush1.msra.mxu0 0.0
      %1793 = vmatprep.subr.mxu0 0.0
      %1794 = vmatpush1.msra.mxu0 0.0
      %1795 = vmatprep.subr.mxu0 0.0
      %1796 = vmatpush1.msra.mxu0 0.0
      %1797 = vmatprep.subr.mxu0 0.0
      %1798 = vmatpush1.msra.mxu0 0.0
      %1799 = vmatprep.mubr.f32.mxu0 0.0
      %1800 = vmatmul.mubr.f32.gmra.mrb[0].mxu0 %v1727
      %v1801 = vpop.f32.mrb[0].mxu0
      %v1802 = vadd.f32 0.0, %v1801
      %v1803 = vpop.f32.mrb[0].mxu0
      %1804 = vmatprep.mubr.f32.mxu0 0.0
      %1805 = vmatmul.mubr.f32.gmra.mrb[0].mxu0 %v1730
      %v1806 = vpop.f32.mrb[0].mxu0
      %v1807 = vadd.f32 0.0, %v1806
      %v1808 = vpop.f32.mrb[0].mxu0
      %1809 = vmatprep.mubr.f32.mxu0 0.0
      %1810 = vmatmul.mubr.f32.gmra.mrb[0].mxu0 %v1733
      %v1811 = vpop.f32.mrb[0].mxu0
      %v1812 = vadd.f32 0.0, %v1811
      %v1813 = vpop.f32.mrb[0].mxu0
      %1814 = vdwg.mxu0
      %v1816 = vsel %vm732, %v1071, 0
      %v1819 = vsel %vm732, %v1147, 0
      %v1822 = vsel %vm732, %v1223, 0
      %1824 = vmatprep.subr.mxu0 0.0
      %1825 = vmatpush1.msra.mxu0 %v1226
      %1826 = vmatprep.subr.mxu0 0.0
      %1827 = vmatpush1.msra.mxu0 %v1227
      %1828 = vmatprep.subr.mxu0 0.0
      %1829 = vmatpush1.msra.mxu0 0.0
      %1830 = vmatprep.subr.mxu0 0.0
      %1831 = vmatpush1.msra.mxu0 0.0
      %1832 = vmatprep.subr.mxu0 0.0
      %1833 = vmatpush1.msra.mxu0 0.0
      %1834 = vmatprep.subr.mxu0 0.0
      %1835 = vmatpush1.msra.mxu0 0.0
      %1836 = vmatprep.subr.mxu0 0.0
      %1837 = vmatpush1.msra.mxu0 0.0
      %1838 = vmatprep.subr.mxu0 0.0
      %1839 = vmatpush1.msra.mxu0 0.0
      %1840 = vmatprep.subr.mxu0 0.0
      %1841 = vmatpush1.msra.mxu0 0.0
      %1842 = vmatprep.subr.mxu0 0.0
      %1843 = vmatpush1.msra.mxu0 0.0
      %1844 = vmatprep.subr.mxu0 0.0
      %1845 = vmatpush1.msra.mxu0 0.0
      %1846 = vmatprep.subr.mxu0 0.0
      %1847 = vmatpush1.msra.mxu0 0.0
      %1848 = vmatprep.subr.mxu0 0.0
      %1849 = vmatpush1.msra.mxu0 0.0
      %1850 = vmatprep.subr.mxu0 0.0
      %1851 = vmatpush1.msra.mxu0 0.0
      %1852 = vmatprep.subr.mxu0 0.0
      %1853 = vmatpush1.msra.mxu0 0.0
      %1854 = vmatprep.subr.mxu0 0.0
      %1855 = vmatpush1.msra.mxu0 0.0
      %1856 = vmatprep.subr.mxu0 0.0
      %1857 = vmatpush1.msra.mxu0 0.0
      %1858 = vmatprep.subr.mxu0 0.0
      %1859 = vmatpush1.msra.mxu0 0.0
      %1860 = vmatprep.subr.mxu0 0.0
      %1861 = vmatpush1.msra.mxu0 0.0
      %1862 = vmatprep.subr.mxu0 0.0
      %1863 = vmatpush1.msra.mxu0 0.0
      %1864 = vmatprep.subr.mxu0 0.0
      %1865 = vmatpush1.msra.mxu0 0.0
      %1866 = vmatprep.subr.mxu0 0.0
      %1867 = vmatpush1.msra.mxu0 0.0
      %1868 = vmatprep.subr.mxu0 0.0
      %1869 = vmatpush1.msra.mxu0 0.0
      %1870 = vmatprep.subr.mxu0 0.0
      %1871 = vmatpush1.msra.mxu0 0.0
      %1872 = vmatprep.subr.mxu0 0.0
      %1873 = vmatpush1.msra.mxu0 0.0
      %1874 = vmatprep.subr.mxu0 0.0
      %1875 = vmatpush1.msra.mxu0 0.0
      %1876 = vmatprep.subr.mxu0 0.0
      %1877 = vmatpush1.msra.mxu0 0.0
      %1878 = vmatprep.subr.mxu0 0.0
      %1879 = vmatpush1.msra.mxu0 0.0
      %1880 = vmatprep.subr.mxu0 0.0
      %1881 = vmatpush1.msra.mxu0 0.0
      %1882 = vmatprep.subr.mxu0 0.0
      %1883 = vmatpush1.msra.mxu0 0.0
      %1884 = vmatprep.subr.mxu0 0.0
      %1885 = vmatpush1.msra.mxu0 0.0
      %1886 = vmatprep.subr.mxu0 0.0
      %1887 = vmatpush1.msra.mxu0 0.0
      %1888 = vmatprep.mubr.f32.mxu0 0.0
      %1889 = vmatmul.mubr.f32.gmra.mrb[0].mxu0 %v1816
      %v1890 = vpop.f32.mrb[0].mxu0
      %v1891 = vadd.f32 %v1802, %v1890
      %v1892 = vpop.f32.mrb[0].mxu0
      %1893 = vmatprep.mubr.f32.mxu0 0.0
      %1894 = vmatmul.mubr.f32.gmra.mrb[0].mxu0 %v1819
      %v1895 = vpop.f32.mrb[0].mxu0
      %v1896 = vadd.f32 %v1807, %v1895
      %v1897 = vpop.f32.mrb[0].mxu0
      %1898 = vmatprep.mubr.f32.mxu0 0.0
      %1899 = vmatmul.mubr.f32.gmra.mrb[0].mxu0 %v1822
      %v1900 = vpop.f32.mrb[0].mxu0
      %v1901 = vadd.f32 %v1812, %v1900
      %v1902 = vpop.f32.mrb[0].mxu0
      %1903 = vdwg.mxu0
      %v1904 = vld [vmem:[%s7] sm:$0x1]
      %v1906 = vlaneseq
      %v1907 = vshrl.u32 %v1906, 7
      %v1908 = vsub.s32 0, %v1907
      %v1909 = vrot.slane %v1904, %v1908
      %v1911 = vadd.f32 %v1891, %v1909
      %v1912 = vadd.f32 %v1896, %v1909
      %v1913 = vadd.f32 %v1901, %v1909
      %v1914 = vadd.f32 %v602, %v1911
      %v1915 = vadd.f32 %v603, %v1912
      %v1916 = vadd.f32 %v604, %v1913
      %v1917 = vld [vmem:[%s8] sm:$0x1]
      %v1918 = vld [vmem:[%s9] sm:$0x1]
      %v1919 = vsel %vm546, %v1914, 0.0
      %1920 = vadd.xlane.f32.xlu0 %v1919
      %v1921 = vpop.xlane.xlu0 %1920
      %v1922 = vsel %vm546, %v1915, 0.0
      %1923 = vadd.xlane.f32.xlu0 %v1922
      %v1924 = vpop.xlane.xlu0 %1923
      %v1925 = vsel %vm546, %v1916, 0.0
      %1926 = vadd.xlane.f32.xlu0 %v1925
      %v1927 = vpop.xlane.xlu0 %1926
      %v1928 = vmul.f32 %v1921, %v556
      %v1929 = vmul.f32 %v1924, %v556
      %v1930 = vmul.f32 %v1927, %v556
      %v1931 = vsub.f32 %v1914, %v1928
      %v1932 = vsub.f32 %v1915, %v1929
      %v1933 = vsub.f32 %v1916, %v1930
      %v1934 = vmul.f32 %v1931, %v1931
      %v1935 = vmul.f32 %v1932, %v1932
      %v1936 = vmul.f32 %v1933, %v1933
      %v1937 = vsel %vm546, %v1934, 0.0
      %1938 = vadd.xlane.f32.xlu0 %v1937
      %v1939 = vpop.xlane.xlu0 %1938
      %v1940 = vsel %vm546, %v1935, 0.0
      %1941 = vadd.xlane.f32.xlu0 %v1940
      %v1942 = vpop.xlane.xlu0 %1941
      %v1943 = vsel %vm546, %v1936, 0.0
      %1944 = vadd.xlane.f32.xlu0 %v1943
      %v1945 = vpop.xlane.xlu0 %1944
      %v1946 = vmul.f32 %v1939, %v556
      %v1947 = vmul.f32 %v1942, %v556
      %v1948 = vmul.f32 %v1945, %v556
      %v1949 = vadd.f32 %v1946, 1e-12
      %v1950 = vadd.f32 %v1947, 1e-12
      %v1951 = vadd.f32 %v1948, 1e-12
      %v1952 = vrsqrt.pop %v1949
      %v1953 = vrsqrt.pop %v1950
      %v1954 = vrsqrt.pop %v1951
      %v1955 = vmul.f32 %v1931, %v1952
      %v1956 = vmul.f32 %v1932, %v1953
      %v1957 = vmul.f32 %v1933, %v1954
      %v1959 = vlaneseq
      %v1960 = vshrl.u32 %v1959, 7
      %v1961 = vsub.s32 0, %v1960
      %v1962 = vrot.slane %v1917, %v1961
      %v1964 = vmul.f32 %v1955, %v1962
      %v1965 = vmul.f32 %v1956, %v1962
      %v1966 = vmul.f32 %v1957, %v1962
      %v1968 = vlaneseq
      %v1969 = vshrl.u32 %v1968, 7
      %v1970 = vsub.s32 0, %v1969
      %v1971 = vrot.slane %v1918, %v1970
      %v1973 = vadd.f32 %v1964, %v1971
      %v1974 = vadd.f32 %v1965, %v1971
      %v1975 = vadd.f32 %v1966, %v1971
      %v1976 = vld [vmem:[%s10] sm:$0xff]
      %v1977 = vld [vmem:[%s10 + $0x8] sm:$0xff]
      %v1978 = vld [vmem:[%s10 + $0x10] sm:$0xff]
      %v1979 = vld [vmem:[%s10 + $0x18] sm:$0xff]
      %v1980 = vld [vmem:[%s11] sm:$0x1]
      %v1982 = vlaneseq
      %v1983 = vshrl.u32 %v1982, 7
      %v1984 = vsub.s32 0, %v1983
      %v1985 = vrot.slane %v1980, %v1984
      %v1988 = vsel %vm546, %v1973, 0
      %v1991 = vsel %vm546, %v1974, 0
      %v1994 = vsel %vm546, %v1975, 0
      %1996 = vmatprep.subr.mxu0 0.0
      %1997 = vmatpush1.msra.mxu0 %v1976
      %1998 = vmatprep.subr.mxu0 0.0
      %1999 = vmatpush1.msra.mxu0 %v1977
      %2000 = vmatprep.subr.mxu0 0.0
      %2001 = vmatpush1.msra.mxu0 %v1978
      %2002 = vmatprep.subr.mxu0 0.0
      %2003 = vmatpush1.msra.mxu0 %v1979
      %2004 = vmatprep.subr.mxu0 0.0
      %2005 = vmatpush1.msra.mxu0 0.0
      %2006 = vmatprep.subr.mxu0 0.0
      %2007 = vmatpush1.msra.mxu0 0.0
      %2008 = vmatprep.subr.mxu0 0.0
      %2009 = vmatpush1.msra.mxu0 0.0
      %2010 = vmatprep.subr.mxu0 0.0
      %2011 = vmatpush1.msra.mxu0 0.0
      %2012 = vmatprep.subr.mxu0 0.0
      %2013 = vmatpush1.msra.mxu0 0.0
      %2014 = vmatprep.subr.mxu0 0.0
      %2015 = vmatpush1.msra.mxu0 0.0
      %2016 = vmatprep.subr.mxu0 0.0
      %2017 = vmatpush1.msra.mxu0 0.0
      %2018 = vmatprep.subr.mxu0 0.0
      %2019 = vmatpush1.msra.mxu0 0.0
      %2020 = vmatprep.subr.mxu0 0.0
      %2021 = vmatpush1.msra.mxu0 0.0
      %2022 = vmatprep.subr.mxu0 0.0
      %2023 = vmatpush1.msra.mxu0 0.0
      %2024 = vmatprep.subr.mxu0 0.0
      %2025 = vmatpush1.msra.mxu0 0.0
      %2026 = vmatprep.subr.mxu0 0.0
      %2027 = vmatpush1.msra.mxu0 0.0
      %2028 = vmatprep.subr.mxu0 0.0
      %2029 = vmatpush1.msra.mxu0 0.0
      %2030 = vmatprep.subr.mxu0 0.0
      %2031 = vmatpush1.msra.mxu0 0.0
      %2032 = vmatprep.subr.mxu0 0.0
      %2033 = vmatpush1.msra.mxu0 0.0
      %2034 = vmatprep.subr.mxu0 0.0
      %2035 = vmatpush1.msra.mxu0 0.0
      %2036 = vmatprep.subr.mxu0 0.0
      %2037 = vmatpush1.msra.mxu0 0.0
      %2038 = vmatprep.subr.mxu0 0.0
      %2039 = vmatpush1.msra.mxu0 0.0
      %2040 = vmatprep.subr.mxu0 0.0
      %2041 = vmatpush1.msra.mxu0 0.0
      %2042 = vmatprep.subr.mxu0 0.0
      %2043 = vmatpush1.msra.mxu0 0.0
      %2044 = vmatprep.subr.mxu0 0.0
      %2045 = vmatpush1.msra.mxu0 0.0
      %2046 = vmatprep.subr.mxu0 0.0
      %2047 = vmatpush1.msra.mxu0 0.0
      %2048 = vmatprep.subr.mxu0 0.0
      %2049 = vmatpush1.msra.mxu0 0.0
      %2050 = vmatprep.subr.mxu0 0.0
      %2051 = vmatpush1.msra.mxu0 0.0
      %2052 = vmatprep.subr.mxu0 0.0
      %2053 = vmatpush1.msra.mxu0 0.0
      %2054 = vmatprep.subr.mxu0 0.0
      %2055 = vmatpush1.msra.mxu0 0.0
      %2056 = vmatprep.subr.mxu0 0.0
      %2057 = vmatpush1.msra.mxu0 0.0
      %2058 = vmatprep.subr.mxu0 0.0
      %2059 = vmatpush1.msra.mxu0 0.0
      %2060 = vmatprep.mubr.f32.mxu0 0.0
      %2061 = vmatmul.mubr.f32.gmra.mrb[0].mxu0 %v1988
      %v2062 = vpop.f32.mrb[0].mxu0
      %v2063 = vadd.f32 %v1985, %v2062
      %v2064 = vpop.f32.mrb[0].mxu0
      %2065 = vmatprep.mubr.f32.mxu0 0.0
      %2066 = vmatmul.mubr.f32.gmra.mrb[0].mxu0 %v1991
      %v2067 = vpop.f32.mrb[0].mxu0
      %v2068 = vadd.f32 %v1985, %v2067
      %v2069 = vpop.f32.mrb[0].mxu0
      %2070 = vmatprep.mubr.f32.mxu0 0.0
      %2071 = vmatmul.mubr.f32.gmra.mrb[0].mxu0 %v1994
      %v2072 = vpop.f32.mrb[0].mxu0
      %v2073 = vadd.f32 %v1985, %v2072
      %v2074 = vpop.f32.mrb[0].mxu0
      %2075 = vdwg.mxu0
      %v2076 = vmul.f32 %v2063, 0.5
      %v2077 = vmul.f32 %v2068, 0.5
      %v2078 = vmul.f32 %v2073, 0.5
      %v2079 = vmul.f32 %v2063, 0.044715
      %v2080 = vmul.f32 %v2068, 0.044715
      %v2081 = vmul.f32 %v2073, 0.044715
      %v2082 = vmul.f32 %v2079, %v2063
      %v2083 = vmul.f32 %v2080, %v2068
      %v2084 = vmul.f32 %v2081, %v2073
      %v2085 = vmul.f32 %v2082, %v2063
      %v2086 = vmul.f32 %v2083, %v2068
      %v2087 = vmul.f32 %v2084, %v2073
      %v2088 = vadd.f32 %v2063, %v2085
      %v2089 = vadd.f32 %v2068, %v2086
      %v2090 = vadd.f32 %v2073, %v2087
      %v2091 = vmul.f32 %v2088, 0.7978846
      %v2092 = vmul.f32 %v2089, 0.7978846
      %v2093 = vmul.f32 %v2090, 0.7978846
      %v2094 = vtanh.pop %v2091
      %v2095 = vtanh.pop %v2092
      %v2096 = vtanh.pop %v2093
      %v2097 = vadd.f32 %v2094, 1.0
      %v2098 = vadd.f32 %v2095, 1.0
      %v2099 = vadd.f32 %v2096, 1.0
      %v2100 = vmul.f32 %v2076, %v2097
      %v2101 = vmul.f32 %v2077, %v2098
      %v2102 = vmul.f32 %v2078, %v2099
      %v2103 = vld [vmem:[%s12] sm:$0xff]
      %v2104 = vld [vmem:[%s12 + $0x8] sm:$0xff]
      %v2105 = vld [vmem:[%s12 + $0x10] sm:$0xff]
      %v2106 = vld [vmem:[%s12 + $0x18] sm:$0xff]
      %v2107 = vld [vmem:[%s12 + $0x20] sm:$0xff]
      %v2108 = vld [vmem:[%s12 + $0x28] sm:$0xff]
      %v2109 = vld [vmem:[%s12 + $0x30] sm:$0xff]
      %v2110 = vld [vmem:[%s12 + $0x38] sm:$0xff]
      %v2111 = vld [vmem:[%s13] sm:$0x1]
      %v2113 = vlaneseq
      %v2114 = vshrl.u32 %v2113, 7
      %v2115 = vsub.s32 0, %v2114
      %v2116 = vrot.slane %v2111, %v2115
      %vm2118 = vcmask 523264
      %v2120 = vsel %vm2118, %v2100, 0
      %v2123 = vsel %vm2118, %v2101, 0
      %v2126 = vsel %vm2118, %v2102, 0
      %2128 = vmatprep.subr.mxu0 0.0
      %2129 = vmatpush1.msra.mxu0 %v2103
      %2130 = vmatprep.subr.mxu0 0.0
      %2131 = vmatpush1.msra.mxu0 %v2104
      %2132 = vmatprep.subr.mxu0 0.0
      %2133 = vmatpush1.msra.mxu0 %v2105
      %2134 = vmatprep.subr.mxu0 0.0
      %2135 = vmatpush1.msra.mxu0 %v2106
      %2136 = vmatprep.subr.mxu0 0.0
      %2137 = vmatpush1.msra.mxu0 %v2107
      %2138 = vmatprep.subr.mxu0 0.0
      %2139 = vmatpush1.msra.mxu0 %v2108
      %2140 = vmatprep.subr.mxu0 0.0
      %2141 = vmatpush1.msra.mxu0 %v2109
      %2142 = vmatprep.subr.mxu0 0.0
      %2143 = vmatpush1.msra.mxu0 %v2110
      %2144 = vmatprep.subr.mxu0 0.0
      %2145 = vmatpush1.msra.mxu0 0.0
      %2146 = vmatprep.subr.mxu0 0.0
      %2147 = vmatpush1.msra.mxu0 0.0
      %2148 = vmatprep.subr.mxu0 0.0
      %2149 = vmatpush1.msra.mxu0 0.0
      %2150 = vmatprep.subr.mxu0 0.0
      %2151 = vmatpush1.msra.mxu0 0.0
      %2152 = vmatprep.subr.mxu0 0.0
      %2153 = vmatpush1.msra.mxu0 0.0
      %2154 = vmatprep.subr.mxu0 0.0
      %2155 = vmatpush1.msra.mxu0 0.0
      %2156 = vmatprep.subr.mxu0 0.0
      %2157 = vmatpush1.msra.mxu0 0.0
      %2158 = vmatprep.subr.mxu0 0.0
      %2159 = vmatpush1.msra.mxu0 0.0
      %2160 = vmatprep.subr.mxu0 0.0
      %2161 = vmatpush1.msra.mxu0 0.0
      %2162 = vmatprep.subr.mxu0 0.0
      %2163 = vmatpush1.msra.mxu0 0.0
      %2164 = vmatprep.subr.mxu0 0.0
      %2165 = vmatpush1.msra.mxu0 0.0
      %2166 = vmatprep.subr.mxu0 0.0
      %2167 = vmatpush1.msra.mxu0 0.0
      %2168 = vmatprep.subr.mxu0 0.0
      %2169 = vmatpush1.msra.mxu0 0.0
      %2170 = vmatprep.subr.mxu0 0.0
      %2171 = vmatpush1.msra.mxu0 0.0
      %2172 = vmatprep.subr.mxu0 0.0
      %2173 = vmatpush1.msra.mxu0 0.0
      %2174 = vmatprep.subr.mxu0 0.0
      %2175 = vmatpush1.msra.mxu0 0.0
      %2176 = vmatprep.subr.mxu0 0.0
      %2177 = vmatpush1.msra.mxu0 0.0
      %2178 = vmatprep.subr.mxu0 0.0
      %2179 = vmatpush1.msra.mxu0 0.0
      %2180 = vmatprep.subr.mxu0 0.0
      %2181 = vmatpush1.msra.mxu0 0.0
      %2182 = vmatprep.subr.mxu0 0.0
      %2183 = vmatpush1.msra.mxu0 0.0
      %2184 = vmatprep.subr.mxu0 0.0
      %2185 = vmatpush1.msra.mxu0 0.0
      %2186 = vmatprep.subr.mxu0 0.0
      %2187 = vmatpush1.msra.mxu0 0.0
      %2188 = vmatprep.subr.mxu0 0.0
      %2189 = vmatpush1.msra.mxu0 0.0
      %2190 = vmatprep.subr.mxu0 0.0
      %2191 = vmatpush1.msra.mxu0 0.0
      %2192 = vmatprep.mubr.f32.mxu0 0.0
      %2193 = vmatmul.mubr.f32.gmra.mrb[0].mxu0 %v2120
      %v2194 = vpop.f32.mrb[0].mxu0
      %v2195 = vadd.f32 %v2116, %v2194
      %v2196 = vpop.f32.mrb[0].mxu0
      %2197 = vmatprep.mubr.f32.mxu0 0.0
      %2198 = vmatmul.mubr.f32.gmra.mrb[0].mxu0 %v2123
      %v2199 = vpop.f32.mrb[0].mxu0
      %v2200 = vadd.f32 %v2116, %v2199
      %v2201 = vpop.f32.mrb[0].mxu0
      %2202 = vmatprep.mubr.f32.mxu0 0.0
      %2203 = vmatmul.mubr.f32.gmra.mrb[0].mxu0 %v2126
      %v2204 = vpop.f32.mrb[0].mxu0
      %v2205 = vadd.f32 %v2116, %v2204
      %v2206 = vpop.f32.mrb[0].mxu0
      %2207 = vdwg.mxu0
      %v2208 = vadd.f32 %v1973, %v2195
      %v2209 = vadd.f32 %v1974, %v2200
      %v2210 = vadd.f32 %v1975, %v2205
      %v2211 = vld [vmem:[%s14] sm:$0x1]
      %v2212 = vld [vmem:[%s15] sm:$0x1]
      %v2213 = vsel %vm546, %v2208, 0.0
      %2214 = vadd.xlane.f32.xlu0 %v2213
      %v2215 = vpop.xlane.xlu0 %2214
      %v2216 = vsel %vm546, %v2209, 0.0
      %2217 = vadd.xlane.f32.xlu0 %v2216
      %v2218 = vpop.xlane.xlu0 %2217
      %v2219 = vsel %vm546, %v2210, 0.0
      %2220 = vadd.xlane.f32.xlu0 %v2219
      %v2221 = vpop.xlane.xlu0 %2220
      %v2222 = vmul.f32 %v2215, %v556
      %v2223 = vmul.f32 %v2218, %v556
      %v2224 = vmul.f32 %v2221, %v556
      %v2225 = vsub.f32 %v2208, %v2222
      %v2226 = vsub.f32 %v2209, %v2223
      %v2227 = vsub.f32 %v2210, %v2224
      %v2228 = vmul.f32 %v2225, %v2225
      %v2229 = vmul.f32 %v2226, %v2226
      %v2230 = vmul.f32 %v2227, %v2227
      %v2231 = vsel %vm546, %v2228, 0.0
      %2232 = vadd.xlane.f32.xlu0 %v2231
      %v2233 = vpop.xlane.xlu0 %2232
      %v2234 = vsel %vm546, %v2229, 0.0
      %2235 = vadd.xlane.f32.xlu0 %v2234
      %v2236 = vpop.xlane.xlu0 %2235
      %v2237 = vsel %vm546, %v2230, 0.0
      %2238 = vadd.xlane.f32.xlu0 %v2237
      %v2239 = vpop.xlane.xlu0 %2238
      %v2240 = vmul.f32 %v2233, %v556
      %v2241 = vmul.f32 %v2236, %v556
      %v2242 = vmul.f32 %v2239, %v556
      %v2243 = vadd.f32 %v2240, 1e-12
      %v2244 = vadd.f32 %v2241, 1e-12
      %v2245 = vadd.f32 %v2242, 1e-12
      %v2246 = vrsqrt.pop %v2243
      %v2247 = vrsqrt.pop %v2244
      %v2248 = vrsqrt.pop %v2245
      %v2249 = vmul.f32 %v2225, %v2246
      %v2250 = vmul.f32 %v2226, %v2247
      %v2251 = vmul.f32 %v2227, %v2248
      %v2253 = vlaneseq
      %v2254 = vshrl.u32 %v2253, 7
      %v2255 = vsub.s32 0, %v2254
      %v2256 = vrot.slane %v2211, %v2255
      %v2258 = vmul.f32 %v2249, %v2256
      %v2259 = vmul.f32 %v2250, %v2256
      %v2260 = vmul.f32 %v2251, %v2256
      %v2262 = vlaneseq
      %v2263 = vshrl.u32 %v2262, 7
      %v2264 = vsub.s32 0, %v2263
      %v2265 = vrot.slane %v2212, %v2264
      %v2267 = vadd.f32 %v2258, %v2265
      %v2268 = vadd.f32 %v2259, %v2265
      %v2269 = vadd.f32 %v2260, %v2265
      %s2270 = scalar_lea.vmem %s4, 32
      %v2271 = vld [vmem:[%s2270] sm:$0xff]
      %v2272 = vld [vmem:[%s2270 + $0x8] sm:$0xff]
      %v2273 = vld [vmem:[%s2270 + $0x10] sm:$0xff]
      %v2274 = vld [vmem:[%s2270 + $0x18] sm:$0xff]
      %s2275 = scalar_lea.vmem %s5, 1
      %v2276 = vld [vmem:[%s2275] sm:$0x1]
      %v2278 = vlaneseq
      %v2279 = vshrl.u32 %v2278, 7
      %v2280 = vsub.s32 0, %v2279
      %v2281 = vrot.slane %v2276, %v2280
      %v2284 = vsel %vm546, %v2267, 0
      %v2287 = vsel %vm546, %v2268, 0
      %v2290 = vsel %vm546, %v2269, 0
      %2292 = vmatprep.subr.mxu0 0.0
      %2293 = vmatpush1.msra.mxu0 %v2271
      %2294 = vmatprep.subr.mxu0 0.0
      %2295 = vmatpush1.msra.mxu0 %v2272
      %2296 = vmatprep.subr.mxu0 0.0
      %2297 = vmatpush1.msra.mxu0 %v2273
      %2298 = vmatprep.subr.mxu0 0.0
      %2299 = vmatpush1.msra.mxu0 %v2274
      %2300 = vmatprep.subr.mxu0 0.0
      %2301 = vmatpush1.msra.mxu0 0.0
      %2302 = vmatprep.subr.mxu0 0.0
      %2303 = vmatpush1.msra.mxu0 0.0
      %2304 = vmatprep.subr.mxu0 0.0
      %2305 = vmatpush1.msra.mxu0 0.0
      %2306 = vmatprep.subr.mxu0 0.0
      %2307 = vmatpush1.msra.mxu0 0.0
      %2308 = vmatprep.subr.mxu0 0.0
      %2309 = vmatpush1.msra.mxu0 0.0
      %2310 = vmatprep.subr.mxu0 0.0
      %2311 = vmatpush1.msra.mxu0 0.0
      %2312 = vmatprep.subr.mxu0 0.0
      %2313 = vmatpush1.msra.mxu0 0.0
      %2314 = vmatprep.subr.mxu0 0.0
      %2315 = vmatpush1.msra.mxu0 0.0
      %2316 = vmatprep.subr.mxu0 0.0
      %2317 = vmatpush1.msra.mxu0 0.0
      %2318 = vmatprep.subr.mxu0 0.0
      %2319 = vmatpush1.msra.mxu0 0.0
      %2320 = vmatprep.subr.mxu0 0.0
      %2321 = vmatpush1.msra.mxu0 0.0
      %2322 = vmatprep.subr.mxu0 0.0
      %2323 = vmatpush1.msra.mxu0 0.0
      %2324 = vmatprep.subr.mxu0 0.0
      %2325 = vmatpush1.msra.mxu0 0.0
      %2326 = vmatprep.subr.mxu0 0.0
      %2327 = vmatpush1.msra.mxu0 0.0
      %2328 = vmatprep.subr.mxu0 0.0
      %2329 = vmatpush1.msra.mxu0 0.0
      %2330 = vmatprep.subr.mxu0 0.0
      %2331 = vmatpush1.msra.mxu0 0.0
      %2332 = vmatprep.subr.mxu0 0.0
      %2333 = vmatpush1.msra.mxu0 0.0
      %2334 = vmatprep.subr.mxu0 0.0
      %2335 = vmatpush1.msra.mxu0 0.0
      %2336 = vmatprep.subr.mxu0 0.0
      %2337 = vmatpush1.msra.mxu0 0.0
      %2338 = vmatprep.subr.mxu0 0.0
      %2339 = vmatpush1.msra.mxu0 0.0
      %2340 = vmatprep.subr.mxu0 0.0
      %2341 = vmatpush1.msra.mxu0 0.0
      %2342 = vmatprep.subr.mxu0 0.0
      %2343 = vmatpush1.msra.mxu0 0.0
      %2344 = vmatprep.subr.mxu0 0.0
      %2345 = vmatpush1.msra.mxu0 0.0
      %2346 = vmatprep.subr.mxu0 0.0
      %2347 = vmatpush1.msra.mxu0 0.0
      %2348 = vmatprep.subr.mxu0 0.0
      %2349 = vmatpush1.msra.mxu0 0.0
      %2350 = vmatprep.subr.mxu0 0.0
      %2351 = vmatpush1.msra.mxu0 0.0
      %2352 = vmatprep.subr.mxu0 0.0
      %2353 = vmatpush1.msra.mxu0 0.0
      %2354 = vmatprep.subr.mxu0 0.0
      %2355 = vmatpush1.msra.mxu0 0.0
      %2356 = vmatprep.mubr.f32.mxu0 0.0
      %2357 = vmatmul.mubr.f32.gmra.mrb[0].mxu0 %v2284
      %v2358 = vpop.f32.mrb[0].mxu0
      %v2359 = vadd.f32 %v2281, %v2358
      %v2360 = vpop.f32.mrb[0].mxu0
      %2361 = vmatprep.mubr.f32.mxu0 0.0
      %2362 = vmatmul.mubr.f32.gmra.mrb[0].mxu0 %v2287
      %v2363 = vpop.f32.mrb[0].mxu0
      %v2364 = vadd.f32 %v2281, %v2363
      %v2365 = vpop.f32.mrb[0].mxu0
      %2366 = vmatprep.mubr.f32.mxu0 0.0
      %2367 = vmatmul.mubr.f32.gmra.mrb[0].mxu0 %v2290
      %v2368 = vpop.f32.mrb[0].mxu0
      %v2369 = vadd.f32 %v2281, %v2368
      %v2370 = vpop.f32.mrb[0].mxu0
      %2371 = vdwg.mxu0
      %v2372 = vmul.f32 %v2359, 0.25
      %v2373 = vmul.f32 %v2364, 0.25
      %v2374 = vmul.f32 %v2369, 0.25
      %2376 = vrot.lane.b32.xlu0 %v2359, 96
      %v2377 = vpop.permute.xlu0 %2376
      %v2379 = vsel %vm732, %v2372, 0
      %v2381 = vsel %vm732, %v2377, 0
      %2383 = vmatprep.subr.mxu0 0.0
      %2384 = vmatpush1.xpose.msra.mxu0 %v2381
      %2385 = vmatprep.subr.mxu0 0.0
      %2386 = vmatpush1.xpose.msra.mxu0 0.0
      %2387 = vmatprep.subr.mxu0 0.0
      %2388 = vmatpush1.xpose.msra.mxu0 0.0
      %2389 = vmatprep.subr.mxu0 0.0
      %2390 = vmatpush1.xpose.msra.mxu0 0.0
      %2391 = vmatprep.subr.mxu0 0.0
      %2392 = vmatpush1.xpose.msra.mxu0 0.0
      %2393 = vmatprep.subr.mxu0 0.0
      %2394 = vmatpush1.xpose.msra.mxu0 0.0
      %2395 = vmatprep.subr.mxu0 0.0
      %2396 = vmatpush1.xpose.msra.mxu0 0.0
      %2397 = vmatprep.subr.mxu0 0.0
      %2398 = vmatpush1.xpose.msra.mxu0 0.0
      %2399 = vmatprep.subr.mxu0 0.0
      %2400 = vmatpush1.xpose.msra.mxu0 0.0
      %2401 = vmatprep.subr.mxu0 0.0
      %2402 = vmatpush1.xpose.msra.mxu0 0.0
      %2403 = vmatprep.subr.mxu0 0.0
      %2404 = vmatpush1.xpose.msra.mxu0 0.0
      %2405 = vmatprep.subr.mxu0 0.0
      %2406 = vmatpush1.xpose.msra.mxu0 0.0
      %2407 = vmatprep.subr.mxu0 0.0
      %2408 = vmatpush1.xpose.msra.mxu0 0.0
      %2409 = vmatprep.subr.mxu0 0.0
      %2410 = vmatpush1.xpose.msra.mxu0 0.0
      %2411 = vmatprep.subr.mxu0 0.0
      %2412 = vmatpush1.xpose.msra.mxu0 0.0
      %2413 = vmatprep.subr.mxu0 0.0
      %2414 = vmatpush1.xpose.msra.mxu0 0.0
      %2415 = vmatprep.subr.mxu0 0.0
      %2416 = vmatpush1.xpose.msra.mxu0 0.0
      %2417 = vmatprep.subr.mxu0 0.0
      %2418 = vmatpush1.xpose.msra.mxu0 0.0
      %2419 = vmatprep.subr.mxu0 0.0
      %2420 = vmatpush1.xpose.msra.mxu0 0.0
      %2421 = vmatprep.subr.mxu0 0.0
      %2422 = vmatpush1.xpose.msra.mxu0 0.0
      %2423 = vmatprep.subr.mxu0 0.0
      %2424 = vmatpush1.xpose.msra.mxu0 0.0
      %2425 = vmatprep.subr.mxu0 0.0
      %2426 = vmatpush1.xpose.msra.mxu0 0.0
      %2427 = vmatprep.subr.mxu0 0.0
      %2428 = vmatpush1.xpose.msra.mxu0 0.0
      %2429 = vmatprep.subr.mxu0 0.0
      %2430 = vmatpush1.xpose.msra.mxu0 0.0
      %2431 = vmatprep.subr.mxu0 0.0
      %2432 = vmatpush1.xpose.msra.mxu0 0.0
      %2433 = vmatprep.subr.mxu0 0.0
      %2434 = vmatpush1.xpose.msra.mxu0 0.0
      %2435 = vmatprep.subr.mxu0 0.0
      %2436 = vmatpush1.xpose.msra.mxu0 0.0
      %2437 = vmatprep.subr.mxu0 0.0
      %2438 = vmatpush1.xpose.msra.mxu0 0.0
      %2439 = vmatprep.subr.mxu0 0.0
      %2440 = vmatpush1.xpose.msra.mxu0 0.0
      %2441 = vmatprep.subr.mxu0 0.0
      %2442 = vmatpush1.xpose.msra.mxu0 0.0
      %2443 = vmatprep.subr.mxu0 0.0
      %2444 = vmatpush1.xpose.msra.mxu0 0.0
      %2445 = vmatprep.subr.mxu0 0.0
      %2446 = vmatpush1.xpose.msra.mxu0 0.0
      %2447 = vmatprep.mubr.f32.mxu0 0.0
      %2448 = vmatmul.mubr.f32.gmra.mrb[0].mxu0 %v2379
      %v2449 = vpop.f32.mrb[0].mxu0
      %v2450 = vadd.f32 %v614, %v2449
      %v2451 = vpop.f32.mrb[0].mxu0
      %2452 = vdwg.mxu0
      %2454 = vrot.lane.b32.xlu0 %v2364, 96
      %v2455 = vpop.permute.xlu0 %2454
      %v2457 = vsel %vm732, %v2373, 0
      %v2459 = vsel %vm732, %v2455, 0
      %2461 = vmatprep.subr.mxu0 0.0
      %2462 = vmatpush1.xpose.msra.mxu0 %v2459
      %2463 = vmatprep.subr.mxu0 0.0
      %2464 = vmatpush1.xpose.msra.mxu0 0.0
      %2465 = vmatprep.subr.mxu0 0.0
      %2466 = vmatpush1.xpose.msra.mxu0 0.0
      %2467 = vmatprep.subr.mxu0 0.0
      %2468 = vmatpush1.xpose.msra.mxu0 0.0
      %2469 = vmatprep.subr.mxu0 0.0
      %2470 = vmatpush1.xpose.msra.mxu0 0.0
      %2471 = vmatprep.subr.mxu0 0.0
      %2472 = vmatpush1.xpose.msra.mxu0 0.0
      %2473 = vmatprep.subr.mxu0 0.0
      %2474 = vmatpush1.xpose.msra.mxu0 0.0
      %2475 = vmatprep.subr.mxu0 0.0
      %2476 = vmatpush1.xpose.msra.mxu0 0.0
      %2477 = vmatprep.subr.mxu0 0.0
      %2478 = vmatpush1.xpose.msra.mxu0 0.0
      %2479 = vmatprep.subr.mxu0 0.0
      %2480 = vmatpush1.xpose.msra.mxu0 0.0
      %2481 = vmatprep.subr.mxu0 0.0
      %2482 = vmatpush1.xpose.msra.mxu0 0.0
      %2483 = vmatprep.subr.mxu0 0.0
      %2484 = vmatpush1.xpose.msra.mxu0 0.0
      %2485 = vmatprep.subr.mxu0 0.0
      %2486 = vmatpush1.xpose.msra.mxu0 0.0
      %2487 = vmatprep.subr.mxu0 0.0
      %2488 = vmatpush1.xpose.msra.mxu0 0.0
      %2489 = vmatprep.subr.mxu0 0.0
      %2490 = vmatpush1.xpose.msra.mxu0 0.0
      %2491 = vmatprep.subr.mxu0 0.0
      %2492 = vmatpush1.xpose.msra.mxu0 0.0
      %2493 = vmatprep.subr.mxu0 0.0
      %2494 = vmatpush1.xpose.msra.mxu0 0.0
      %2495 = vmatprep.subr.mxu0 0.0
      %2496 = vmatpush1.xpose.msra.mxu0 0.0
      %2497 = vmatprep.subr.mxu0 0.0
      %2498 = vmatpush1.xpose.msra.mxu0 0.0
      %2499 = vmatprep.subr.mxu0 0.0
      %2500 = vmatpush1.xpose.msra.mxu0 0.0
      %2501 = vmatprep.subr.mxu0 0.0
      %2502 = vmatpush1.xpose.msra.mxu0 0.0
      %2503 = vmatprep.subr.mxu0 0.0
      %2504 = vmatpush1.xpose.msra.mxu0 0.0
      %2505 = vmatprep.subr.mxu0 0.0
      %2506 = vmatpush1.xpose.msra.mxu0 0.0
      %2507 = vmatprep.subr.mxu0 0.0
      %2508 = vmatpush1.xpose.msra.mxu0 0.0
      %2509 = vmatprep.subr.mxu0 0.0
      %2510 = vmatpush1.xpose.msra.mxu0 0.0
      %2511 = vmatprep.subr.mxu0 0.0
      %2512 = vmatpush1.xpose.msra.mxu0 0.0
      %2513 = vmatprep.subr.mxu0 0.0
      %2514 = vmatpush1.xpose.msra.mxu0 0.0
      %2515 = vmatprep.subr.mxu0 0.0
      %2516 = vmatpush1.xpose.msra.mxu0 0.0
      %2517 = vmatprep.subr.mxu0 0.0
      %2518 = vmatpush1.xpose.msra.mxu0 0.0
      %2519 = vmatprep.subr.mxu0 0.0
      %2520 = vmatpush1.xpose.msra.mxu0 0.0
      %2521 = vmatprep.subr.mxu0 0.0
      %2522 = vmatpush1.xpose.msra.mxu0 0.0
      %2523 = vmatprep.subr.mxu0 0.0
      %2524 = vmatpush1.xpose.msra.mxu0 0.0
      %2525 = vmatprep.mubr.f32.mxu0 0.0
      %2526 = vmatmul.mubr.f32.gmra.mrb[0].mxu0 %v2457
      %v2527 = vpop.f32.mrb[0].mxu0
      %v2528 = vadd.f32 %v618, %v2527
      %v2529 = vpop.f32.mrb[0].mxu0
      %2530 = vdwg.mxu0
      %2532 = vrot.lane.b32.xlu0 %v2369, 96
      %v2533 = vpop.permute.xlu0 %2532
      %v2535 = vsel %vm732, %v2374, 0
      %v2537 = vsel %vm732, %v2533, 0
      %2539 = vmatprep.subr.mxu0 0.0
      %2540 = vmatpush1.xpose.msra.mxu0 %v2537
      %2541 = vmatprep.subr.mxu0 0.0
      %2542 = vmatpush1.xpose.msra.mxu0 0.0
      %2543 = vmatprep.subr.mxu0 0.0
      %2544 = vmatpush1.xpose.msra.mxu0 0.0
      %2545 = vmatprep.subr.mxu0 0.0
      %2546 = vmatpush1.xpose.msra.mxu0 0.0
      %2547 = vmatprep.subr.mxu0 0.0
      %2548 = vmatpush1.xpose.msra.mxu0 0.0
      %2549 = vmatprep.subr.mxu0 0.0
      %2550 = vmatpush1.xpose.msra.mxu0 0.0
      %2551 = vmatprep.subr.mxu0 0.0
      %2552 = vmatpush1.xpose.msra.mxu0 0.0
      %2553 = vmatprep.subr.mxu0 0.0
      %2554 = vmatpush1.xpose.msra.mxu0 0.0
      %2555 = vmatprep.subr.mxu0 0.0
      %2556 = vmatpush1.xpose.msra.mxu0 0.0
      %2557 = vmatprep.subr.mxu0 0.0
      %2558 = vmatpush1.xpose.msra.mxu0 0.0
      %2559 = vmatprep.subr.mxu0 0.0
      %2560 = vmatpush1.xpose.msra.mxu0 0.0
      %2561 = vmatprep.subr.mxu0 0.0
      %2562 = vmatpush1.xpose.msra.mxu0 0.0
      %2563 = vmatprep.subr.mxu0 0.0
      %2564 = vmatpush1.xpose.msra.mxu0 0.0
      %2565 = vmatprep.subr.mxu0 0.0
      %2566 = vmatpush1.xpose.msra.mxu0 0.0
      %2567 = vmatprep.subr.mxu0 0.0
      %2568 = vmatpush1.xpose.msra.mxu0 0.0
      %2569 = vmatprep.subr.mxu0 0.0
      %2570 = vmatpush1.xpose.msra.mxu0 0.0
      %2571 = vmatprep.subr.mxu0 0.0
      %2572 = vmatpush1.xpose.msra.mxu0 0.0
      %2573 = vmatprep.subr.mxu0 0.0
      %2574 = vmatpush1.xpose.msra.mxu0 0.0
      %2575 = vmatprep.subr.mxu0 0.0
      %2576 = vmatpush1.xpose.msra.mxu0 0.0
      %2577 = vmatprep.subr.mxu0 0.0
      %2578 = vmatpush1.xpose.msra.mxu0 0.0
      %2579 = vmatprep.subr.mxu0 0.0
      %2580 = vmatpush1.xpose.msra.mxu0 0.0
      %2581 = vmatprep.subr.mxu0 0.0
      %2582 = vmatpush1.xpose.msra.mxu0 0.0
      %2583 = vmatprep.subr.mxu0 0.0
      %2584 = vmatpush1.xpose.msra.mxu0 0.0
      %2585 = vmatprep.subr.mxu0 0.0
      %2586 = vmatpush1.xpose.msra.mxu0 0.0
      %2587 = vmatprep.subr.mxu0 0.0
      %2588 = vmatpush1.xpose.msra.mxu0 0.0
      %2589 = vmatprep.subr.mxu0 0.0
      %2590 = vmatpush1.xpose.msra.mxu0 0.0
      %2591 = vmatprep.subr.mxu0 0.0
      %2592 = vmatpush1.xpose.msra.mxu0 0.0
      %2593 = vmatprep.subr.mxu0 0.0
      %2594 = vmatpush1.xpose.msra.mxu0 0.0
      %2595 = vmatprep.subr.mxu0 0.0
      %2596 = vmatpush1.xpose.msra.mxu0 0.0
      %2597 = vmatprep.subr.mxu0 0.0
      %2598 = vmatpush1.xpose.msra.mxu0 0.0
      %2599 = vmatprep.subr.mxu0 0.0
      %2600 = vmatpush1.xpose.msra.mxu0 0.0
      %2601 = vmatprep.subr.mxu0 0.0
      %2602 = vmatpush1.xpose.msra.mxu0 0.0
      %2603 = vmatprep.mubr.f32.mxu0 0.0
      %2604 = vmatmul.mubr.f32.gmra.mrb[0].mxu0 %v2535
      %v2605 = vpop.f32.mrb[0].mxu0
      %v2606 = vadd.f32 %v622, %v2605
      %v2607 = vpop.f32.mrb[0].mxu0
      %2608 = vdwg.mxu0
      %v2609 = vsel %vm964, %v2450, -inf
      %2610 = vmax.xlane.f32.xlu0 %v2609
      %v2611 = vpop.xlane.xlu0 %2610
      %v2612 = vsel %vm964, %v2528, -inf
      %2613 = vmax.xlane.f32.xlu0 %v2612
      %v2614 = vpop.xlane.xlu0 %2613
      %v2615 = vsel %vm964, %v2606, -inf
      %2616 = vmax.xlane.f32.xlu0 %v2615
      %v2617 = vpop.xlane.xlu0 %2616
      %v2618 = vsub.f32 %v2450, %v2611
      %v2619 = vsub.f32 %v2528, %v2614
      %v2620 = vsub.f32 %v2606, %v2617
      %v2621 = vmul.f32 %v2618, 1.442695
      %v2622 = vpow.pop %v2621
      %v2623 = vmul.f32 %v2619, 1.442695
      %v2624 = vpow.pop %v2623
      %v2625 = vmul.f32 %v2620, 1.442695
      %v2626 = vpow.pop %v2625
      %v2627 = vsel %vm964, %v2622, 0.0
      %2628 = vadd.xlane.f32.xlu0 %v2627
      %v2629 = vpop.xlane.xlu0 %2628
      %v2630 = vsel %vm964, %v2624, 0.0
      %2631 = vadd.xlane.f32.xlu0 %v2630
      %v2632 = vpop.xlane.xlu0 %2631
      %v2633 = vsel %vm964, %v2626, 0.0
      %2634 = vadd.xlane.f32.xlu0 %v2633
      %v2635 = vpop.xlane.xlu0 %2634
      %v2636 = vrcp.pop %v2629
      %v2637 = vrcp.pop %v2632
      %v2638 = vrcp.pop %v2635
      %v2639 = vmul.f32 %v2622, %v2636
      %v2640 = vmul.f32 %v2624, %v2637
      %v2641 = vmul.f32 %v2626, %v2638
      %2642 = vrot.lane.b32.xlu0 %v2359, 64
      %v2643 = vpop.permute.xlu0 %2642
      %v2646 = vsel %vm964, %v2639, 0
      %2648 = vmatprep.subr.mxu0 0.0
      %2649 = vmatpush1.msra.mxu0 %v2643
      %2650 = vmatprep.subr.mxu0 0.0
      %2651 = vmatpush1.msra.mxu0 0.0
      %2652 = vmatprep.subr.mxu0 0.0
      %2653 = vmatpush1.msra.mxu0 0.0
      %2654 = vmatprep.subr.mxu0 0.0
      %2655 = vmatpush1.msra.mxu0 0.0
      %2656 = vmatprep.subr.mxu0 0.0
      %2657 = vmatpush1.msra.mxu0 0.0
      %2658 = vmatprep.subr.mxu0 0.0
      %2659 = vmatpush1.msra.mxu0 0.0
      %2660 = vmatprep.subr.mxu0 0.0
      %2661 = vmatpush1.msra.mxu0 0.0
      %2662 = vmatprep.subr.mxu0 0.0
      %2663 = vmatpush1.msra.mxu0 0.0
      %2664 = vmatprep.subr.mxu0 0.0
      %2665 = vmatpush1.msra.mxu0 0.0
      %2666 = vmatprep.subr.mxu0 0.0
      %2667 = vmatpush1.msra.mxu0 0.0
      %2668 = vmatprep.subr.mxu0 0.0
      %2669 = vmatpush1.msra.mxu0 0.0
      %2670 = vmatprep.subr.mxu0 0.0
      %2671 = vmatpush1.msra.mxu0 0.0
      %2672 = vmatprep.subr.mxu0 0.0
      %2673 = vmatpush1.msra.mxu0 0.0
      %2674 = vmatprep.subr.mxu0 0.0
      %2675 = vmatpush1.msra.mxu0 0.0
      %2676 = vmatprep.subr.mxu0 0.0
      %2677 = vmatpush1.msra.mxu0 0.0
      %2678 = vmatprep.subr.mxu0 0.0
      %2679 = vmatpush1.msra.mxu0 0.0
      %2680 = vmatprep.subr.mxu0 0.0
      %2681 = vmatpush1.msra.mxu0 0.0
      %2682 = vmatprep.subr.mxu0 0.0
      %2683 = vmatpush1.msra.mxu0 0.0
      %2684 = vmatprep.subr.mxu0 0.0
      %2685 = vmatpush1.msra.mxu0 0.0
      %2686 = vmatprep.subr.mxu0 0.0
      %2687 = vmatpush1.msra.mxu0 0.0
      %2688 = vmatprep.subr.mxu0 0.0
      %2689 = vmatpush1.msra.mxu0 0.0
      %2690 = vmatprep.subr.mxu0 0.0
      %2691 = vmatpush1.msra.mxu0 0.0
      %2692 = vmatprep.subr.mxu0 0.0
      %2693 = vmatpush1.msra.mxu0 0.0
      %2694 = vmatprep.subr.mxu0 0.0
      %2695 = vmatpush1.msra.mxu0 0.0
      %2696 = vmatprep.subr.mxu0 0.0
      %2697 = vmatpush1.msra.mxu0 0.0
      %2698 = vmatprep.subr.mxu0 0.0
      %2699 = vmatpush1.msra.mxu0 0.0
      %2700 = vmatprep.subr.mxu0 0.0
      %2701 = vmatpush1.msra.mxu0 0.0
      %2702 = vmatprep.subr.mxu0 0.0
      %2703 = vmatpush1.msra.mxu0 0.0
      %2704 = vmatprep.subr.mxu0 0.0
      %2705 = vmatpush1.msra.mxu0 0.0
      %2706 = vmatprep.subr.mxu0 0.0
      %2707 = vmatpush1.msra.mxu0 0.0
      %2708 = vmatprep.subr.mxu0 0.0
      %2709 = vmatpush1.msra.mxu0 0.0
      %2710 = vmatprep.subr.mxu0 0.0
      %2711 = vmatpush1.msra.mxu0 0.0
      %2712 = vmatprep.mubr.f32.mxu0 0.0
      %2713 = vmatmul.mubr.f32.gmra.mrb[0].mxu0 %v2646
      %v2714 = vpop.f32.mrb[0].mxu0
      %v2715 = vadd.f32 0.0, %v2714
      %v2716 = vpop.f32.mrb[0].mxu0
      %2717 = vdwg.mxu0
      %2718 = vrot.lane.b32.xlu0 %v2364, 64
      %v2719 = vpop.permute.xlu0 %2718
      %v2722 = vsel %vm964, %v2640, 0
      %2724 = vmatprep.subr.mxu0 0.0
      %2725 = vmatpush1.msra.mxu0 %v2719
      %2726 = vmatprep.subr.mxu0 0.0
      %2727 = vmatpush1.msra.mxu0 0.0
      %2728 = vmatprep.subr.mxu0 0.0
      %2729 = vmatpush1.msra.mxu0 0.0
      %2730 = vmatprep.subr.mxu0 0.0
      %2731 = vmatpush1.msra.mxu0 0.0
      %2732 = vmatprep.subr.mxu0 0.0
      %2733 = vmatpush1.msra.mxu0 0.0
      %2734 = vmatprep.subr.mxu0 0.0
      %2735 = vmatpush1.msra.mxu0 0.0
      %2736 = vmatprep.subr.mxu0 0.0
      %2737 = vmatpush1.msra.mxu0 0.0
      %2738 = vmatprep.subr.mxu0 0.0
      %2739 = vmatpush1.msra.mxu0 0.0
      %2740 = vmatprep.subr.mxu0 0.0
      %2741 = vmatpush1.msra.mxu0 0.0
      %2742 = vmatprep.subr.mxu0 0.0
      %2743 = vmatpush1.msra.mxu0 0.0
      %2744 = vmatprep.subr.mxu0 0.0
      %2745 = vmatpush1.msra.mxu0 0.0
      %2746 = vmatprep.subr.mxu0 0.0
      %2747 = vmatpush1.msra.mxu0 0.0
      %2748 = vmatprep.subr.mxu0 0.0
      %2749 = vmatpush1.msra.mxu0 0.0
      %2750 = vmatprep.subr.mxu0 0.0
      %2751 = vmatpush1.msra.mxu0 0.0
      %2752 = vmatprep.subr.mxu0 0.0
      %2753 = vmatpush1.msra.mxu0 0.0
      %2754 = vmatprep.subr.mxu0 0.0
      %2755 = vmatpush1.msra.mxu0 0.0
      %2756 = vmatprep.subr.mxu0 0.0
      %2757 = vmatpush1.msra.mxu0 0.0
      %2758 = vmatprep.subr.mxu0 0.0
      %2759 = vmatpush1.msra.mxu0 0.0
      %2760 = vmatprep.subr.mxu0 0.0
      %2761 = vmatpush1.msra.mxu0 0.0
      %2762 = vmatprep.subr.mxu0 0.0
      %2763 = vmatpush1.msra.mxu0 0.0
      %2764 = vmatprep.subr.mxu0 0.0
      %2765 = vmatpush1.msra.mxu0 0.0
      %2766 = vmatprep.subr.mxu0 0.0
      %2767 = vmatpush1.msra.mxu0 0.0
      %2768 = vmatprep.subr.mxu0 0.0
      %2769 = vmatpush1.msra.mxu0 0.0
      %2770 = vmatprep.subr.mxu0 0.0
      %2771 = vmatpush1.msra.mxu0 0.0
      %2772 = vmatprep.subr.mxu0 0.0
      %2773 = vmatpush1.msra.mxu0 0.0
      %2774 = vmatprep.subr.mxu0 0.0
      %2775 = vmatpush1.msra.mxu0 0.0
      %2776 = vmatprep.subr.mxu0 0.0
      %2777 = vmatpush1.msra.mxu0 0.0
      %2778 = vmatprep.subr.mxu0 0.0
      %2779 = vmatpush1.msra.mxu0 0.0
      %2780 = vmatprep.subr.mxu0 0.0
      %2781 = vmatpush1.msra.mxu0 0.0
      %2782 = vmatprep.subr.mxu0 0.0
      %2783 = vmatpush1.msra.mxu0 0.0
      %2784 = vmatprep.subr.mxu0 0.0
      %2785 = vmatpush1.msra.mxu0 0.0
      %2786 = vmatprep.subr.mxu0 0.0
      %2787 = vmatpush1.msra.mxu0 0.0
      %2788 = vmatprep.mubr.f32.mxu0 0.0
      %2789 = vmatmul.mubr.f32.gmra.mrb[0].mxu0 %v2722
      %v2790 = vpop.f32.mrb[0].mxu0
      %v2791 = vadd.f32 0.0, %v2790
      %v2792 = vpop.f32.mrb[0].mxu0
      %2793 = vdwg.mxu0
      %2794 = vrot.lane.b32.xlu0 %v2369, 64
      %v2795 = vpop.permute.xlu0 %2794
      %v2798 = vsel %vm964, %v2641, 0
      %2800 = vmatprep.subr.mxu0 0.0
      %2801 = vmatpush1.msra.mxu0 %v2795
      %2802 = vmatprep.subr.mxu0 0.0
      %2803 = vmatpush1.msra.mxu0 0.0
      %2804 = vmatprep.subr.mxu0 0.0
      %2805 = vmatpush1.msra.mxu0 0.0
      %2806 = vmatprep.subr.mxu0 0.0
      %2807 = vmatpush1.msra.mxu0 0.0
      %2808 = vmatprep.subr.mxu0 0.0
      %2809 = vmatpush1.msra.mxu0 0.0
      %2810 = vmatprep.subr.mxu0 0.0
      %2811 = vmatpush1.msra.mxu0 0.0
      %2812 = vmatprep.subr.mxu0 0.0
      %2813 = vmatpush1.msra.mxu0 0.0
      %2814 = vmatprep.subr.mxu0 0.0
      %2815 = vmatpush1.msra.mxu0 0.0
      %2816 = vmatprep.subr.mxu0 0.0
      %2817 = vmatpush1.msra.mxu0 0.0
      %2818 = vmatprep.subr.mxu0 0.0
      %2819 = vmatpush1.msra.mxu0 0.0
      %2820 = vmatprep.subr.mxu0 0.0
      %2821 = vmatpush1.msra.mxu0 0.0
      %2822 = vmatprep.subr.mxu0 0.0
      %2823 = vmatpush1.msra.mxu0 0.0
      %2824 = vmatprep.subr.mxu0 0.0
      %2825 = vmatpush1.msra.mxu0 0.0
      %2826 = vmatprep.subr.mxu0 0.0
      %2827 = vmatpush1.msra.mxu0 0.0
      %2828 = vmatprep.subr.mxu0 0.0
      %2829 = vmatpush1.msra.mxu0 0.0
      %2830 = vmatprep.subr.mxu0 0.0
      %2831 = vmatpush1.msra.mxu0 0.0
      %2832 = vmatprep.subr.mxu0 0.0
      %2833 = vmatpush1.msra.mxu0 0.0
      %2834 = vmatprep.subr.mxu0 0.0
      %2835 = vmatpush1.msra.mxu0 0.0
      %2836 = vmatprep.subr.mxu0 0.0
      %2837 = vmatpush1.msra.mxu0 0.0
      %2838 = vmatprep.subr.mxu0 0.0
      %2839 = vmatpush1.msra.mxu0 0.0
      %2840 = vmatprep.subr.mxu0 0.0
      %2841 = vmatpush1.msra.mxu0 0.0
      %2842 = vmatprep.subr.mxu0 0.0
      %2843 = vmatpush1.msra.mxu0 0.0
      %2844 = vmatprep.subr.mxu0 0.0
      %2845 = vmatpush1.msra.mxu0 0.0
      %2846 = vmatprep.subr.mxu0 0.0
      %2847 = vmatpush1.msra.mxu0 0.0
      %2848 = vmatprep.subr.mxu0 0.0
      %2849 = vmatpush1.msra.mxu0 0.0
      %2850 = vmatprep.subr.mxu0 0.0
      %2851 = vmatpush1.msra.mxu0 0.0
      %2852 = vmatprep.subr.mxu0 0.0
      %2853 = vmatpush1.msra.mxu0 0.0
      %2854 = vmatprep.subr.mxu0 0.0
      %2855 = vmatpush1.msra.mxu0 0.0
      %2856 = vmatprep.subr.mxu0 0.0
      %2857 = vmatpush1.msra.mxu0 0.0
      %2858 = vmatprep.subr.mxu0 0.0
      %2859 = vmatpush1.msra.mxu0 0.0
      %2860 = vmatprep.subr.mxu0 0.0
      %2861 = vmatpush1.msra.mxu0 0.0
      %2862 = vmatprep.subr.mxu0 0.0
      %2863 = vmatpush1.msra.mxu0 0.0
      %2864 = vmatprep.mubr.f32.mxu0 0.0
      %2865 = vmatmul.mubr.f32.gmra.mrb[0].mxu0 %v2798
      %v2866 = vpop.f32.mrb[0].mxu0
      %v2867 = vadd.f32 0.0, %v2866
      %v2868 = vpop.f32.mrb[0].mxu0
      %2869 = vdwg.mxu0
      %s2870 = scalar_lea.vmem %s6, 32
      %v2871 = vld [vmem:[%s2870] sm:$0xff]
      %v2872 = vld [vmem:[%s2870 + $0x8] sm:$0xff]
      %2873 = vrot.lane.b32.xlu0 %v2372, 112
      %v2874 = vpop.permute.xlu0 %2873
      %2875 = vrot.lane.b32.xlu0 %v2359, 80
      %v2876 = vpop.permute.xlu0 %2875
      %v2877 = vsel %vm732, %v2874, 0
      %v2879 = vsel %vm732, %v2876, 0
      %2881 = vmatprep.subr.mxu0 0.0
      %2882 = vmatpush1.xpose.msra.mxu0 %v2879
      %2883 = vmatprep.subr.mxu0 0.0
      %2884 = vmatpush1.xpose.msra.mxu0 0.0
      %2885 = vmatprep.subr.mxu0 0.0
      %2886 = vmatpush1.xpose.msra.mxu0 0.0
      %2887 = vmatprep.subr.mxu0 0.0
      %2888 = vmatpush1.xpose.msra.mxu0 0.0
      %2889 = vmatprep.subr.mxu0 0.0
      %2890 = vmatpush1.xpose.msra.mxu0 0.0
      %2891 = vmatprep.subr.mxu0 0.0
      %2892 = vmatpush1.xpose.msra.mxu0 0.0
      %2893 = vmatprep.subr.mxu0 0.0
      %2894 = vmatpush1.xpose.msra.mxu0 0.0
      %2895 = vmatprep.subr.mxu0 0.0
      %2896 = vmatpush1.xpose.msra.mxu0 0.0
      %2897 = vmatprep.subr.mxu0 0.0
      %2898 = vmatpush1.xpose.msra.mxu0 0.0
      %2899 = vmatprep.subr.mxu0 0.0
      %2900 = vmatpush1.xpose.msra.mxu0 0.0
      %2901 = vmatprep.subr.mxu0 0.0
      %2902 = vmatpush1.xpose.msra.mxu0 0.0
      %2903 = vmatprep.subr.mxu0 0.0
      %2904 = vmatpush1.xpose.msra.mxu0 0.0
      %2905 = vmatprep.subr.mxu0 0.0
      %2906 = vmatpush1.xpose.msra.mxu0 0.0
      %2907 = vmatprep.subr.mxu0 0.0
      %2908 = vmatpush1.xpose.msra.mxu0 0.0
      %2909 = vmatprep.subr.mxu0 0.0
      %2910 = vmatpush1.xpose.msra.mxu0 0.0
      %2911 = vmatprep.subr.mxu0 0.0
      %2912 = vmatpush1.xpose.msra.mxu0 0.0
      %2913 = vmatprep.subr.mxu0 0.0
      %2914 = vmatpush1.xpose.msra.mxu0 0.0
      %2915 = vmatprep.subr.mxu0 0.0
      %2916 = vmatpush1.xpose.msra.mxu0 0.0
      %2917 = vmatprep.subr.mxu0 0.0
      %2918 = vmatpush1.xpose.msra.mxu0 0.0
      %2919 = vmatprep.subr.mxu0 0.0
      %2920 = vmatpush1.xpose.msra.mxu0 0.0
      %2921 = vmatprep.subr.mxu0 0.0
      %2922 = vmatpush1.xpose.msra.mxu0 0.0
      %2923 = vmatprep.subr.mxu0 0.0
      %2924 = vmatpush1.xpose.msra.mxu0 0.0
      %2925 = vmatprep.subr.mxu0 0.0
      %2926 = vmatpush1.xpose.msra.mxu0 0.0
      %2927 = vmatprep.subr.mxu0 0.0
      %2928 = vmatpush1.xpose.msra.mxu0 0.0
      %2929 = vmatprep.subr.mxu0 0.0
      %2930 = vmatpush1.xpose.msra.mxu0 0.0
      %2931 = vmatprep.subr.mxu0 0.0
      %2932 = vmatpush1.xpose.msra.mxu0 0.0
      %2933 = vmatprep.subr.mxu0 0.0
      %2934 = vmatpush1.xpose.msra.mxu0 0.0
      %2935 = vmatprep.subr.mxu0 0.0
      %2936 = vmatpush1.xpose.msra.mxu0 0.0
      %2937 = vmatprep.subr.mxu0 0.0
      %2938 = vmatpush1.xpose.msra.mxu0 0.0
      %2939 = vmatprep.subr.mxu0 0.0
      %2940 = vmatpush1.xpose.msra.mxu0 0.0
      %2941 = vmatprep.subr.mxu0 0.0
      %2942 = vmatpush1.xpose.msra.mxu0 0.0
      %2943 = vmatprep.subr.mxu0 0.0
      %2944 = vmatpush1.xpose.msra.mxu0 0.0
      %2945 = vmatprep.mubr.f32.mxu0 0.0
      %2946 = vmatmul.mubr.f32.gmra.mrb[0].mxu0 %v2877
      %v2947 = vpop.f32.mrb[0].mxu0
      %v2948 = vadd.f32 %v614, %v2947
      %v2949 = vpop.f32.mrb[0].mxu0
      %2950 = vdwg.mxu0
      %2951 = vrot.lane.b32.xlu0 %v2373, 112
      %v2952 = vpop.permute.xlu0 %2951
      %2953 = vrot.lane.b32.xlu0 %v2364, 80
      %v2954 = vpop.permute.xlu0 %2953
      %v2955 = vsel %vm732, %v2952, 0
      %v2957 = vsel %vm732, %v2954, 0
      %2959 = vmatprep.subr.mxu0 0.0
      %2960 = vmatpush1.xpose.msra.mxu0 %v2957
      %2961 = vmatprep.subr.mxu0 0.0
      %2962 = vmatpush1.xpose.msra.mxu0 0.0
      %2963 = vmatprep.subr.mxu0 0.0
      %2964 = vmatpush1.xpose.msra.mxu0 0.0
      %2965 = vmatprep.subr.mxu0 0.0
      %2966 = vmatpush1.xpose.msra.mxu0 0.0
      %2967 = vmatprep.subr.mxu0 0.0
      %2968 = vmatpush1.xpose.msra.mxu0 0.0
      %2969 = vmatprep.subr.mxu0 0.0
      %2970 = vmatpush1.xpose.msra.mxu0 0.0
      %2971 = vmatprep.subr.mxu0 0.0
      %2972 = vmatpush1.xpose.msra.mxu0 0.0
      %2973 = vmatprep.subr.mxu0 0.0
      %2974 = vmatpush1.xpose.msra.mxu0 0.0
      %2975 = vmatprep.subr.mxu0 0.0
      %2976 = vmatpush1.xpose.msra.mxu0 0.0
      %2977 = vmatprep.subr.mxu0 0.0
      %2978 = vmatpush1.xpose.msra.mxu0 0.0
      %2979 = vmatprep.subr.mxu0 0.0
      %2980 = vmatpush1.xpose.msra.mxu0 0.0
      %2981 = vmatprep.subr.mxu0 0.0
      %2982 = vmatpush1.xpose.msra.mxu0 0.0
      %2983 = vmatprep.subr.mxu0 0.0
      %2984 = vmatpush1.xpose.msra.mxu0 0.0
      %2985 = vmatprep.subr.mxu0 0.0
      %2986 = vmatpush1.xpose.msra.mxu0 0.0
      %2987 = vmatprep.subr.mxu0 0.0
      %2988 = vmatpush1.xpose.msra.mxu0 0.0
      %2989 = vmatprep.subr.mxu0 0.0
      %2990 = vmatpush1.xpose.msra.mxu0 0.0
      %2991 = vmatprep.subr.mxu0 0.0
      %2992 = vmatpush1.xpose.msra.mxu0 0.0
      %2993 = vmatprep.subr.mxu0 0.0
      %2994 = vmatpush1.xpose.msra.mxu0 0.0
      %2995 = vmatprep.subr.mxu0 0.0
      %2996 = vmatpush1.xpose.msra.mxu0 0.0
      %2997 = vmatprep.subr.mxu0 0.0
      %2998 = vmatpush1.xpose.msra.mxu0 0.0
      %2999 = vmatprep.subr.mxu0 0.0
      %3000 = vmatpush1.xpose.msra.mxu0 0.0
      %3001 = vmatprep.subr.mxu0 0.0
      %3002 = vmatpush1.xpose.msra.mxu0 0.0
      %3003 = vmatprep.subr.mxu0 0.0
      %3004 = vmatpush1.xpose.msra.mxu0 0.0
      %3005 = vmatprep.subr.mxu0 0.0
      %3006 = vmatpush1.xpose.msra.mxu0 0.0
      %3007 = vmatprep.subr.mxu0 0.0
      %3008 = vmatpush1.xpose.msra.mxu0 0.0
      %3009 = vmatprep.subr.mxu0 0.0
      %3010 = vmatpush1.xpose.msra.mxu0 0.0
      %3011 = vmatprep.subr.mxu0 0.0
      %3012 = vmatpush1.xpose.msra.mxu0 0.0
      %3013 = vmatprep.subr.mxu0 0.0
      %3014 = vmatpush1.xpose.msra.mxu0 0.0
      %3015 = vmatprep.subr.mxu0 0.0
      %3016 = vmatpush1.xpose.msra.mxu0 0.0
      %3017 = vmatprep.subr.mxu0 0.0
      %3018 = vmatpush1.xpose.msra.mxu0 0.0
      %3019 = vmatprep.subr.mxu0 0.0
      %3020 = vmatpush1.xpose.msra.mxu0 0.0
      %3021 = vmatprep.subr.mxu0 0.0
      %3022 = vmatpush1.xpose.msra.mxu0 0.0
      %3023 = vmatprep.mubr.f32.mxu0 0.0
      %3024 = vmatmul.mubr.f32.gmra.mrb[0].mxu0 %v2955
      %v3025 = vpop.f32.mrb[0].mxu0
      %v3026 = vadd.f32 %v618, %v3025
      %v3027 = vpop.f32.mrb[0].mxu0
      %3028 = vdwg.mxu0
      %3029 = vrot.lane.b32.xlu0 %v2374, 112
      %v3030 = vpop.permute.xlu0 %3029
      %3031 = vrot.lane.b32.xlu0 %v2369, 80
      %v3032 = vpop.permute.xlu0 %3031
      %v3033 = vsel %vm732, %v3030, 0
      %v3035 = vsel %vm732, %v3032, 0
      %3037 = vmatprep.subr.mxu0 0.0
      %3038 = vmatpush1.xpose.msra.mxu0 %v3035
      %3039 = vmatprep.subr.mxu0 0.0
      %3040 = vmatpush1.xpose.msra.mxu0 0.0
      %3041 = vmatprep.subr.mxu0 0.0
      %3042 = vmatpush1.xpose.msra.mxu0 0.0
      %3043 = vmatprep.subr.mxu0 0.0
      %3044 = vmatpush1.xpose.msra.mxu0 0.0
      %3045 = vmatprep.subr.mxu0 0.0
      %3046 = vmatpush1.xpose.msra.mxu0 0.0
      %3047 = vmatprep.subr.mxu0 0.0
      %3048 = vmatpush1.xpose.msra.mxu0 0.0
      %3049 = vmatprep.subr.mxu0 0.0
      %3050 = vmatpush1.xpose.msra.mxu0 0.0
      %3051 = vmatprep.subr.mxu0 0.0
      %3052 = vmatpush1.xpose.msra.mxu0 0.0
      %3053 = vmatprep.subr.mxu0 0.0
      %3054 = vmatpush1.xpose.msra.mxu0 0.0
      %3055 = vmatprep.subr.mxu0 0.0
      %3056 = vmatpush1.xpose.msra.mxu0 0.0
      %3057 = vmatprep.subr.mxu0 0.0
      %3058 = vmatpush1.xpose.msra.mxu0 0.0
      %3059 = vmatprep.subr.mxu0 0.0
      %3060 = vmatpush1.xpose.msra.mxu0 0.0
      %3061 = vmatprep.subr.mxu0 0.0
      %3062 = vmatpush1.xpose.msra.mxu0 0.0
      %3063 = vmatprep.subr.mxu0 0.0
      %3064 = vmatpush1.xpose.msra.mxu0 0.0
      %3065 = vmatprep.subr.mxu0 0.0
      %3066 = vmatpush1.xpose.msra.mxu0 0.0
      %3067 = vmatprep.subr.mxu0 0.0
      %3068 = vmatpush1.xpose.msra.mxu0 0.0
      %3069 = vmatprep.subr.mxu0 0.0
      %3070 = vmatpush1.xpose.msra.mxu0 0.0
      %3071 = vmatprep.subr.mxu0 0.0
      %3072 = vmatpush1.xpose.msra.mxu0 0.0
      %3073 = vmatprep.subr.mxu0 0.0
      %3074 = vmatpush1.xpose.msra.mxu0 0.0
      %3075 = vmatprep.subr.mxu0 0.0
      %3076 = vmatpush1.xpose.msra.mxu0 0.0
      %3077 = vmatprep.subr.mxu0 0.0
      %3078 = vmatpush1.xpose.msra.mxu0 0.0
      %3079 = vmatprep.subr.mxu0 0.0
      %3080 = vmatpush1.xpose.msra.mxu0 0.0
      %3081 = vmatprep.subr.mxu0 0.0
      %3082 = vmatpush1.xpose.msra.mxu0 0.0
      %3083 = vmatprep.subr.mxu0 0.0
      %3084 = vmatpush1.xpose.msra.mxu0 0.0
      %3085 = vmatprep.subr.mxu0 0.0
      %3086 = vmatpush1.xpose.msra.mxu0 0.0
      %3087 = vmatprep.subr.mxu0 0.0
      %3088 = vmatpush1.xpose.msra.mxu0 0.0
      %3089 = vmatprep.subr.mxu0 0.0
      %3090 = vmatpush1.xpose.msra.mxu0 0.0
      %3091 = vmatprep.subr.mxu0 0.0
      %3092 = vmatpush1.xpose.msra.mxu0 0.0
      %3093 = vmatprep.subr.mxu0 0.0
      %3094 = vmatpush1.xpose.msra.mxu0 0.0
      %3095 = vmatprep.subr.mxu0 0.0
      %3096 = vmatpush1.xpose.msra.mxu0 0.0
      %3097 = vmatprep.subr.mxu0 0.0
      %3098 = vmatpush1.xpose.msra.mxu0 0.0
      %3099 = vmatprep.subr.mxu0 0.0
      %3100 = vmatpush1.xpose.msra.mxu0 0.0
      %3101 = vmatprep.mubr.f32.mxu0 0.0
      %3102 = vmatmul.mubr.f32.gmra.mrb[0].mxu0 %v3033
      %v3103 = vpop.f32.mrb[0].mxu0
      %v3104 = vadd.f32 %v622, %v3103
      %v3105 = vpop.f32.mrb[0].mxu0
      %3106 = vdwg.mxu0
      %v3107 = vsel %vm964, %v2948, -inf
      %3108 = vmax.xlane.f32.xlu0 %v3107
      %v3109 = vpop.xlane.xlu0 %3108
      %v3110 = vsel %vm964, %v3026, -inf
      %3111 = vmax.xlane.f32.xlu0 %v3110
      %v3112 = vpop.xlane.xlu0 %3111
      %v3113 = vsel %vm964, %v3104, -inf
      %3114 = vmax.xlane.f32.xlu0 %v3113
      %v3115 = vpop.xlane.xlu0 %3114
      %v3116 = vsub.f32 %v2948, %v3109
      %v3117 = vsub.f32 %v3026, %v3112
      %v3118 = vsub.f32 %v3104, %v3115
      %v3119 = vmul.f32 %v3116, 1.442695
      %v3120 = vpow.pop %v3119
      %v3121 = vmul.f32 %v3117, 1.442695
      %v3122 = vpow.pop %v3121
      %v3123 = vmul.f32 %v3118, 1.442695
      %v3124 = vpow.pop %v3123
      %v3125 = vsel %vm964, %v3120, 0.0
      %3126 = vadd.xlane.f32.xlu0 %v3125
      %v3127 = vpop.xlane.xlu0 %3126
      %v3128 = vsel %vm964, %v3122, 0.0
      %3129 = vadd.xlane.f32.xlu0 %v3128
      %v3130 = vpop.xlane.xlu0 %3129
      %v3131 = vsel %vm964, %v3124, 0.0
      %3132 = vadd.xlane.f32.xlu0 %v3131
      %v3133 = vpop.xlane.xlu0 %3132
      %v3134 = vrcp.pop %v3127
      %v3135 = vrcp.pop %v3130
      %v3136 = vrcp.pop %v3133
      %v3137 = vmul.f32 %v3120, %v3134
      %v3138 = vmul.f32 %v3122, %v3135
      %v3139 = vmul.f32 %v3124, %v3136
      %3140 = vrot.lane.b32.xlu0 %v2359, 48
      %v3141 = vpop.permute.xlu0 %3140
      %v3144 = vsel %vm964, %v3137, 0
      %3146 = vmatprep.subr.mxu0 0.0
      %3147 = vmatpush1.msra.mxu0 %v3141
      %3148 = vmatprep.subr.mxu0 0.0
      %3149 = vmatpush1.msra.mxu0 0.0
      %3150 = vmatprep.subr.mxu0 0.0
      %3151 = vmatpush1.msra.mxu0 0.0
      %3152 = vmatprep.subr.mxu0 0.0
      %3153 = vmatpush1.msra.mxu0 0.0
      %3154 = vmatprep.subr.mxu0 0.0
      %3155 = vmatpush1.msra.mxu0 0.0
      %3156 = vmatprep.subr.mxu0 0.0
      %3157 = vmatpush1.msra.mxu0 0.0
      %3158 = vmatprep.subr.mxu0 0.0
      %3159 = vmatpush1.msra.mxu0 0.0
      %3160 = vmatprep.subr.mxu0 0.0
      %3161 = vmatpush1.msra.mxu0 0.0
      %3162 = vmatprep.subr.mxu0 0.0
      %3163 = vmatpush1.msra.mxu0 0.0
      %3164 = vmatprep.subr.mxu0 0.0
      %3165 = vmatpush1.msra.mxu0 0.0
      %3166 = vmatprep.subr.mxu0 0.0
      %3167 = vmatpush1.msra.mxu0 0.0
      %3168 = vmatprep.subr.mxu0 0.0
      %3169 = vmatpush1.msra.mxu0 0.0
      %3170 = vmatprep.subr.mxu0 0.0
      %3171 = vmatpush1.msra.mxu0 0.0
      %3172 = vmatprep.subr.mxu0 0.0
      %3173 = vmatpush1.msra.mxu0 0.0
      %3174 = vmatprep.subr.mxu0 0.0
      %3175 = vmatpush1.msra.mxu0 0.0
      %3176 = vmatprep.subr.mxu0 0.0
      %3177 = vmatpush1.msra.mxu0 0.0
      %3178 = vmatprep.subr.mxu0 0.0
      %3179 = vmatpush1.msra.mxu0 0.0
      %3180 = vmatprep.subr.mxu0 0.0
      %3181 = vmatpush1.msra.mxu0 0.0
      %3182 = vmatprep.subr.mxu0 0.0
      %3183 = vmatpush1.msra.mxu0 0.0
      %3184 = vmatprep.subr.mxu0 0.0
      %3185 = vmatpush1.msra.mxu0 0.0
      %3186 = vmatprep.subr.mxu0 0.0
      %3187 = vmatpush1.msra.mxu0 0.0
      %3188 = vmatprep.subr.mxu0 0.0
      %3189 = vmatpush1.msra.mxu0 0.0
      %3190 = vmatprep.subr.mxu0 0.0
      %3191 = vmatpush1.msra.mxu0 0.0
      %3192 = vmatprep.subr.mxu0 0.0
      %3193 = vmatpush1.msra.mxu0 0.0
      %3194 = vmatprep.subr.mxu0 0.0
      %3195 = vmatpush1.msra.mxu0 0.0
      %3196 = vmatprep.subr.mxu0 0.0
      %3197 = vmatpush1.msra.mxu0 0.0
      %3198 = vmatprep.subr.mxu0 0.0
      %3199 = vmatpush1.msra.mxu0 0.0
      %3200 = vmatprep.subr.mxu0 0.0
      %3201 = vmatpush1.msra.mxu0 0.0
      %3202 = vmatprep.subr.mxu0 0.0
      %3203 = vmatpush1.msra.mxu0 0.0
      %3204 = vmatprep.subr.mxu0 0.0
      %3205 = vmatpush1.msra.mxu0 0.0
      %3206 = vmatprep.subr.mxu0 0.0
      %3207 = vmatpush1.msra.mxu0 0.0
      %3208 = vmatprep.subr.mxu0 0.0
      %3209 = vmatpush1.msra.mxu0 0.0
      %3210 = vmatprep.mubr.f32.mxu0 0.0
      %3211 = vmatmul.mubr.f32.gmra.mrb[0].mxu0 %v3144
      %v3212 = vpop.f32.mrb[0].mxu0
      %v3213 = vadd.f32 0.0, %v3212
      %v3214 = vpop.f32.mrb[0].mxu0
      %3215 = vdwg.mxu0
      %3216 = vrot.lane.b32.xlu0 %v2364, 48
      %v3217 = vpop.permute.xlu0 %3216
      %v3220 = vsel %vm964, %v3138, 0
      %3222 = vmatprep.subr.mxu0 0.0
      %3223 = vmatpush1.msra.mxu0 %v3217
      %3224 = vmatprep.subr.mxu0 0.0
      %3225 = vmatpush1.msra.mxu0 0.0
      %3226 = vmatprep.subr.mxu0 0.0
      %3227 = vmatpush1.msra.mxu0 0.0
      %3228 = vmatprep.subr.mxu0 0.0
      %3229 = vmatpush1.msra.mxu0 0.0
      %3230 = vmatprep.subr.mxu0 0.0
      %3231 = vmatpush1.msra.mxu0 0.0
      %3232 = vmatprep.subr.mxu0 0.0
      %3233 = vmatpush1.msra.mxu0 0.0
      %3234 = vmatprep.subr.mxu0 0.0
      %3235 = vmatpush1.msra.mxu0 0.0
      %3236 = vmatprep.subr.mxu0 0.0
      %3237 = vmatpush1.msra.mxu0 0.0
      %3238 = vmatprep.subr.mxu0 0.0
      %3239 = vmatpush1.msra.mxu0 0.0
      %3240 = vmatprep.subr.mxu0 0.0
      %3241 = vmatpush1.msra.mxu0 0.0
      %3242 = vmatprep.subr.mxu0 0.0
      %3243 = vmatpush1.msra.mxu0 0.0
      %3244 = vmatprep.subr.mxu0 0.0
      %3245 = vmatpush1.msra.mxu0 0.0
      %3246 = vmatprep.subr.mxu0 0.0
      %3247 = vmatpush1.msra.mxu0 0.0
      %3248 = vmatprep.subr.mxu0 0.0
      %3249 = vmatpush1.msra.mxu0 0.0
      %3250 = vmatprep.subr.mxu0 0.0
      %3251 = vmatpush1.msra.mxu0 0.0
      %3252 = vmatprep.subr.mxu0 0.0
      %3253 = vmatpush1.msra.mxu0 0.0
      %3254 = vmatprep.subr.mxu0 0.0
      %3255 = vmatpush1.msra.mxu0 0.0
      %3256 = vmatprep.subr.mxu0 0.0
      %3257 = vmatpush1.msra.mxu0 0.0
      %3258 = vmatprep.subr.mxu0 0.0
      %3259 = vmatpush1.msra.mxu0 0.0
      %3260 = vmatprep.subr.mxu0 0.0
      %3261 = vmatpush1.msra.mxu0 0.0
      %3262 = vmatprep.subr.mxu0 0.0
      %3263 = vmatpush1.msra.mxu0 0.0
      %3264 = vmatprep.subr.mxu0 0.0
      %3265 = vmatpush1.msra.mxu0 0.0
      %3266 = vmatprep.subr.mxu0 0.0
      %3267 = vmatpush1.msra.mxu0 0.0
      %3268 = vmatprep.subr.mxu0 0.0
      %3269 = vmatpush1.msra.mxu0 0.0
      %3270 = vmatprep.subr.mxu0 0.0
      %3271 = vmatpush1.msra.mxu0 0.0
      %3272 = vmatprep.subr.mxu0 0.0
      %3273 = vmatpush1.msra.mxu0 0.0
      %3274 = vmatprep.subr.mxu0 0.0
      %3275 = vmatpush1.msra.mxu0 0.0
      %3276 = vmatprep.subr.mxu0 0.0
      %3277 = vmatpush1.msra.mxu0 0.0
      %3278 = vmatprep.subr.mxu0 0.0
      %3279 = vmatpush1.msra.mxu0 0.0
      %3280 = vmatprep.subr.mxu0 0.0
      %3281 = vmatpush1.msra.mxu0 0.0
      %3282 = vmatprep.subr.mxu0 0.0
      %3283 = vmatpush1.msra.mxu0 0.0
      %3284 = vmatprep.subr.mxu0 0.0
      %3285 = vmatpush1.msra.mxu0 0.0
      %3286 = vmatprep.mubr.f32.mxu0 0.0
      %3287 = vmatmul.mubr.f32.gmra.mrb[0].mxu0 %v3220
      %v3288 = vpop.f32.mrb[0].mxu0
      %v3289 = vadd.f32 0.0, %v3288
      %v3290 = vpop.f32.mrb[0].mxu0
      %3291 = vdwg.mxu0
      %3292 = vrot.lane.b32.xlu0 %v2369, 48
      %v3293 = vpop.permute.xlu0 %3292
      %v3296 = vsel %vm964, %v3139, 0
      %3298 = vmatprep.subr.mxu0 0.0
      %3299 = vmatpush1.msra.mxu0 %v3293
      %3300 = vmatprep.subr.mxu0 0.0
      %3301 = vmatpush1.msra.mxu0 0.0
      %3302 = vmatprep.subr.mxu0 0.0
      %3303 = vmatpush1.msra.mxu0 0.0
      %3304 = vmatprep.subr.mxu0 0.0
      %3305 = vmatpush1.msra.mxu0 0.0
      %3306 = vmatprep.subr.mxu0 0.0
      %3307 = vmatpush1.msra.mxu0 0.0
      %3308 = vmatprep.subr.mxu0 0.0
      %3309 = vmatpush1.msra.mxu0 0.0
      %3310 = vmatprep.subr.mxu0 0.0
      %3311 = vmatpush1.msra.mxu0 0.0
      %3312 = vmatprep.subr.mxu0 0.0
      %3313 = vmatpush1.msra.mxu0 0.0
      %3314 = vmatprep.subr.mxu0 0.0
      %3315 = vmatpush1.msra.mxu0 0.0
      %3316 = vmatprep.subr.mxu0 0.0
      %3317 = vmatpush1.msra.mxu0 0.0
      %3318 = vmatprep.subr.mxu0 0.0
      %3319 = vmatpush1.msra.mxu0 0.0
      %3320 = vmatprep.subr.mxu0 0.0
      %3321 = vmatpush1.msra.mxu0 0.0
      %3322 = vmatprep.subr.mxu0 0.0
      %3323 = vmatpush1.msra.mxu0 0.0
      %3324 = vmatprep.subr.mxu0 0.0
      %3325 = vmatpush1.msra.mxu0 0.0
      %3326 = vmatprep.subr.mxu0 0.0
      %3327 = vmatpush1.msra.mxu0 0.0
      %3328 = vmatprep.subr.mxu0 0.0
      %3329 = vmatpush1.msra.mxu0 0.0
      %3330 = vmatprep.subr.mxu0 0.0
      %3331 = vmatpush1.msra.mxu0 0.0
      %3332 = vmatprep.subr.mxu0 0.0
      %3333 = vmatpush1.msra.mxu0 0.0
      %3334 = vmatprep.subr.mxu0 0.0
      %3335 = vmatpush1.msra.mxu0 0.0
      %3336 = vmatprep.subr.mxu0 0.0
      %3337 = vmatpush1.msra.mxu0 0.0
      %3338 = vmatprep.subr.mxu0 0.0
      %3339 = vmatpush1.msra.mxu0 0.0
      %3340 = vmatprep.subr.mxu0 0.0
      %3341 = vmatpush1.msra.mxu0 0.0
      %3342 = vmatprep.subr.mxu0 0.0
      %3343 = vmatpush1.msra.mxu0 0.0
      %3344 = vmatprep.subr.mxu0 0.0
      %3345 = vmatpush1.msra.mxu0 0.0
      %3346 = vmatprep.subr.mxu0 0.0
      %3347 = vmatpush1.msra.mxu0 0.0
      %3348 = vmatprep.subr.mxu0 0.0
      %3349 = vmatpush1.msra.mxu0 0.0
      %3350 = vmatprep.subr.mxu0 0.0
      %3351 = vmatpush1.msra.mxu0 0.0
      %3352 = vmatprep.subr.mxu0 0.0
      %3353 = vmatpush1.msra.mxu0 0.0
      %3354 = vmatprep.subr.mxu0 0.0
      %3355 = vmatpush1.msra.mxu0 0.0
      %3356 = vmatprep.subr.mxu0 0.0
      %3357 = vmatpush1.msra.mxu0 0.0
      %3358 = vmatprep.subr.mxu0 0.0
      %3359 = vmatpush1.msra.mxu0 0.0
      %3360 = vmatprep.subr.mxu0 0.0
      %3361 = vmatpush1.msra.mxu0 0.0
      %3362 = vmatprep.mubr.f32.mxu0 0.0
      %3363 = vmatmul.mubr.f32.gmra.mrb[0].mxu0 %v3296
      %v3364 = vpop.f32.mrb[0].mxu0
      %v3365 = vadd.f32 0.0, %v3364
      %v3366 = vpop.f32.mrb[0].mxu0
      %3367 = vdwg.mxu0
      %s3368 = scalar_lea.vmem %s6, 48
      %v3369 = vld [vmem:[%s3368] sm:$0xff]
      %v3370 = vld [vmem:[%s3368 + $0x8] sm:$0xff]
      %v3372 = vsel %vm732, %v3213, 0
      %v3375 = vsel %vm732, %v3289, 0
      %v3378 = vsel %vm732, %v3365, 0
      %3380 = vmatprep.subr.mxu0 0.0
      %3381 = vmatpush1.msra.mxu0 %v3369
      %3382 = vmatprep.subr.mxu0 0.0
      %3383 = vmatpush1.msra.mxu0 %v3370
      %3384 = vmatprep.subr.mxu0 0.0
      %3385 = vmatpush1.msra.mxu0 0.0
      %3386 = vmatprep.subr.mxu0 0.0
      %3387 = vmatpush1.msra.mxu0 0.0
      %3388 = vmatprep.subr.mxu0 0.0
      %3389 = vmatpush1.msra.mxu0 0.0
      %3390 = vmatprep.subr.mxu0 0.0
      %3391 = vmatpush1.msra.mxu0 0.0
      %3392 = vmatprep.subr.mxu0 0.0
      %3393 = vmatpush1.msra.mxu0 0.0
      %3394 = vmatprep.subr.mxu0 0.0
      %3395 = vmatpush1.msra.mxu0 0.0
      %3396 = vmatprep.subr.mxu0 0.0
      %3397 = vmatpush1.msra.mxu0 0.0
      %3398 = vmatprep.subr.mxu0 0.0
      %3399 = vmatpush1.msra.mxu0 0.0
      %3400 = vmatprep.subr.mxu0 0.0
      %3401 = vmatpush1.msra.mxu0 0.0
      %3402 = vmatprep.subr.mxu0 0.0
      %3403 = vmatpush1.msra.mxu0 0.0
      %3404 = vmatprep.subr.mxu0 0.0
      %3405 = vmatpush1.msra.mxu0 0.0
      %3406 = vmatprep.subr.mxu0 0.0
      %3407 = vmatpush1.msra.mxu0 0.0
      %3408 = vmatprep.subr.mxu0 0.0
      %3409 = vmatpush1.msra.mxu0 0.0
      %3410 = vmatprep.subr.mxu0 0.0
      %3411 = vmatpush1.msra.mxu0 0.0
      %3412 = vmatprep.subr.mxu0 0.0
      %3413 = vmatpush1.msra.mxu0 0.0
      %3414 = vmatprep.subr.mxu0 0.0
      %3415 = vmatpush1.msra.mxu0 0.0
      %3416 = vmatprep.subr.mxu0 0.0
      %3417 = vmatpush1.msra.mxu0 0.0
      %3418 = vmatprep.subr.mxu0 0.0
      %3419 = vmatpush1.msra.mxu0 0.0
      %3420 = vmatprep.subr.mxu0 0.0
      %3421 = vmatpush1.msra.mxu0 0.0
      %3422 = vmatprep.subr.mxu0 0.0
      %3423 = vmatpush1.msra.mxu0 0.0
      %3424 = vmatprep.subr.mxu0 0.0
      %3425 = vmatpush1.msra.mxu0 0.0
      %3426 = vmatprep.subr.mxu0 0.0
      %3427 = vmatpush1.msra.mxu0 0.0
      %3428 = vmatprep.subr.mxu0 0.0
      %3429 = vmatpush1.msra.mxu0 0.0
      %3430 = vmatprep.subr.mxu0 0.0
      %3431 = vmatpush1.msra.mxu0 0.0
      %3432 = vmatprep.subr.mxu0 0.0
      %3433 = vmatpush1.msra.mxu0 0.0
      %3434 = vmatprep.subr.mxu0 0.0
      %3435 = vmatpush1.msra.mxu0 0.0
      %3436 = vmatprep.subr.mxu0 0.0
      %3437 = vmatpush1.msra.mxu0 0.0
      %3438 = vmatprep.subr.mxu0 0.0
      %3439 = vmatpush1.msra.mxu0 0.0
      %3440 = vmatprep.subr.mxu0 0.0
      %3441 = vmatpush1.msra.mxu0 0.0
      %3442 = vmatprep.subr.mxu0 0.0
      %3443 = vmatpush1.msra.mxu0 0.0
      %3444 = vmatprep.mubr.f32.mxu0 0.0
      %3445 = vmatmul.mubr.f32.gmra.mrb[0].mxu0 %v3372
      %v3446 = vpop.f32.mrb[0].mxu0
      %v3447 = vadd.f32 0.0, %v3446
      %v3448 = vpop.f32.mrb[0].mxu0
      %3449 = vmatprep.mubr.f32.mxu0 0.0
      %3450 = vmatmul.mubr.f32.gmra.mrb[0].mxu0 %v3375
      %v3451 = vpop.f32.mrb[0].mxu0
      %v3452 = vadd.f32 0.0, %v3451
      %v3453 = vpop.f32.mrb[0].mxu0
      %3454 = vmatprep.mubr.f32.mxu0 0.0
      %3455 = vmatmul.mubr.f32.gmra.mrb[0].mxu0 %v3378
      %v3456 = vpop.f32.mrb[0].mxu0
      %v3457 = vadd.f32 0.0, %v3456
      %v3458 = vpop.f32.mrb[0].mxu0
      %3459 = vdwg.mxu0
      %v3461 = vsel %vm732, %v2715, 0
      %v3464 = vsel %vm732, %v2791, 0
      %v3467 = vsel %vm732, %v2867, 0
      %3469 = vmatprep.subr.mxu0 0.0
      %3470 = vmatpush1.msra.mxu0 %v2871
      %3471 = vmatprep.subr.mxu0 0.0
      %3472 = vmatpush1.msra.mxu0 %v2872
      %3473 = vmatprep.subr.mxu0 0.0
      %3474 = vmatpush1.msra.mxu0 0.0
      %3475 = vmatprep.subr.mxu0 0.0
      %3476 = vmatpush1.msra.mxu0 0.0
      %3477 = vmatprep.subr.mxu0 0.0
      %3478 = vmatpush1.msra.mxu0 0.0
      %3479 = vmatprep.subr.mxu0 0.0
      %3480 = vmatpush1.msra.mxu0 0.0
      %3481 = vmatprep.subr.mxu0 0.0
      %3482 = vmatpush1.msra.mxu0 0.0
      %3483 = vmatprep.subr.mxu0 0.0
      %3484 = vmatpush1.msra.mxu0 0.0
      %3485 = vmatprep.subr.mxu0 0.0
      %3486 = vmatpush1.msra.mxu0 0.0
      %3487 = vmatprep.subr.mxu0 0.0
      %3488 = vmatpush1.msra.mxu0 0.0
      %3489 = vmatprep.subr.mxu0 0.0
      %3490 = vmatpush1.msra.mxu0 0.0
      %3491 = vmatprep.subr.mxu0 0.0
      %3492 = vmatpush1.msra.mxu0 0.0
      %3493 = vmatprep.subr.mxu0 0.0
      %3494 = vmatpush1.msra.mxu0 0.0
      %3495 = vmatprep.subr.mxu0 0.0
      %3496 = vmatpush1.msra.mxu0 0.0
      %3497 = vmatprep.subr.mxu0 0.0
      %3498 = vmatpush1.msra.mxu0 0.0
      %3499 = vmatprep.subr.mxu0 0.0
      %3500 = vmatpush1.msra.mxu0 0.0
      %3501 = vmatprep.subr.mxu0 0.0
      %3502 = vmatpush1.msra.mxu0 0.0
      %3503 = vmatprep.subr.mxu0 0.0
      %3504 = vmatpush1.msra.mxu0 0.0
      %3505 = vmatprep.subr.mxu0 0.0
      %3506 = vmatpush1.msra.mxu0 0.0
      %3507 = vmatprep.subr.mxu0 0.0
      %3508 = vmatpush1.msra.mxu0 0.0
      %3509 = vmatprep.subr.mxu0 0.0
      %3510 = vmatpush1.msra.mxu0 0.0
      %3511 = vmatprep.subr.mxu0 0.0
      %3512 = vmatpush1.msra.mxu0 0.0
      %3513 = vmatprep.subr.mxu0 0.0
      %3514 = vmatpush1.msra.mxu0 0.0
      %3515 = vmatprep.subr.mxu0 0.0
      %3516 = vmatpush1.msra.mxu0 0.0
      %3517 = vmatprep.subr.mxu0 0.0
      %3518 = vmatpush1.msra.mxu0 0.0
      %3519 = vmatprep.subr.mxu0 0.0
      %3520 = vmatpush1.msra.mxu0 0.0
      %3521 = vmatprep.subr.mxu0 0.0
      %3522 = vmatpush1.msra.mxu0 0.0
      %3523 = vmatprep.subr.mxu0 0.0
      %3524 = vmatpush1.msra.mxu0 0.0
      %3525 = vmatprep.subr.mxu0 0.0
      %3526 = vmatpush1.msra.mxu0 0.0
      %3527 = vmatprep.subr.mxu0 0.0
      %3528 = vmatpush1.msra.mxu0 0.0
      %3529 = vmatprep.subr.mxu0 0.0
      %3530 = vmatpush1.msra.mxu0 0.0
      %3531 = vmatprep.subr.mxu0 0.0
      %3532 = vmatpush1.msra.mxu0 0.0
      %3533 = vmatprep.mubr.f32.mxu0 0.0
      %3534 = vmatmul.mubr.f32.gmra.mrb[0].mxu0 %v3461
      %v3535 = vpop.f32.mrb[0].mxu0
      %v3536 = vadd.f32 %v3447, %v3535
      %v3537 = vpop.f32.mrb[0].mxu0
      %3538 = vmatprep.mubr.f32.mxu0 0.0
      %3539 = vmatmul.mubr.f32.gmra.mrb[0].mxu0 %v3464
      %v3540 = vpop.f32.mrb[0].mxu0
      %v3541 = vadd.f32 %v3452, %v3540
      %v3542 = vpop.f32.mrb[0].mxu0
      %3543 = vmatprep.mubr.f32.mxu0 0.0
      %3544 = vmatmul.mubr.f32.gmra.mrb[0].mxu0 %v3467
      %v3545 = vpop.f32.mrb[0].mxu0
      %v3546 = vadd.f32 %v3457, %v3545
      %v3547 = vpop.f32.mrb[0].mxu0
      %3548 = vdwg.mxu0
      %s3549 = scalar_lea.vmem %s7, 1
      %v3550 = vld [vmem:[%s3549] sm:$0x1]
      %v3552 = vlaneseq
      %v3553 = vshrl.u32 %v3552, 7
      %v3554 = vsub.s32 0, %v3553
      %v3555 = vrot.slane %v3550, %v3554
      %v3557 = vadd.f32 %v3536, %v3555
      %v3558 = vadd.f32 %v3541, %v3555
      %v3559 = vadd.f32 %v3546, %v3555
      %v3560 = vadd.f32 %v2267, %v3557
      %v3561 = vadd.f32 %v2268, %v3558
      %v3562 = vadd.f32 %v2269, %v3559
      %s3563 = scalar_lea.vmem %s8, 1
      %v3564 = vld [vmem:[%s3563] sm:$0x1]
      %s3565 = scalar_lea.vmem %s9, 1
      %v3566 = vld [vmem:[%s3565] sm:$0x1]
      %v3567 = vsel %vm546, %v3560, 0.0
      %3568 = vadd.xlane.f32.xlu0 %v3567
      %v3569 = vpop.xlane.xlu0 %3568
      %v3570 = vsel %vm546, %v3561, 0.0
      %3571 = vadd.xlane.f32.xlu0 %v3570
      %v3572 = vpop.xlane.xlu0 %3571
      %v3573 = vsel %vm546, %v3562, 0.0
      %3574 = vadd.xlane.f32.xlu0 %v3573
      %v3575 = vpop.xlane.xlu0 %3574
      %v3576 = vmul.f32 %v3569, %v556
      %v3577 = vmul.f32 %v3572, %v556
      %v3578 = vmul.f32 %v3575, %v556
      %v3579 = vsub.f32 %v3560, %v3576
      %v3580 = vsub.f32 %v3561, %v3577
      %v3581 = vsub.f32 %v3562, %v3578
      %v3582 = vmul.f32 %v3579, %v3579
      %v3583 = vmul.f32 %v3580, %v3580
      %v3584 = vmul.f32 %v3581, %v3581
      %v3585 = vsel %vm546, %v3582, 0.0
      %3586 = vadd.xlane.f32.xlu0 %v3585
      %v3587 = vpop.xlane.xlu0 %3586
      %v3588 = vsel %vm546, %v3583, 0.0
      %3589 = vadd.xlane.f32.xlu0 %v3588
      %v3590 = vpop.xlane.xlu0 %3589
      %v3591 = vsel %vm546, %v3584, 0.0
      %3592 = vadd.xlane.f32.xlu0 %v3591
      %v3593 = vpop.xlane.xlu0 %3592
      %v3594 = vmul.f32 %v3587, %v556
      %v3595 = vmul.f32 %v3590, %v556
      %v3596 = vmul.f32 %v3593, %v556
      %v3597 = vadd.f32 %v3594, 1e-12
      %v3598 = vadd.f32 %v3595, 1e-12
      %v3599 = vadd.f32 %v3596, 1e-12
      %v3600 = vrsqrt.pop %v3597
      %v3601 = vrsqrt.pop %v3598
      %v3602 = vrsqrt.pop %v3599
      %v3603 = vmul.f32 %v3579, %v3600
      %v3604 = vmul.f32 %v3580, %v3601
      %v3605 = vmul.f32 %v3581, %v3602
      %v3607 = vlaneseq
      %v3608 = vshrl.u32 %v3607, 7
      %v3609 = vsub.s32 0, %v3608
      %v3610 = vrot.slane %v3564, %v3609
      %v3612 = vmul.f32 %v3603, %v3610
      %v3613 = vmul.f32 %v3604, %v3610
      %v3614 = vmul.f32 %v3605, %v3610
      %v3616 = vlaneseq
      %v3617 = vshrl.u32 %v3616, 7
      %v3618 = vsub.s32 0, %v3617
      %v3619 = vrot.slane %v3566, %v3618
      %v3621 = vadd.f32 %v3612, %v3619
      %v3622 = vadd.f32 %v3613, %v3619
      %v3623 = vadd.f32 %v3614, %v3619
      %s3624 = scalar_lea.vmem %s10, 32
      %v3625 = vld [vmem:[%s3624] sm:$0xff]
      %v3626 = vld [vmem:[%s3624 + $0x8] sm:$0xff]
      %v3627 = vld [vmem:[%s3624 + $0x10] sm:$0xff]
      %v3628 = vld [vmem:[%s3624 + $0x18] sm:$0xff]
      %s3629 = scalar_lea.vmem %s11, 1
      %v3630 = vld [vmem:[%s3629] sm:$0x1]
      %v3632 = vlaneseq
      %v3633 = vshrl.u32 %v3632, 7
      %v3634 = vsub.s32 0, %v3633
      %v3635 = vrot.slane %v3630, %v3634
      %v3638 = vsel %vm546, %v3621, 0
      %v3641 = vsel %vm546, %v3622, 0
      %v3644 = vsel %vm546, %v3623, 0
      %3646 = vmatprep.subr.mxu0 0.0
      %3647 = vmatpush1.msra.mxu0 %v3625
      %3648 = vmatprep.subr.mxu0 0.0
      %3649 = vmatpush1.msra.mxu0 %v3626
      %3650 = vmatprep.subr.mxu0 0.0
      %3651 = vmatpush1.msra.mxu0 %v3627
      %3652 = vmatprep.subr.mxu0 0.0
      %3653 = vmatpush1.msra.mxu0 %v3628
      %3654 = vmatprep.subr.mxu0 0.0
      %3655 = vmatpush1.msra.mxu0 0.0
      %3656 = vmatprep.subr.mxu0 0.0
      %3657 = vmatpush1.msra.mxu0 0.0
      %3658 = vmatprep.subr.mxu0 0.0
      %3659 = vmatpush1.msra.mxu0 0.0
      %3660 = vmatprep.subr.mxu0 0.0
      %3661 = vmatpush1.msra.mxu0 0.0
      %3662 = vmatprep.subr.mxu0 0.0
      %3663 = vmatpush1.msra.mxu0 0.0
      %3664 = vmatprep.subr.mxu0 0.0
      %3665 = vmatpush1.msra.mxu0 0.0
      %3666 = vmatprep.subr.mxu0 0.0
      %3667 = vmatpush1.msra.mxu0 0.0
      %3668 = vmatprep.subr.mxu0 0.0
      %3669 = vmatpush1.msra.mxu0 0.0
      %3670 = vmatprep.subr.mxu0 0.0
      %3671 = vmatpush1.msra.mxu0 0.0
      %3672 = vmatprep.subr.mxu0 0.0
      %3673 = vmatpush1.msra.mxu0 0.0
      %3674 = vmatprep.subr.mxu0 0.0
      %3675 = vmatpush1.msra.mxu0 0.0
      %3676 = vmatprep.subr.mxu0 0.0
      %3677 = vmatpush1.msra.mxu0 0.0
      %3678 = vmatprep.subr.mxu0 0.0
      %3679 = vmatpush1.msra.mxu0 0.0
      %3680 = vmatprep.subr.mxu0 0.0
      %3681 = vmatpush1.msra.mxu0 0.0
      %3682 = vmatprep.subr.mxu0 0.0
      %3683 = vmatpush1.msra.mxu0 0.0
      %3684 = vmatprep.subr.mxu0 0.0
      %3685 = vmatpush1.msra.mxu0 0.0
      %3686 = vmatprep.subr.mxu0 0.0
      %3687 = vmatpush1.msra.mxu0 0.0
      %3688 = vmatprep.subr.mxu0 0.0
      %3689 = vmatpush1.msra.mxu0 0.0
      %3690 = vmatprep.subr.mxu0 0.0
      %3691 = vmatpush1.msra.mxu0 0.0
      %3692 = vmatprep.subr.mxu0 0.0
      %3693 = vmatpush1.msra.mxu0 0.0
      %3694 = vmatprep.subr.mxu0 0.0
      %3695 = vmatpush1.msra.mxu0 0.0
      %3696 = vmatprep.subr.mxu0 0.0
      %3697 = vmatpush1.msra.mxu0 0.0
      %3698 = vmatprep.subr.mxu0 0.0
      %3699 = vmatpush1.msra.mxu0 0.0
      %3700 = vmatprep.subr.mxu0 0.0
      %3701 = vmatpush1.msra.mxu0 0.0
      %3702 = vmatprep.subr.mxu0 0.0
      %3703 = vmatpush1.msra.mxu0 0.0
      %3704 = vmatprep.subr.mxu0 0.0
      %3705 = vmatpush1.msra.mxu0 0.0
      %3706 = vmatprep.subr.mxu0 0.0
      %3707 = vmatpush1.msra.mxu0 0.0
      %3708 = vmatprep.subr.mxu0 0.0
      %3709 = vmatpush1.msra.mxu0 0.0
      %3710 = vmatprep.mubr.f32.mxu0 0.0
      %3711 = vmatmul.mubr.f32.gmra.mrb[0].mxu0 %v3638
      %v3712 = vpop.f32.mrb[0].mxu0
      %v3713 = vadd.f32 %v3635, %v3712
      %v3714 = vpop.f32.mrb[0].mxu0
      %3715 = vmatprep.mubr.f32.mxu0 0.0
      %3716 = vmatmul.mubr.f32.gmra.mrb[0].mxu0 %v3641
      %v3717 = vpop.f32.mrb[0].mxu0
      %v3718 = vadd.f32 %v3635, %v3717
      %v3719 = vpop.f32.mrb[0].mxu0
      %3720 = vmatprep.mubr.f32.mxu0 0.0
      %3721 = vmatmul.mubr.f32.gmra.mrb[0].mxu0 %v3644
      %v3722 = vpop.f32.mrb[0].mxu0
      %v3723 = vadd.f32 %v3635, %v3722
      %v3724 = vpop.f32.mrb[0].mxu0
      %3725 = vdwg.mxu0
      %v3726 = vmul.f32 %v3713, 0.5
      %v3727 = vmul.f32 %v3718, 0.5
      %v3728 = vmul.f32 %v3723, 0.5
      %v3729 = vmul.f32 %v3713, 0.044715
      %v3730 = vmul.f32 %v3718, 0.044715
      %v3731 = vmul.f32 %v3723, 0.044715
      %v3732 = vmul.f32 %v3729, %v3713
      %v3733 = vmul.f32 %v3730, %v3718
      %v3734 = vmul.f32 %v3731, %v3723
      %v3735 = vmul.f32 %v3732, %v3713
      %v3736 = vmul.f32 %v3733, %v3718
      %v3737 = vmul.f32 %v3734, %v3723
      %v3738 = vadd.f32 %v3713, %v3735
      %v3739 = vadd.f32 %v3718, %v3736
      %v3740 = vadd.f32 %v3723, %v3737
      %v3741 = vmul.f32 %v3738, 0.7978846
      %v3742 = vmul.f32 %v3739, 0.7978846
      %v3743 = vmul.f32 %v3740, 0.7978846
      %v3744 = vtanh.pop %v3741
      %v3745 = vtanh.pop %v3742
      %v3746 = vtanh.pop %v3743
      %v3747 = vadd.f32 %v3744, 1.0
      %v3748 = vadd.f32 %v3745, 1.0
      %v3749 = vadd.f32 %v3746, 1.0
      %v3750 = vmul.f32 %v3726, %v3747
      %v3751 = vmul.f32 %v3727, %v3748
      %v3752 = vmul.f32 %v3728, %v3749
      %s3753 = scalar_lea.vmem %s12, 64
      %v3754 = vld [vmem:[%s3753] sm:$0xff]
      %v3755 = vld [vmem:[%s3753 + $0x8] sm:$0xff]
      %v3756 = vld [vmem:[%s3753 + $0x10] sm:$0xff]
      %v3757 = vld [vmem:[%s3753 + $0x18] sm:$0xff]
      %v3758 = vld [vmem:[%s3753 + $0x20] sm:$0xff]
      %v3759 = vld [vmem:[%s3753 + $0x28] sm:$0xff]
      %v3760 = vld [vmem:[%s3753 + $0x30] sm:$0xff]
      %v3761 = vld [vmem:[%s3753 + $0x38] sm:$0xff]
      %s3762 = scalar_lea.vmem %s13, 1
      %v3763 = vld [vmem:[%s3762] sm:$0x1]
      %v3765 = vlaneseq
      %v3766 = vshrl.u32 %v3765, 7
      %v3767 = vsub.s32 0, %v3766
      %v3768 = vrot.slane %v3763, %v3767
      %v3771 = vsel %vm2118, %v3750, 0
      %v3774 = vsel %vm2118, %v3751, 0
      %v3777 = vsel %vm2118, %v3752, 0
      %3779 = vmatprep.subr.mxu0 0.0
      %3780 = vmatpush1.msra.mxu0 %v3754
      %3781 = vmatprep.subr.mxu0 0.0
      %3782 = vmatpush1.msra.mxu0 %v3755
      %3783 = vmatprep.subr.mxu0 0.0
      %3784 = vmatpush1.msra.mxu0 %v3756
      %3785 = vmatprep.subr.mxu0 0.0
      %3786 = vmatpush1.msra.mxu0 %v3757
      %3787 = vmatprep.subr.mxu0 0.0
      %3788 = vmatpush1.msra.mxu0 %v3758
      %3789 = vmatprep.subr.mxu0 0.0
      %3790 = vmatpush1.msra.mxu0 %v3759
      %3791 = vmatprep.subr.mxu0 0.0
      %3792 = vmatpush1.msra.mxu0 %v3760
      %3793 = vmatprep.subr.mxu0 0.0
      %3794 = vmatpush1.msra.mxu0 %v3761
      %3795 = vmatprep.subr.mxu0 0.0
      %3796 = vmatpush1.msra.mxu0 0.0
      %3797 = vmatprep.subr.mxu0 0.0
      %3798 = vmatpush1.msra.mxu0 0.0
      %3799 = vmatprep.subr.mxu0 0.0
      %3800 = vmatpush1.msra.mxu0 0.0
      %3801 = vmatprep.subr.mxu0 0.0
      %3802 = vmatpush1.msra.mxu0 0.0
      %3803 = vmatprep.subr.mxu0 0.0
      %3804 = vmatpush1.msra.mxu0 0.0
      %3805 = vmatprep.subr.mxu0 0.0
      %3806 = vmatpush1.msra.mxu0 0.0
      %3807 = vmatprep.subr.mxu0 0.0
      %3808 = vmatpush1.msra.mxu0 0.0
      %3809 = vmatprep.subr.mxu0 0.0
      %3810 = vmatpush1.msra.mxu0 0.0
      %3811 = vmatprep.subr.mxu0 0.0
      %3812 = vmatpush1.msra.mxu0 0.0
      %3813 = vmatprep.subr.mxu0 0.0
      %3814 = vmatpush1.msra.mxu0 0.0
      %3815 = vmatprep.subr.mxu0 0.0
      %3816 = vmatpush1.msra.mxu0 0.0
      %3817 = vmatprep.subr.mxu0 0.0
      %3818 = vmatpush1.msra.mxu0 0.0
      %3819 = vmatprep.subr.mxu0 0.0
      %3820 = vmatpush1.msra.mxu0 0.0
      %3821 = vmatprep.subr.mxu0 0.0
      %3822 = vmatpush1.msra.mxu0 0.0
      %3823 = vmatprep.subr.mxu0 0.0
      %3824 = vmatpush1.msra.mxu0 0.0
      %3825 = vmatprep.subr.mxu0 0.0
      %3826 = vmatpush1.msra.mxu0 0.0
      %3827 = vmatprep.subr.mxu0 0.0
      %3828 = vmatpush1.msra.mxu0 0.0
      %3829 = vmatprep.subr.mxu0 0.0
      %3830 = vmatpush1.msra.mxu0 0.0
      %3831 = vmatprep.subr.mxu0 0.0
      %3832 = vmatpush1.msra.mxu0 0.0
      %3833 = vmatprep.subr.mxu0 0.0
      %3834 = vmatpush1.msra.mxu0 0.0
      %3835 = vmatprep.subr.mxu0 0.0
      %3836 = vmatpush1.msra.mxu0 0.0
      %3837 = vmatprep.subr.mxu0 0.0
      %3838 = vmatpush1.msra.mxu0 0.0
      %3839 = vmatprep.subr.mxu0 0.0
      %3840 = vmatpush1.msra.mxu0 0.0
      %3841 = vmatprep.subr.mxu0 0.0
      %3842 = vmatpush1.msra.mxu0 0.0
      %3843 = vmatprep.mubr.f32.mxu0 0.0
      %3844 = vmatmul.mubr.f32.gmra.mrb[0].mxu0 %v3771
      %v3845 = vpop.f32.mrb[0].mxu0
      %v3846 = vadd.f32 %v3768, %v3845
      %v3847 = vpop.f32.mrb[0].mxu0
      %3848 = vmatprep.mubr.f32.mxu0 0.0
      %3849 = vmatmul.mubr.f32.gmra.mrb[0].mxu0 %v3774
      %v3850 = vpop.f32.mrb[0].mxu0
      %v3851 = vadd.f32 %v3768, %v3850
      %v3852 = vpop.f32.mrb[0].mxu0
      %3853 = vmatprep.mubr.f32.mxu0 0.0
      %3854 = vmatmul.mubr.f32.gmra.mrb[0].mxu0 %v3777
      %v3855 = vpop.f32.mrb[0].mxu0
      %v3856 = vadd.f32 %v3768, %v3855
      %v3857 = vpop.f32.mrb[0].mxu0
      %3858 = vdwg.mxu0
      %v3859 = vadd.f32 %v3621, %v3846
      %v3860 = vadd.f32 %v3622, %v3851
      %v3861 = vadd.f32 %v3623, %v3856
      %s3862 = scalar_lea.vmem %s14, 1
      %v3863 = vld [vmem:[%s3862] sm:$0x1]
      %s3864 = scalar_lea.vmem %s15, 1
      %v3865 = vld [vmem:[%s3864] sm:$0x1]
      %v3866 = vsel %vm546, %v3859, 0.0
      %3867 = vadd.xlane.f32.xlu0 %v3866
      %v3868 = vpop.xlane.xlu0 %3867
      %v3869 = vsel %vm546, %v3860, 0.0
      %3870 = vadd.xlane.f32.xlu0 %v3869
      %v3871 = vpop.xlane.xlu0 %3870
      %v3872 = vsel %vm546, %v3861, 0.0
      %3873 = vadd.xlane.f32.xlu0 %v3872
      %v3874 = vpop.xlane.xlu0 %3873
      %v3875 = vmul.f32 %v3868, %v556
      %v3876 = vmul.f32 %v3871, %v556
      %v3877 = vmul.f32 %v3874, %v556
      %v3878 = vsub.f32 %v3859, %v3875
      %v3879 = vsub.f32 %v3860, %v3876
      %v3880 = vsub.f32 %v3861, %v3877
      %v3881 = vmul.f32 %v3878, %v3878
      %v3882 = vmul.f32 %v3879, %v3879
      %v3883 = vmul.f32 %v3880, %v3880
      %v3884 = vsel %vm546, %v3881, 0.0
      %3885 = vadd.xlane.f32.xlu0 %v3884
      %v3886 = vpop.xlane.xlu0 %3885
      %v3887 = vsel %vm546, %v3882, 0.0
      %3888 = vadd.xlane.f32.xlu0 %v3887
      %v3889 = vpop.xlane.xlu0 %3888
      %v3890 = vsel %vm546, %v3883, 0.0
      %3891 = vadd.xlane.f32.xlu0 %v3890
      %v3892 = vpop.xlane.xlu0 %3891
      %v3893 = vmul.f32 %v3886, %v556
      %v3894 = vmul.f32 %v3889, %v556
      %v3895 = vmul.f32 %v3892, %v556
      %v3896 = vadd.f32 %v3893, 1e-12
      %v3897 = vadd.f32 %v3894, 1e-12
      %v3898 = vadd.f32 %v3895, 1e-12
      %v3899 = vrsqrt.pop %v3896
      %v3900 = vrsqrt.pop %v3897
      %v3901 = vrsqrt.pop %v3898
      %v3902 = vmul.f32 %v3878, %v3899
      %v3903 = vmul.f32 %v3879, %v3900
      %v3904 = vmul.f32 %v3880, %v3901
      %v3906 = vlaneseq
      %v3907 = vshrl.u32 %v3906, 7
      %v3908 = vsub.s32 0, %v3907
      %v3909 = vrot.slane %v3863, %v3908
      %v3911 = vmul.f32 %v3902, %v3909
      %v3912 = vmul.f32 %v3903, %v3909
      %v3913 = vmul.f32 %v3904, %v3909
      %v3915 = vlaneseq
      %v3916 = vshrl.u32 %v3915, 7
      %v3917 = vsub.s32 0, %v3916
      %v3918 = vrot.slane %v3865, %v3917
      %v3920 = vadd.f32 %v3911, %v3918
      %v3921 = vadd.f32 %v3912, %v3918
      %v3922 = vadd.f32 %v3913, %v3918
      %v3926 = vrot.slane %v3921, 7
      %vm3927 = vcmask 1041409
      %v3928 = vsel %vm3927, %v3926, %v3920
      %v3929 = vrot.slane %v3922, 6
      %vm3930 = vcmask 1042434
      %v3931 = vsel %vm3930, %v3929, %v3928
      %vm3933 = vcmask 256000
      %3934 = vst.msk [vmem:[%s540] sm:$0x7] %vm3933, %v3931
      %p3935 = scmp.lt.s32.totalorder %s27, 1
      %s3936 = scalar_select %p3935, %s27, 1
      %s3937 = smul.addr %s3936, 4
      %s3938 = scalar_lea.vmem %s16, %s3937
      // Predicated region
      $region85: #{bert_for_representation.1} parent=83 // pred_check
        %p3939 = pneg %p391
      $region86: #{bert_for_representation.1} parent=83 // pred_check_branch
        %3941 = sbr.rel (%p3939) target = $region88
      $region87: #{bert_for_representation.1} parent=83 // pred_region
        _
      $region88: #{bert_for_representation.1} parent=83 // pred_fallthru
        _
    $region84: #{bert_for_representation.1} parent=5 // pred_fallthru
      _
    %p3942 = scmp.le.s32.totalorder 2, %s22
    // Predicated region
    $region89: #{bert_for_representation.1} parent=5 // pred_check
      %p3943 = pneg %p3942
    $region90: #{bert_for_representation.1} parent=5 // pred_check_branch
      %3945 = sbr.rel (%p3943) target = $region92
    $region91: #{bert_for_representation.1} parent=5 // pred_region
      %s3946 = ssub.s32 %s22, 2
      // Predicated region
      $region93: #{bert_for_representation.1} parent=91 // pred_check
        %p3947 = pneg %p397
      $region94: #{bert_for_representation.1} parent=91 // pred_check_branch
        %3949 = sbr.rel (%p3947) target = $region96
      $region95: #{bert_for_representation.1} parent=91 // pred_region
        %p3950 = scmp.lt.s32.totalorder %s28, 1
        %s3951 = scalar_select %p3950, %s28, 1
        %s3952 = smul.addr %s3951, 4
        %s3953 = scalar_lea.vmem %s16, %s3952
      $region96: #{bert_for_representation.1} parent=91 // pred_fallthru
        _
    $region92: #{bert_for_representation.1} parent=5 // pred_fallthru
      _
  $region6: #{bert_for_representation.1} parent=0 // loop_footer
    %s26 = sadd.s32 1, %s22
  $region7: #{bert_for_representation.1} parent=0 // loop_footer_branch
    %21 = sbr.rel target = $region3
  $region8: #{bert_for_representation.1} parent=0 // loop_exit
    _

</llo_original>
